<compile_context>
chip_gen: v7x
topology: tpu7x:2x2x1
jax: 0.10.0
libtpu: 0.0.40
codegen_flags: <defaults>
</compile_context>

<pallas_src>
import math
from functools import lru_cache

import numpy as np

import jax
import jax.numpy as jnp
from jax import lax
from jax.experimental import pallas as pl
from jax.experimental.pallas import tpu as pltpu


# ---------------------------------------------------------------------------
# Generation-aware sizing helpers (queried lazily at trace time, cached)
# ---------------------------------------------------------------------------

@lru_cache(maxsize=None)
def _vmem_capacity():
    try:
        cap = int(pltpu.get_tpu_info().vmem_capacity_bytes)
        if cap > 0:
            return cap
    except Exception:
        pass
    return 64 * 1024 * 1024          # safe default = v7x per-TC capacity


def _vmem_limit():
    return int(min(_vmem_capacity() * 3 // 4, 100 * 1024 * 1024))


def _mosaic_params(*sems):
    if sems:
        return pltpu.CompilerParams(dimension_semantics=tuple(sems),
                                    vmem_limit_bytes=_vmem_limit())
    return pltpu.CompilerParams(vmem_limit_bytes=_vmem_limit())


def _round_up(x, m):
    return ((int(x) + m - 1) // m) * m


def _largest_tile(dim, cap, quantum):
    """Largest multiple of `quantum` dividing `dim` that is <= cap (else full dim)."""
    dim = int(dim)
    cap = max(int(cap), quantum)
    if dim <= cap:
        return dim
    if dim % quantum != 0:
        # TODO(synk): callers pad the big streamed axes, so this ragged fallback is
        # only reachable for an oversized ragged channel dim.
        return dim
    t = cap - cap % quantum
    while t >= quantum and dim % t != 0:
        t -= quantum
    return t if t >= quantum else dim


def _lane_cap(rows, n_stream):
    """Max f32 lane-tile width so n_stream double-buffered (rows, T) blocks fit VMEM."""
    rows = max(int(rows), 8)
    budget = _vmem_capacity() // 4
    cap = budget // (rows * 4 * n_stream * 2)
    cap = max(128, min(cap, 32768))
    return cap - cap % 128


# ---------------------------------------------------------------------------
# Fused streaming kernel: single-pass flash softmax-Gram + contrast sums
# ---------------------------------------------------------------------------

def _make_fused_kernel(td, nk_half, d_real, d_pad):
    masked = (d_pad != d_real)

    def kernel(nrm_ref, nf_ref, gacc_ref, m_ref, l_ref, w12_ref, w1_ref, w2_ref):
        c = pl.program_id(0)
        k = pl.program_id(1)

        @pl.when(k == 0)
        def _():
            gacc_ref[...] = jnp.zeros(gacc_ref.shape, jnp.float32)
            m_ref[...] = jnp.full(m_ref.shape, -jnp.inf, jnp.float32)
            l_ref[...] = jnp.zeros(l_ref.shape, jnp.float32)
            w12_ref[...] = jnp.zeros(w12_ref.shape, jnp.float32)
            w1_ref[...] = jnp.zeros(w1_ref.shape, jnp.float32)
            w2_ref[...] = jnp.zeros(w2_ref.shape, jnp.float32)

        y = nrm_ref[...].astype(jnp.float32)           # (B, td) zero-padded normal proj
        x = nf_ref[...].astype(jnp.float32)            # (B, td) zero-padded noised feat

        # --- contrast partial sums (zero padding contributes exactly 0) ---
        w12_ref[...] += jnp.sum(x * y, axis=-1, keepdims=True)
        w1_ref[...] += jnp.sum(x * x, axis=-1, keepdims=True)
        w2_ref[...] += jnp.sum(y * y, axis=-1, keepdims=True)

        # --- single-pass flash-style softmax Gram on y (softmax never hits HBM) ---
        if masked:
            col = (c * nk_half + k) * td + lax.broadcasted_iota(jnp.int32, y.shape, 1)
            y = jnp.where(col < d_real, y, -1e30)      # padded lanes -> exp() == 0
        m_old = m_ref[...]
        m_new = jnp.maximum(m_old, jnp.max(y, axis=-1, keepdims=True))
        alpha = jnp.exp(m_old - m_new)                 # (B, 1)
        e = jnp.exp(y - m_new)                         # (B, td)
        l_ref[...] = l_ref[...] * alpha + jnp.sum(e, axis=-1, keepdims=True)
        rescale = lax.dot_general(alpha, alpha, (((1,), (1,)), ((), ())),
                                  preferred_element_type=jnp.float32)   # outer(a, a)
        gram_tile = lax.dot_general(e, e, (((1,), (1,)), ((), ())),
                                    preferred_element_type=jnp.float32)
        gacc_ref[...] = gacc_ref[...] * rescale + gram_tile
        m_ref[...] = m_new

    return kernel


def fused_softmax_gram_and_contrast(flat_normal, flat_noised):
    """Returns (G, cos): G[i,j] = <softmax(n_i), softmax(n_j)> and cos[i] = cos(nf_i, n_i),
    reading each flattened feature from HBM exactly once."""
    B, D = flat_normal.shape
    d_pad = _round_up(D, 128)
    td = _largest_tile(d_pad, _lane_cap(B, n_stream=2), 128)
    nk = d_pad // td
    n_split = 2 if (nk >= 2 and nk % 2 == 0) else 1    # megacore split (v7x); 1 elsewhere
    nk_half = nk // n_split

    y = flat_normal
    x = flat_noised
    if d_pad != D:
        # TODO(synk): the zero-pad is one extra HBM copy; only hit for ragged (non-x128) D.
        y = jnp.pad(y, ((0, 0), (0, d_pad - D)))
        x = jnp.pad(x, ((0, 0), (0, d_pad - D)))

    kernel = _make_fused_kernel(td, nk_half, D, d_pad)
    vec = jax.ShapeDtypeStruct((n_split, B, 1), jnp.float32)
    in_map = lambda c, k: (0, c * nk_half + k)
    out_map = lambda c, k: (c, 0, 0)

    A, m, l, w12, w1, w2 = pl.pallas_call(
        kernel,
        out_shape=(jax.ShapeDtypeStruct((n_split, B, B), jnp.float32),
                   vec, vec, vec, vec, vec),
        grid_spec=pltpu.PrefetchScalarGridSpec(
            num_scalar_prefetch=0,
            grid=(n_split, nk_half),
            in_specs=[pl.BlockSpec((B, td), in_map),
                      pl.BlockSpec((B, td), in_map)],
            out_specs=[pl.BlockSpec((None, B, B), out_map),
                       pl.BlockSpec((None, B, 1), out_map),
                       pl.BlockSpec((None, B, 1), out_map),
                       pl.BlockSpec((None, B, 1), out_map),
                       pl.BlockSpec((None, B, 1), out_map),
                       pl.BlockSpec((None, B, 1), out_map)]),
        compiler_params=_mosaic_params("parallel", "arbitrary"),
    )(y, x)

    # Combine per-core flash partials and normalize once (tiny (S,B,B) XLA math).
    M = jnp.max(m, axis=0)                              # (B, 1)  global row max
    s = jnp.exp(m - M)                                  # (S, B, 1)
    L = jnp.sum(l * s, axis=0)                          # (B, 1)  global sum-exp
    G = jnp.sum(A * s * jnp.reshape(s, (n_split, 1, B)), axis=0)
    invL = 1.0 / L
    G = G * invL * jnp.reshape(invL, (1, B))            # <softmax(x_i), softmax(x_j)>

    w12s = jnp.sum(w12, axis=0)
    w1s = jnp.sum(w1, axis=0)
    w2s = jnp.sum(w2, axis=0)
    # NOTE: torch clamps each norm (max(||.||, eps)); we clamp the product
    # max(w1*w2, eps^2) -- only differs for near-zero vectors.
    cos = w12s * lax.rsqrt(jnp.maximum(w1s * w2s, 1e-16))
    return G, cos[:, 0]


# ---------------------------------------------------------------------------
# On-chip debiased Sinkhorn divergence, batched over levels from (L, B, B) costs
# ---------------------------------------------------------------------------

def _sinkhorn_kernel(eps_ref, cxx_ref, cxy_ref, o_ref):
    """All levels' eps-annealed fixed points in one launch (the path is latency-bound).
    The symmetric (debiasing) potential is carried in both row and column
    orientation -- c_xx is exactly symmetric -- so no in-kernel transposes are
    needed; the cross potentials alternate reduction axes for the same reason."""
    n_steps = eps_ref.shape[0]
    n_lvl, b, _ = cxx_ref.shape
    log_w = -math.log(b)                                 # uniform weights

    cxx = cxx_ref[...]
    cxy = cxy_ref[...]

    def lse(mat, axis):
        mx = jnp.max(mat, axis=axis, keepdims=True)
        return mx + jnp.log(jnp.sum(jnp.exp(mat - mx), axis=axis, keepdims=True))

    def body(t, carry):
        fxx_c, fxx_r, fxy, gxy = carry
        e = eps_ref[t]
        inv_e = 1.0 / e
        # Debiasing potential on c_xx: averaged fixed-point update, column & row views.
        t_c = -e * lse(log_w + (fxx_r - cxx) * inv_e, axis=2)   # (L, B, 1)
        t_r = -e * lse(log_w + (fxx_c - cxx) * inv_e, axis=1)   # (L, 1, B)
        fxx_c = 0.5 * (fxx_c + t_c)
        fxx_r = 0.5 * (fxx_r + t_r)
        # Cross potentials on c_xy (g uses the freshly updated f).
        fxy = -e * lse(log_w + (gxy - cxy) * inv_e, axis=2)     # (L, B, 1)
        gxy = -e * lse(log_w + (fxy - cxy) * inv_e, axis=1)     # (L, 1, B)
        return fxx_c, fxx_r, fxy, gxy

    init = (jnp.zeros((n_lvl, b, 1), jnp.float32),
            jnp.zeros((n_lvl, 1, b), jnp.float32),
            jnp.zeros((n_lvl, b, 1), jnp.float32),
            jnp.zeros((n_lvl, 1, b), jnp.float32))
    fxx_c, _, fxy, gxy = lax.fori_loop(0, n_steps, body, init)
    # Sum over levels of: mean(f_xy) + mean(g_xy) - 2*mean(f_xx)
    # (with y = x[perm], mean(g_yy) == mean(f_xx)).
    o_ref[0, 0] = (jnp.sum(fxy) + jnp.sum(gxy) - 2.0 * jnp.sum(fxx_c)) / b


def sinkhorn_divergence_from_costs(eps_sched, cxx, cxy):
    out = pl.pallas_call(
        _sinkhorn_kernel,
        out_shape=jax.ShapeDtypeStruct((1, 1), jnp.float32),
        in_specs=[pl.BlockSpec(memory_space=pltpu.MemorySpace.SMEM),
                  pl.BlockSpec(memory_space=pltpu.MemorySpace.VMEM),
                  pl.BlockSpec(memory_space=pltpu.MemorySpace.VMEM)],
        out_specs=pl.BlockSpec(memory_space=pltpu.MemorySpace.SMEM),
        compiler_params=_mosaic_params(),
    )(eps_sched, cxx, cxy)
    return out[0, 0]


def _eps_schedule(blur=0.05, p=2, scaling=0.95, eps0=1.0, extra=20):
    # TODO(synk): approximation of geomloss' diameter-driven eps scaling (see header).
    eps = blur ** p
    q = scaling ** p
    n_anneal = int(math.ceil(math.log(eps / eps0) / math.log(q))) + 1
    sched = eps0 * (q ** np.arange(n_anneal))
    sched = np.concatenate([sched, np.full((extra,), eps)])
    return jnp.asarray(np.maximum(sched, eps), jnp.float32)


# ---------------------------------------------------------------------------
# Reconstruct: mean(1 - cos(x, y, dim=channel)) on NCHW, no HBM transpose
# ---------------------------------------------------------------------------

def _recon_partial_kernel(x_ref, y_ref, w12_ref, w1_ref, w2_ref):
    ci = pl.program_id(2)

    @pl.when(ci == 0)
    def _():
        w12_ref[...] = jnp.zeros(w12_ref.shape, jnp.float32)
        w1_ref[...] = jnp.zeros(w1_ref.shape, jnp.float32)
        w2_ref[...] = jnp.zeros(w2_ref.shape, jnp.float32)

    x = x_ref[...].astype(jnp.float32)                  # (B, t_c, t_hw)
    y = y_ref[...].astype(jnp.float32)
    w12_ref[...] += jnp.sum(x * y, axis=1)
    w1_ref[...] += jnp.sum(x * x, axis=1)
    w2_ref[...] += jnp.sum(y * y, axis=1)


def _recon_tiles(B, C, HW):
    rows = max(int(B), 8)
    budget = _vmem_limit() // 2
    # Prefer full-HW rows (long contiguous DMA bursts, fewest grid steps); shrink t_c.
    out_bytes_full = 3 * 2 * rows * HW * 4
    per_c_bytes_full = 2 * 2 * rows * HW * 4
    cap_c = (budget - out_bytes_full) // max(per_c_bytes_full, 1)
    if cap_c >= min(8, C):
        return _largest_tile(C, cap_c, 8), HW, HW
    # Fallback for very large spatial maps: tile (padded) HW.
    hw_pad = _round_up(HW, 128)
    t_hw = _largest_tile(hw_pad, 2048, 128)
    cap_c = max(8, (budget - 3 * 2 * rows * t_hw * 4) // (2 * 2 * rows * t_hw * 4))
    return _largest_tile(C, cap_c, 8), t_hw, hw_pad


def cosine_reconstruct(x_nchw, y_nchw):
    """mean(1 - cosine_similarity(x, y, dim=1)) for NCHW tensors."""
    B, C, H, W = x_nchw.shape
    HW = H * W
    t_c, t_hw, hw_pad = _recon_tiles(B, C, HW)
    x = x_nchw.reshape(B, C, HW)                        # free reshape, no transpose copy
    y = y_nchw.reshape(B, C, HW)
    if hw_pad != HW:
        x = jnp.pad(x, ((0, 0), (0, 0), (0, hw_pad - HW)))
        y = jnp.pad(y, ((0, 0), (0, 0), (0, hw_pad - HW)))
    n_hw = hw_pad // t_hw
    n_c = C // t_c
    n_split = 2 if (n_c >= 2 and n_c % 2 == 0) else 1   # megacore channel split (v7x)
    nc_half = n_c // n_split

    in_map = lambda c, hw, ci: (0, c * nc_half + ci, hw)
    out_map = lambda c, hw, ci: (c, 0, hw)
    out_sds = jax.ShapeDtypeStruct((n_split, B, hw_pad), jnp.float32)

    w12, w1, w2 = pl.pallas_call(
        _recon_partial_kernel,
        out_shape=(out_sds, out_sds, out_sds),
        grid_spec=pltpu.PrefetchScalarGridSpec(
            num_scalar_prefetch=0,
            grid=(n_split, n_hw, nc_half),
            in_specs=[pl.BlockSpec((B, t_c, t_hw), in_map),
                      pl.BlockSpec((B, t_c, t_hw), in_map)],
            out_specs=[pl.BlockSpec((None, B, t_hw), out_map),
                       pl.BlockSpec((None, B, t_hw), out_map),
                       pl.BlockSpec((None, B, t_hw), out_map)]),
        compiler_params=_mosaic_params("parallel", "arbitrary", "arbitrary"),
    )(x, y)

    w12 = jnp.sum(w12, axis=0)
    w1 = jnp.sum(w1, axis=0)
    w2 = jnp.sum(w2, axis=0)
    # NOTE: product-of-norms clamp (see fused kernel NOTE).
    cos = w12 * lax.rsqrt(jnp.maximum(w1 * w2, 1e-16))
    cos = cos[:, :HW]                                   # drop padded spatial columns (exact)
    return jnp.mean(1.0 - cos)


# ---------------------------------------------------------------------------
# Revisit_RDLoss.forward
# ---------------------------------------------------------------------------

def revisit_rd_loss(noised_feature, projected_noised_feature, projected_normal_feature, key):
    B = projected_normal_feature[0].shape[0]
    perm = jax.random.permutation(key, B)               # == torch.randperm(B)
    eps_sched = _eps_schedule()

    cxx_levels = []
    cxy_levels = []
    loss_reconstruct = jnp.float32(0.0)
    loss_contrast = jnp.float32(0.0)

    for nf, abn_proj, nrm_proj in zip(noised_feature,
                                      projected_noised_feature,
                                      projected_normal_feature):
        flat_normal = nrm_proj.reshape(B, -1)           # == .view(B, -1) on NCHW
        flat_noised = nf.reshape(B, -1)

        # One streaming pass per level: flash softmax-Gram + contrast sums fused.
        gram, cos = fused_softmax_gram_and_contrast(flat_normal, flat_noised)

        # p=2 Sinkhorn cost: C_xx[i,j] = 0.5 * ||softmax(x_i) - softmax(x_j)||^2.
        dg = jnp.diagonal(gram)
        cxx = 0.5 * jnp.maximum(dg[:, None] + dg[None, :] - 2.0 * gram, 0.0)
        cxx_levels.append(cxx)
        # softmax commutes with the batch permutation -> cross cost is a column perm.
        cxy_levels.append(jnp.take(cxx, perm, axis=1))

        # Contrast: CosineEmbeddingLoss(margin=0.5), target = -1.
        loss_contrast = loss_contrast + jnp.mean(jnp.maximum(cos - 0.5, 0.0))

        # Reconstruct: mean(1 - cos(abnormal_proj, normal_proj)) along channels.
        loss_reconstruct = loss_reconstruct + cosine_reconstruct(abn_proj, nrm_proj)

    # All levels' Sinkhorn fixed points batched into one kernel launch.
    loss_ssot = sinkhorn_divergence_from_costs(
        eps_sched, jnp.stack(cxx_levels), jnp.stack(cxy_levels))

    return (loss_ssot + 0.01 * loss_reconstruct + 0.1 * loss_contrast) / 1.11


revisit_rd_loss_jit = jax.jit(revisit_rd_loss)


# ---------------------------------------------------------------------------
# Demo
# ---------------------------------------------------------------------------

if __name__ == "__main__":
    key = jax.random.PRNGKey(0)
    shapes = [(2, 4, 16, 16), (2, 8, 8, 8), (2, 16, 4, 4)]    # three encoder blocks (NCHW)
    keys = jax.random.split(key, 10)

    noised_feature = tuple(
        jax.random.normal(keys[i], s, jnp.float32) for i, s in enumerate(shapes))
    projected_noised_feature = tuple(
        jax.random.normal(keys[3 + i], s, jnp.float32) for i, s in enumerate(shapes))
    projected_normal_feature = tuple(
        jax.random.normal(keys[6 + i], s, jnp.float32) for i, s in enumerate(shapes))

    loss = revisit_rd_loss_jit(noised_feature,
                               projected_noised_feature,
                               projected_normal_feature,
                               keys[9])
    jax.block_until_ready(loss)
    assert loss.shape == () and bool(jnp.isfinite(loss))
    print("KERNEL_OK")
</pallas_src>

<mosaic_0001>
module attributes {stable_mosaic.version = 11 : i64} {
  func.func @kernel(%arg0: i32, %arg1: i32, %arg2: memref<2x256xf32, #tpu.memory_space<vmem>>, %arg3: memref<2x256xf32, #tpu.memory_space<vmem>>, %arg4: memref<1x2x2xf32, #tpu.memory_space<vmem>>, %arg5: memref<1x2x1xf32, #tpu.memory_space<vmem>>, %arg6: memref<1x2x1xf32, #tpu.memory_space<vmem>>, %arg7: memref<1x2x1xf32, #tpu.memory_space<vmem>>, %arg8: memref<1x2x1xf32, #tpu.memory_space<vmem>>, %arg9: memref<1x2x1xf32, #tpu.memory_space<vmem>>) attributes {dimension_semantics = [#tpu.dimension_semantics<parallel>, #tpu.dimension_semantics<arbitrary>], iteration_bounds = array<i64: 1, 1>, scalar_prefetch = 0 : i64, scratch_operands = 0 : i64, tpu.core_type = #tpu.core_type<tc>, window_params = [{transform_indices = @transform_0, window_bounds = array<i64: 2, 256>}, {transform_indices = @transform_1, window_bounds = array<i64: 2, 256>}, {transform_indices = @transform_2, window_bounds = array<i64: 1, 2, 2>}, {transform_indices = @transform_3, window_bounds = array<i64: 1, 2, 1>}, {transform_indices = @transform_4, window_bounds = array<i64: 1, 2, 1>}, {transform_indices = @transform_5, window_bounds = array<i64: 1, 2, 1>}, {transform_indices = @transform_6, window_bounds = array<i64: 1, 2, 1>}, {transform_indices = @transform_7, window_bounds = array<i64: 1, 2, 1>}]} {
    %c0_i32 = arith.constant 0 : i32
    %0 = arith.cmpi eq, %arg1, %c0_i32 : i32
    %1 = arith.extui %0 : i1 to i32
    %c0_i32_0 = arith.constant 0 : i32
    %2 = arith.cmpi ne, %1, %c0_i32_0 : i32
    scf.if %2 {
      %cst_46 = arith.constant 0.000000e+00 : f32
      %63 = vector.broadcast %cst_46 : f32 to vector<2x2xf32>
      %c0_47 = arith.constant 0 : index
      %c0_48 = arith.constant 0 : index
      %c0_49 = arith.constant 0 : index
      %64 = vector.load %arg4[%c0_47, %c0_48, %c0_49] : memref<1x2x2xf32, #tpu.memory_space<vmem>>, vector<1x2x2xf32>
      %65 = vector.shape_cast %64 : vector<1x2x2xf32> to vector<2x2xf32>
      %66 = vector.shape_cast %63 : vector<2x2xf32> to vector<1x2x2xf32>
      tpu.vector_store %arg4[%c0_47, %c0_48, %c0_49], %66 {strides = array<i32>} : memref<1x2x2xf32, #tpu.memory_space<vmem>>, vector<1x2x2xf32>,
      %cst_50 = arith.constant 0xFF800000 : f32
      %67 = vector.broadcast %cst_50 : f32 to vector<2x1xf32>
      %c0_51 = arith.constant 0 : index
      %c0_52 = arith.constant 0 : index
      %c0_53 = arith.constant 0 : index
      %68 = vector.load %arg5[%c0_51, %c0_52, %c0_53] : memref<1x2x1xf32, #tpu.memory_space<vmem>>, vector<1x2x1xf32>
      %69 = vector.shape_cast %68 : vector<1x2x1xf32> to vector<2x1xf32>
      %70 = vector.shape_cast %67 : vector<2x1xf32> to vector<1x2x1xf32>
      tpu.vector_store %arg5[%c0_51, %c0_52, %c0_53], %70 {strides = array<i32>} : memref<1x2x1xf32, #tpu.memory_space<vmem>>, vector<1x2x1xf32>,
      %cst_54 = arith.constant 0.000000e+00 : f32
      %71 = vector.broadcast %cst_54 : f32 to vector<2x1xf32>
      %c0_55 = arith.constant 0 : index
      %c0_56 = arith.constant 0 : index
      %c0_57 = arith.constant 0 : index
      %72 = vector.load %arg6[%c0_55, %c0_56, %c0_57] : memref<1x2x1xf32, #tpu.memory_space<vmem>>, vector<1x2x1xf32>
      %73 = vector.shape_cast %72 : vector<1x2x1xf32> to vector<2x1xf32>
      %74 = vector.shape_cast %71 : vector<2x1xf32> to vector<1x2x1xf32>
      tpu.vector_store %arg6[%c0_55, %c0_56, %c0_57], %74 {strides = array<i32>} : memref<1x2x1xf32, #tpu.memory_space<vmem>>, vector<1x2x1xf32>,
      %cst_58 = arith.constant 0.000000e+00 : f32
      %75 = vector.broadcast %cst_58 : f32 to vector<2x1xf32>
      %c0_59 = arith.constant 0 : index
      %c0_60 = arith.constant 0 : index
      %c0_61 = arith.constant 0 : index
      %76 = vector.load %arg7[%c0_59, %c0_60, %c0_61] : memref<1x2x1xf32, #tpu.memory_space<vmem>>, vector<1x2x1xf32>
      %77 = vector.shape_cast %76 : vector<1x2x1xf32> to vector<2x1xf32>
      %78 = vector.shape_cast %75 : vector<2x1xf32> to vector<1x2x1xf32>
      tpu.vector_store %arg7[%c0_59, %c0_60, %c0_61], %78 {strides = array<i32>} : memref<1x2x1xf32, #tpu.memory_space<vmem>>, vector<1x2x1xf32>,
      %cst_62 = arith.constant 0.000000e+00 : f32
      %79 = vector.broadcast %cst_62 : f32 to vector<2x1xf32>
      %c0_63 = arith.constant 0 : index
      %c0_64 = arith.constant 0 : index
      %c0_65 = arith.constant 0 : index
      %80 = vector.load %arg8[%c0_63, %c0_64, %c0_65] : memref<1x2x1xf32, #tpu.memory_space<vmem>>, vector<1x2x1xf32>
      %81 = vector.shape_cast %80 : vector<1x2x1xf32> to vector<2x1xf32>
      %82 = vector.shape_cast %79 : vector<2x1xf32> to vector<1x2x1xf32>
      tpu.vector_store %arg8[%c0_63, %c0_64, %c0_65], %82 {strides = array<i32>} : memref<1x2x1xf32, #tpu.memory_space<vmem>>, vector<1x2x1xf32>,
      %cst_66 = arith.constant 0.000000e+00 : f32
      %83 = vector.broadcast %cst_66 : f32 to vector<2x1xf32>
      %c0_67 = arith.constant 0 : index
      %c0_68 = arith.constant 0 : index
      %c0_69 = arith.constant 0 : index
      %84 = vector.load %arg9[%c0_67, %c0_68, %c0_69] : memref<1x2x1xf32, #tpu.memory_space<vmem>>, vector<1x2x1xf32>
      %85 = vector.shape_cast %84 : vector<1x2x1xf32> to vector<2x1xf32>
      %86 = vector.shape_cast %83 : vector<2x1xf32> to vector<1x2x1xf32>
      tpu.vector_store %arg9[%c0_67, %c0_68, %c0_69], %86 {strides = array<i32>} : memref<1x2x1xf32, #tpu.memory_space<vmem>>, vector<1x2x1xf32>,
    } else {
    }
    %c0 = arith.constant 0 : index
    %c0_1 = arith.constant 0 : index
    %3 = vector.load %arg2[%c0, %c0_1] : memref<2x256xf32, #tpu.memory_space<vmem>>, vector<2x256xf32>
    %c0_2 = arith.constant 0 : index
    %c0_3 = arith.constant 0 : index
    %4 = vector.load %arg3[%c0_2, %c0_3] : memref<2x256xf32, #tpu.memory_space<vmem>>, vector<2x256xf32>
    %c0_4 = arith.constant 0 : index
    %c0_5 = arith.constant 0 : index
    %c0_6 = arith.constant 0 : index
    %5 = vector.load %arg7[%c0_4, %c0_5, %c0_6] : memref<1x2x1xf32, #tpu.memory_space<vmem>>, vector<1x2x1xf32>
    %6 = vector.shape_cast %5 : vector<1x2x1xf32> to vector<2x1xf32>
    %7 = arith.mulf %4, %3 : vector<2x256xf32>
    %cst = arith.constant dense<0.000000e+00> : vector<2xf32>
    %8 = vector.multi_reduction <add>, %7, %cst [1] : vector<2x256xf32> to vector<2xf32>
    %9 = vector.shape_cast %8 : vector<2xf32> to vector<2x1xf32>
    %10 = arith.addf %6, %9 : vector<2x1xf32>
    %c0_7 = arith.constant 0 : index
    %c0_8 = arith.constant 0 : index
    %c0_9 = arith.constant 0 : index
    %11 = vector.load %arg7[%c0_7, %c0_8, %c0_9] : memref<1x2x1xf32, #tpu.memory_space<vmem>>, vector<1x2x1xf32>
    %12 = vector.shape_cast %11 : vector<1x2x1xf32> to vector<2x1xf32>
    %13 = vector.shape_cast %10 : vector<2x1xf32> to vector<1x2x1xf32>
    tpu.vector_store %arg7[%c0_7, %c0_8, %c0_9], %13 {strides = array<i32>} : memref<1x2x1xf32, #tpu.memory_space<vmem>>, vector<1x2x1xf32>,
    %c0_10 = arith.constant 0 : index
    %c0_11 = arith.constant 0 : index
    %c0_12 = arith.constant 0 : index
    %14 = vector.load %arg8[%c0_10, %c0_11, %c0_12] : memref<1x2x1xf32, #tpu.memory_space<vmem>>, vector<1x2x1xf32>
    %15 = vector.shape_cast %14 : vector<1x2x1xf32> to vector<2x1xf32>
    %16 = arith.mulf %4, %4 : vector<2x256xf32>
    %cst_13 = arith.constant dense<0.000000e+00> : vector<2xf32>
    %17 = vector.multi_reduction <add>, %16, %cst_13 [1] : vector<2x256xf32> to vector<2xf32>
    %18 = vector.shape_cast %17 : vector<2xf32> to vector<2x1xf32>
    %19 = arith.addf %15, %18 : vector<2x1xf32>
    %c0_14 = arith.constant 0 : index
    %c0_15 = arith.constant 0 : index
    %c0_16 = arith.constant 0 : index
    %20 = vector.load %arg8[%c0_14, %c0_15, %c0_16] : memref<1x2x1xf32, #tpu.memory_space<vmem>>, vector<1x2x1xf32>
    %21 = vector.shape_cast %20 : vector<1x2x1xf32> to vector<2x1xf32>
    %22 = vector.shape_cast %19 : vector<2x1xf32> to vector<1x2x1xf32>
    tpu.vector_store %arg8[%c0_14, %c0_15, %c0_16], %22 {strides = array<i32>} : memref<1x2x1xf32, #tpu.memory_space<vmem>>, vector<1x2x1xf32>,
    %c0_17 = arith.constant 0 : index
    %c0_18 = arith.constant 0 : index
    %c0_19 = arith.constant 0 : index
    %23 = vector.load %arg9[%c0_17, %c0_18, %c0_19] : memref<1x2x1xf32, #tpu.memory_space<vmem>>, vector<1x2x1xf32>
    %24 = vector.shape_cast %23 : vector<1x2x1xf32> to vector<2x1xf32>
    %25 = arith.mulf %3, %3 : vector<2x256xf32>
    %cst_20 = arith.constant dense<0.000000e+00> : vector<2xf32>
    %26 = vector.multi_reduction <add>, %25, %cst_20 [1] : vector<2x256xf32> to vector<2xf32>
    %27 = vector.shape_cast %26 : vector<2xf32> to vector<2x1xf32>
    %28 = arith.addf %24, %27 : vector<2x1xf32>
    %c0_21 = arith.constant 0 : index
    %c0_22 = arith.constant 0 : index
    %c0_23 = arith.constant 0 : index
    %29 = vector.load %arg9[%c0_21, %c0_22, %c0_23] : memref<1x2x1xf32, #tpu.memory_space<vmem>>, vector<1x2x1xf32>
    %30 = vector.shape_cast %29 : vector<1x2x1xf32> to vector<2x1xf32>
    %31 = vector.shape_cast %28 : vector<2x1xf32> to vector<1x2x1xf32>
    tpu.vector_store %arg9[%c0_21, %c0_22, %c0_23], %31 {strides = array<i32>} : memref<1x2x1xf32, #tpu.memory_space<vmem>>, vector<1x2x1xf32>,
    %c0_24 = arith.constant 0 : index
    %c0_25 = arith.constant 0 : index
    %c0_26 = arith.constant 0 : index
    %32 = vector.load %arg5[%c0_24, %c0_25, %c0_26] : memref<1x2x1xf32, #tpu.memory_space<vmem>>, vector<1x2x1xf32>
    %33 = vector.shape_cast %32 : vector<1x2x1xf32> to vector<2x1xf32>
    %cst_27 = arith.constant dense<0xFF800000> : vector<2xf32>
    %34 = vector.multi_reduction <maximumf>, %3, %cst_27 [1] : vector<2x256xf32> to vector<2xf32>
    %35 = vector.shape_cast %34 : vector<2xf32> to vector<2x1xf32>
    %36 = arith.maximumf %33, %35 : vector<2x1xf32>
    %37 = arith.subf %33, %36 : vector<2x1xf32>
    %38 = math.exp %37 : vector<2x1xf32>
    %39 = vector.broadcast %36 : vector<2x1xf32> to vector<2x256xf32>
    %40 = arith.subf %3, %39 : vector<2x256xf32>
    %41 = math.exp %40 : vector<2x256xf32>
    %c0_28 = arith.constant 0 : index
    %c0_29 = arith.constant 0 : index
    %c0_30 = arith.constant 0 : index
    %42 = vector.load %arg6[%c0_28, %c0_29, %c0_30] : memref<1x2x1xf32, #tpu.memory_space<vmem>>, vector<1x2x1xf32>
    %43 = vector.shape_cast %42 : vector<1x2x1xf32> to vector<2x1xf32>
    %44 = arith.mulf %43, %38 : vector<2x1xf32>
    %cst_31 = arith.constant dense<0.000000e+00> : vector<2xf32>
    %45 = vector.multi_reduction <add>, %41, %cst_31 [1] : vector<2x256xf32> to vector<2xf32>
    %46 = vector.shape_cast %45 : vector<2xf32> to vector<2x1xf32>
    %47 = arith.addf %44, %46 : vector<2x1xf32>
    %c0_32 = arith.constant 0 : index
    %c0_33 = arith.constant 0 : index
    %c0_34 = arith.constant 0 : index
    %48 = vector.load %arg6[%c0_32, %c0_33, %c0_34] : memref<1x2x1xf32, #tpu.memory_space<vmem>>, vector<1x2x1xf32>
    %49 = vector.shape_cast %48 : vector<1x2x1xf32> to vector<2x1xf32>
    %50 = vector.shape_cast %47 : vector<2x1xf32> to vector<1x2x1xf32>
    tpu.vector_store %arg6[%c0_32, %c0_33, %c0_34], %50 {strides = array<i32>} : memref<1x2x1xf32, #tpu.memory_space<vmem>>, vector<1x2x1xf32>,
    %cst_35 = arith.constant dense<0.000000e+00> : vector<2x2xf32>
    %51 = tpu.matmul %38, %38, %cst_35 {dimension_numbers = #tpu.dot_dimension_numbers<[1], [1], [0], [0], [0, 0, 1, 0], [], []>} : vector<2x1xf32>, vector<2x1xf32>, vector<2x2xf32> -> vector<2x2xf32>
    %cst_36 = arith.constant dense<0.000000e+00> : vector<2x2xf32>
    %52 = tpu.matmul %41, %41, %cst_36 {dimension_numbers = #tpu.dot_dimension_numbers<[1], [1], [0], [0], [0, 0, 1, 0], [], []>} : vector<2x256xf32>, vector<2x256xf32>, vector<2x2xf32> -> vector<2x2xf32>
    %c0_37 = arith.constant 0 : index
    %c0_38 = arith.constant 0 : index
    %c0_39 = arith.constant 0 : index
    %53 = vector.load %arg4[%c0_37, %c0_38, %c0_39] : memref<1x2x2xf32, #tpu.memory_space<vmem>>, vector<1x2x2xf32>
    %54 = vector.shape_cast %53 : vector<1x2x2xf32> to vector<2x2xf32>
    %55 = arith.mulf %54, %51 : vector<2x2xf32>
    %56 = arith.addf %55, %52 : vector<2x2xf32>
    %c0_40 = arith.constant 0 : index
    %c0_41 = arith.constant 0 : index
    %c0_42 = arith.constant 0 : index
    %57 = vector.load %arg4[%c0_40, %c0_41, %c0_42] : memref<1x2x2xf32, #tpu.memory_space<vmem>>, vector<1x2x2xf32>
    %58 = vector.shape_cast %57 : vector<1x2x2xf32> to vector<2x2xf32>
    %59 = vector.shape_cast %56 : vector<2x2xf32> to vector<1x2x2xf32>
    tpu.vector_store %arg4[%c0_40, %c0_41, %c0_42], %59 {strides = array<i32>} : memref<1x2x2xf32, #tpu.memory_space<vmem>>, vector<1x2x2xf32>,
    %c0_43 = arith.constant 0 : index
    %c0_44 = arith.constant 0 : index
    %c0_45 = arith.constant 0 : index
    %60 = vector.load %arg5[%c0_43, %c0_44, %c0_45] : memref<1x2x1xf32, #tpu.memory_space<vmem>>, vector<1x2x1xf32>
    %61 = vector.shape_cast %60 : vector<1x2x1xf32> to vector<2x1xf32>
    %62 = vector.shape_cast %36 : vector<2x1xf32> to vector<1x2x1xf32>
    tpu.vector_store %arg5[%c0_43, %c0_44, %c0_45], %62 {strides = array<i32>} : memref<1x2x1xf32, #tpu.memory_space<vmem>>, vector<1x2x1xf32>,
    return
  }
  func.func @transform_0(%arg0: i32, %arg1: i32) -> (i32, i32) {
    %c1_i32 = arith.constant 1 : i32
    %0 = arith.muli %arg0, %c1_i32 : i32
    %1 = arith.addi %0, %arg1 : i32
    %c0_i32 = arith.constant 0 : i32
    %c0_i32_0 = arith.constant 0 : i32
    return %c0_i32, %1 : i32, i32
  }
  func.func @transform_1(%arg0: i32, %arg1: i32) -> (i32, i32) {
    %c1_i32 = arith.constant 1 : i32
    %0 = arith.muli %arg0, %c1_i32 : i32
    %1 = arith.addi %0, %arg1 : i32
    %c0_i32 = arith.constant 0 : i32
    %c0_i32_0 = arith.constant 0 : i32
    return %c0_i32, %1 : i32, i32
  }
  func.func @transform_2(%arg0: i32, %arg1: i32) -> (i32, i32, i32) {
    %c0_i32 = arith.constant 0 : i32
    %c0_i32_0 = arith.constant 0 : i32
    %c0_i32_1 = arith.constant 0 : i32
    return %arg0, %c0_i32, %c0_i32_0 : i32, i32, i32
  }
  func.func @transform_3(%arg0: i32, %arg1: i32) -> (i32, i32, i32) {
    %c0_i32 = arith.constant 0 : i32
    %c0_i32_0 = arith.constant 0 : i32
    %c0_i32_1 = arith.constant 0 : i32
    return %arg0, %c0_i32, %c0_i32_0 : i32, i32, i32
  }
  func.func @transform_4(%arg0: i32, %arg1: i32) -> (i32, i32, i32) {
    %c0_i32 = arith.constant 0 : i32
    %c0_i32_0 = arith.constant 0 : i32
    %c0_i32_1 = arith.constant 0 : i32
    return %arg0, %c0_i32, %c0_i32_0 : i32, i32, i32
  }
  func.func @transform_5(%arg0: i32, %arg1: i32) -> (i32, i32, i32) {
    %c0_i32 = arith.constant 0 : i32
    %c0_i32_0 = arith.constant 0 : i32
    %c0_i32_1 = arith.constant 0 : i32
    return %arg0, %c0_i32, %c0_i32_0 : i32, i32, i32
  }
  func.func @transform_6(%arg0: i32, %arg1: i32) -> (i32, i32, i32) {
    %c0_i32 = arith.constant 0 : i32
    %c0_i32_0 = arith.constant 0 : i32
    %c0_i32_1 = arith.constant 0 : i32
    return %arg0, %c0_i32, %c0_i32_0 : i32, i32, i32
  }
  func.func @transform_7(%arg0: i32, %arg1: i32) -> (i32, i32, i32) {
    %c0_i32 = arith.constant 0 : i32
    %c0_i32_0 = arith.constant 0 : i32
    %c0_i32_1 = arith.constant 0 : i32
    return %arg0, %c0_i32, %c0_i32_0 : i32, i32, i32
  }
}

module attributes {stable_mosaic.version = 11 : i64} {
  func.func @kernel(%arg0: i32, %arg1: i32, %arg2: memref<2x512xf32, #tpu.memory_space<vmem>>, %arg3: memref<2x512xf32, #tpu.memory_space<vmem>>, %arg4: memref<1x2x2xf32, #tpu.memory_space<vmem>>, %arg5: memref<1x2x1xf32, #tpu.memory_space<vmem>>, %arg6: memref<1x2x1xf32, #tpu.memory_space<vmem>>, %arg7: memref<1x2x1xf32, #tpu.memory_space<vmem>>, %arg8: memref<1x2x1xf32, #tpu.memory_space<vmem>>, %arg9: memref<1x2x1xf32, #tpu.memory_space<vmem>>) attributes {dimension_semantics = [#tpu.dimension_semantics<parallel>, #tpu.dimension_semantics<arbitrary>], iteration_bounds = array<i64: 1, 1>, scalar_prefetch = 0 : i64, scratch_operands = 0 : i64, tpu.core_type = #tpu.core_type<tc>, window_params = [{transform_indices = @transform_0, window_bounds = array<i64: 2, 512>}, {transform_indices = @transform_1, window_bounds = array<i64: 2, 512>}, {transform_indices = @transform_2, window_bounds = array<i64: 1, 2, 2>}, {transform_indices = @transform_3, window_bounds = array<i64: 1, 2, 1>}, {transform_indices = @transform_4, window_bounds = array<i64: 1, 2, 1>}, {transform_indices = @transform_5, window_bounds = array<i64: 1, 2, 1>}, {transform_indices = @transform_6, window_bounds = array<i64: 1, 2, 1>}, {transform_indices = @transform_7, window_bounds = array<i64: 1, 2, 1>}]} {
    %c0_i32 = arith.constant 0 : i32
    %0 = arith.cmpi eq, %arg1, %c0_i32 : i32
    %1 = arith.extui %0 : i1 to i32
    %c0_i32_0 = arith.constant 0 : i32
    %2 = arith.cmpi ne, %1, %c0_i32_0 : i32
    scf.if %2 {
      %cst_46 = arith.constant 0.000000e+00 : f32
      %63 = vector.broadcast %cst_46 : f32 to vector<2x2xf32>
      %c0_47 = arith.constant 0 : index
      %c0_48 = arith.constant 0 : index
      %c0_49 = arith.constant 0 : index
      %64 = vector.load %arg4[%c0_47, %c0_48, %c0_49] : memref<1x2x2xf32, #tpu.memory_space<vmem>>, vector<1x2x2xf32>
      %65 = vector.shape_cast %64 : vector<1x2x2xf32> to vector<2x2xf32>
      %66 = vector.shape_cast %63 : vector<2x2xf32> to vector<1x2x2xf32>
      tpu.vector_store %arg4[%c0_47, %c0_48, %c0_49], %66 {strides = array<i32>} : memref<1x2x2xf32, #tpu.memory_space<vmem>>, vector<1x2x2xf32>,
      %cst_50 = arith.constant 0xFF800000 : f32
      %67 = vector.broadcast %cst_50 : f32 to vector<2x1xf32>
      %c0_51 = arith.constant 0 : index
      %c0_52 = arith.constant 0 : index
      %c0_53 = arith.constant 0 : index
      %68 = vector.load %arg5[%c0_51, %c0_52, %c0_53] : memref<1x2x1xf32, #tpu.memory_space<vmem>>, vector<1x2x1xf32>
      %69 = vector.shape_cast %68 : vector<1x2x1xf32> to vector<2x1xf32>
      %70 = vector.shape_cast %67 : vector<2x1xf32> to vector<1x2x1xf32>
      tpu.vector_store %arg5[%c0_51, %c0_52, %c0_53], %70 {strides = array<i32>} : memref<1x2x1xf32, #tpu.memory_space<vmem>>, vector<1x2x1xf32>,
      %cst_54 = arith.constant 0.000000e+00 : f32
      %71 = vector.broadcast %cst_54 : f32 to vector<2x1xf32>
      %c0_55 = arith.constant 0 : index
      %c0_56 = arith.constant 0 : index
      %c0_57 = arith.constant 0 : index
      %72 = vector.load %arg6[%c0_55, %c0_56, %c0_57] : memref<1x2x1xf32, #tpu.memory_space<vmem>>, vector<1x2x1xf32>
      %73 = vector.shape_cast %72 : vector<1x2x1xf32> to vector<2x1xf32>
      %74 = vector.shape_cast %71 : vector<2x1xf32> to vector<1x2x1xf32>
      tpu.vector_store %arg6[%c0_55, %c0_56, %c0_57], %74 {strides = array<i32>} : memref<1x2x1xf32, #tpu.memory_space<vmem>>, vector<1x2x1xf32>,
      %cst_58 = arith.constant 0.000000e+00 : f32
      %75 = vector.broadcast %cst_58 : f32 to vector<2x1xf32>
      %c0_59 = arith.constant 0 : index
      %c0_60 = arith.constant 0 : index
      %c0_61 = arith.constant 0 : index
      %76 = vector.load %arg7[%c0_59, %c0_60, %c0_61] : memref<1x2x1xf32, #tpu.memory_space<vmem>>, vector<1x2x1xf32>
      %77 = vector.shape_cast %76 : vector<1x2x1xf32> to vector<2x1xf32>
      %78 = vector.shape_cast %75 : vector<2x1xf32> to vector<1x2x1xf32>
      tpu.vector_store %arg7[%c0_59, %c0_60, %c0_61], %78 {strides = array<i32>} : memref<1x2x1xf32, #tpu.memory_space<vmem>>, vector<1x2x1xf32>,
      %cst_62 = arith.constant 0.000000e+00 : f32
      %79 = vector.broadcast %cst_62 : f32 to vector<2x1xf32>
      %c0_63 = arith.constant 0 : index
      %c0_64 = arith.constant 0 : index
      %c0_65 = arith.constant 0 : index
      %80 = vector.load %arg8[%c0_63, %c0_64, %c0_65] : memref<1x2x1xf32, #tpu.memory_space<vmem>>, vector<1x2x1xf32>
      %81 = vector.shape_cast %80 : vector<1x2x1xf32> to vector<2x1xf32>
      %82 = vector.shape_cast %79 : vector<2x1xf32> to vector<1x2x1xf32>
      tpu.vector_store %arg8[%c0_63, %c0_64, %c0_65], %82 {strides = array<i32>} : memref<1x2x1xf32, #tpu.memory_space<vmem>>, vector<1x2x1xf32>,
      %cst_66 = arith.constant 0.000000e+00 : f32
      %83 = vector.broadcast %cst_66 : f32 to vector<2x1xf32>
      %c0_67 = arith.constant 0 : index
      %c0_68 = arith.constant 0 : index
      %c0_69 = arith.constant 0 : index
      %84 = vector.load %arg9[%c0_67, %c0_68, %c0_69] : memref<1x2x1xf32, #tpu.memory_space<vmem>>, vector<1x2x1xf32>
      %85 = vector.shape_cast %84 : vector<1x2x1xf32> to vector<2x1xf32>
      %86 = vector.shape_cast %83 : vector<2x1xf32> to vector<1x2x1xf32>
      tpu.vector_store %arg9[%c0_67, %c0_68, %c0_69], %86 {strides = array<i32>} : memref<1x2x1xf32, #tpu.memory_space<vmem>>, vector<1x2x1xf32>,
    } else {
    }
    %c0 = arith.constant 0 : index
    %c0_1 = arith.constant 0 : index
    %3 = vector.load %arg2[%c0, %c0_1] : memref<2x512xf32, #tpu.memory_space<vmem>>, vector<2x512xf32>
    %c0_2 = arith.constant 0 : index
    %c0_3 = arith.constant 0 : index
    %4 = vector.load %arg3[%c0_2, %c0_3] : memref<2x512xf32, #tpu.memory_space<vmem>>, vector<2x512xf32>
    %c0_4 = arith.constant 0 : index
    %c0_5 = arith.constant 0 : index
    %c0_6 = arith.constant 0 : index
    %5 = vector.load %arg7[%c0_4, %c0_5, %c0_6] : memref<1x2x1xf32, #tpu.memory_space<vmem>>, vector<1x2x1xf32>
    %6 = vector.shape_cast %5 : vector<1x2x1xf32> to vector<2x1xf32>
    %7 = arith.mulf %4, %3 : vector<2x512xf32>
    %cst = arith.constant dense<0.000000e+00> : vector<2xf32>
    %8 = vector.multi_reduction <add>, %7, %cst [1] : vector<2x512xf32> to vector<2xf32>
    %9 = vector.shape_cast %8 : vector<2xf32> to vector<2x1xf32>
    %10 = arith.addf %6, %9 : vector<2x1xf32>
    %c0_7 = arith.constant 0 : index
    %c0_8 = arith.constant 0 : index
    %c0_9 = arith.constant 0 : index
    %11 = vector.load %arg7[%c0_7, %c0_8, %c0_9] : memref<1x2x1xf32, #tpu.memory_space<vmem>>, vector<1x2x1xf32>
    %12 = vector.shape_cast %11 : vector<1x2x1xf32> to vector<2x1xf32>
    %13 = vector.shape_cast %10 : vector<2x1xf32> to vector<1x2x1xf32>
    tpu.vector_store %arg7[%c0_7, %c0_8, %c0_9], %13 {strides = array<i32>} : memref<1x2x1xf32, #tpu.memory_space<vmem>>, vector<1x2x1xf32>,
    %c0_10 = arith.constant 0 : index
    %c0_11 = arith.constant 0 : index
    %c0_12 = arith.constant 0 : index
    %14 = vector.load %arg8[%c0_10, %c0_11, %c0_12] : memref<1x2x1xf32, #tpu.memory_space<vmem>>, vector<1x2x1xf32>
    %15 = vector.shape_cast %14 : vector<1x2x1xf32> to vector<2x1xf32>
    %16 = arith.mulf %4, %4 : vector<2x512xf32>
    %cst_13 = arith.constant dense<0.000000e+00> : vector<2xf32>
    %17 = vector.multi_reduction <add>, %16, %cst_13 [1] : vector<2x512xf32> to vector<2xf32>
    %18 = vector.shape_cast %17 : vector<2xf32> to vector<2x1xf32>
    %19 = arith.addf %15, %18 : vector<2x1xf32>
    %c0_14 = arith.constant 0 : index
    %c0_15 = arith.constant 0 : index
    %c0_16 = arith.constant 0 : index
    %20 = vector.load %arg8[%c0_14, %c0_15, %c0_16] : memref<1x2x1xf32, #tpu.memory_space<vmem>>, vector<1x2x1xf32>
    %21 = vector.shape_cast %20 : vector<1x2x1xf32> to vector<2x1xf32>
    %22 = vector.shape_cast %19 : vector<2x1xf32> to vector<1x2x1xf32>
    tpu.vector_store %arg8[%c0_14, %c0_15, %c0_16], %22 {strides = array<i32>} : memref<1x2x1xf32, #tpu.memory_space<vmem>>, vector<1x2x1xf32>,
    %c0_17 = arith.constant 0 : index
    %c0_18 = arith.constant 0 : index
    %c0_19 = arith.constant 0 : index
    %23 = vector.load %arg9[%c0_17, %c0_18, %c0_19] : memref<1x2x1xf32, #tpu.memory_space<vmem>>, vector<1x2x1xf32>
    %24 = vector.shape_cast %23 : vector<1x2x1xf32> to vector<2x1xf32>
    %25 = arith.mulf %3, %3 : vector<2x512xf32>
    %cst_20 = arith.constant dense<0.000000e+00> : vector<2xf32>
    %26 = vector.multi_reduction <add>, %25, %cst_20 [1] : vector<2x512xf32> to vector<2xf32>
    %27 = vector.shape_cast %26 : vector<2xf32> to vector<2x1xf32>
    %28 = arith.addf %24, %27 : vector<2x1xf32>
    %c0_21 = arith.constant 0 : index
    %c0_22 = arith.constant 0 : index
    %c0_23 = arith.constant 0 : index
    %29 = vector.load %arg9[%c0_21, %c0_22, %c0_23] : memref<1x2x1xf32, #tpu.memory_space<vmem>>, vector<1x2x1xf32>
    %30 = vector.shape_cast %29 : vector<1x2x1xf32> to vector<2x1xf32>
    %31 = vector.shape_cast %28 : vector<2x1xf32> to vector<1x2x1xf32>
    tpu.vector_store %arg9[%c0_21, %c0_22, %c0_23], %31 {strides = array<i32>} : memref<1x2x1xf32, #tpu.memory_space<vmem>>, vector<1x2x1xf32>,
    %c0_24 = arith.constant 0 : index
    %c0_25 = arith.constant 0 : index
    %c0_26 = arith.constant 0 : index
    %32 = vector.load %arg5[%c0_24, %c0_25, %c0_26] : memref<1x2x1xf32, #tpu.memory_space<vmem>>, vector<1x2x1xf32>
    %33 = vector.shape_cast %32 : vector<1x2x1xf32> to vector<2x1xf32>
    %cst_27 = arith.constant dense<0xFF800000> : vector<2xf32>
    %34 = vector.multi_reduction <maximumf>, %3, %cst_27 [1] : vector<2x512xf32> to vector<2xf32>
    %35 = vector.shape_cast %34 : vector<2xf32> to vector<2x1xf32>
    %36 = arith.maximumf %33, %35 : vector<2x1xf32>
    %37 = arith.subf %33, %36 : vector<2x1xf32>
    %38 = math.exp %37 : vector<2x1xf32>
    %39 = vector.broadcast %36 : vector<2x1xf32> to vector<2x512xf32>
    %40 = arith.subf %3, %39 : vector<2x512xf32>
    %41 = math.exp %40 : vector<2x512xf32>
    %c0_28 = arith.constant 0 : index
    %c0_29 = arith.constant 0 : index
    %c0_30 = arith.constant 0 : index
    %42 = vector.load %arg6[%c0_28, %c0_29, %c0_30] : memref<1x2x1xf32, #tpu.memory_space<vmem>>, vector<1x2x1xf32>
    %43 = vector.shape_cast %42 : vector<1x2x1xf32> to vector<2x1xf32>
    %44 = arith.mulf %43, %38 : vector<2x1xf32>
    %cst_31 = arith.constant dense<0.000000e+00> : vector<2xf32>
    %45 = vector.multi_reduction <add>, %41, %cst_31 [1] : vector<2x512xf32> to vector<2xf32>
    %46 = vector.shape_cast %45 : vector<2xf32> to vector<2x1xf32>
    %47 = arith.addf %44, %46 : vector<2x1xf32>
    %c0_32 = arith.constant 0 : index
    %c0_33 = arith.constant 0 : index
    %c0_34 = arith.constant 0 : index
    %48 = vector.load %arg6[%c0_32, %c0_33, %c0_34] : memref<1x2x1xf32, #tpu.memory_space<vmem>>, vector<1x2x1xf32>
    %49 = vector.shape_cast %48 : vector<1x2x1xf32> to vector<2x1xf32>
    %50 = vector.shape_cast %47 : vector<2x1xf32> to vector<1x2x1xf32>
    tpu.vector_store %arg6[%c0_32, %c0_33, %c0_34], %50 {strides = array<i32>} : memref<1x2x1xf32, #tpu.memory_space<vmem>>, vector<1x2x1xf32>,
    %cst_35 = arith.constant dense<0.000000e+00> : vector<2x2xf32>
    %51 = tpu.matmul %38, %38, %cst_35 {dimension_numbers = #tpu.dot_dimension_numbers<[1], [1], [0], [0], [0, 0, 1, 0], [], []>} : vector<2x1xf32>, vector<2x1xf32>, vector<2x2xf32> -> vector<2x2xf32>
    %cst_36 = arith.constant dense<0.000000e+00> : vector<2x2xf32>
    %52 = tpu.matmul %41, %41, %cst_36 {dimension_numbers = #tpu.dot_dimension_numbers<[1], [1], [0], [0], [0, 0, 1, 0], [], []>} : vector<2x512xf32>, vector<2x512xf32>, vector<2x2xf32> -> vector<2x2xf32>
    %c0_37 = arith.constant 0 : index
    %c0_38 = arith.constant 0 : index
    %c0_39 = arith.constant 0 : index
    %53 = vector.load %arg4[%c0_37, %c0_38, %c0_39] : memref<1x2x2xf32, #tpu.memory_space<vmem>>, vector<1x2x2xf32>
    %54 = vector.shape_cast %53 : vector<1x2x2xf32> to vector<2x2xf32>
    %55 = arith.mulf %54, %51 : vector<2x2xf32>
    %56 = arith.addf %55, %52 : vector<2x2xf32>
    %c0_40 = arith.constant 0 : index
    %c0_41 = arith.constant 0 : index
    %c0_42 = arith.constant 0 : index
    %57 = vector.load %arg4[%c0_40, %c0_41, %c0_42] : memref<1x2x2xf32, #tpu.memory_space<vmem>>, vector<1x2x2xf32>
    %58 = vector.shape_cast %57 : vector<1x2x2xf32> to vector<2x2xf32>
    %59 = vector.shape_cast %56 : vector<2x2xf32> to vector<1x2x2xf32>
    tpu.vector_store %arg4[%c0_40, %c0_41, %c0_42], %59 {strides = array<i32>} : memref<1x2x2xf32, #tpu.memory_space<vmem>>, vector<1x2x2xf32>,
    %c0_43 = arith.constant 0 : index
    %c0_44 = arith.constant 0 : index
    %c0_45 = arith.constant 0 : index
    %60 = vector.load %arg5[%c0_43, %c0_44, %c0_45] : memref<1x2x1xf32, #tpu.memory_space<vmem>>, vector<1x2x1xf32>
    %61 = vector.shape_cast %60 : vector<1x2x1xf32> to vector<2x1xf32>
    %62 = vector.shape_cast %36 : vector<2x1xf32> to vector<1x2x1xf32>
    tpu.vector_store %arg5[%c0_43, %c0_44, %c0_45], %62 {strides = array<i32>} : memref<1x2x1xf32, #tpu.memory_space<vmem>>, vector<1x2x1xf32>,
    return
  }
  func.func @transform_0(%arg0: i32, %arg1: i32) -> (i32, i32) {
    %c1_i32 = arith.constant 1 : i32
    %0 = arith.muli %arg0, %c1_i32 : i32
    %1 = arith.addi %0, %arg1 : i32
    %c0_i32 = arith.constant 0 : i32
    %c0_i32_0 = arith.constant 0 : i32
    return %c0_i32, %1 : i32, i32
  }
  func.func @transform_1(%arg0: i32, %arg1: i32) -> (i32, i32) {
    %c1_i32 = arith.constant 1 : i32
    %0 = arith.muli %arg0, %c1_i32 : i32
    %1 = arith.addi %0, %arg1 : i32
    %c0_i32 = arith.constant 0 : i32
    %c0_i32_0 = arith.constant 0 : i32
    return %c0_i32, %1 : i32, i32
  }
  func.func @transform_2(%arg0: i32, %arg1: i32) -> (i32, i32, i32) {
    %c0_i32 = arith.constant 0 : i32
    %c0_i32_0 = arith.constant 0 : i32
    %c0_i32_1 = arith.constant 0 : i32
    return %arg0, %c0_i32, %c0_i32_0 : i32, i32, i32
  }
  func.func @transform_3(%arg0: i32, %arg1: i32) -> (i32, i32, i32) {
    %c0_i32 = arith.constant 0 : i32
    %c0_i32_0 = arith.constant 0 : i32
    %c0_i32_1 = arith.constant 0 : i32
    return %arg0, %c0_i32, %c0_i32_0 : i32, i32, i32
  }
  func.func @transform_4(%arg0: i32, %arg1: i32) -> (i32, i32, i32) {
    %c0_i32 = arith.constant 0 : i32
    %c0_i32_0 = arith.constant 0 : i32
    %c0_i32_1 = arith.constant 0 : i32
    return %arg0, %c0_i32, %c0_i32_0 : i32, i32, i32
  }
  func.func @transform_5(%arg0: i32, %arg1: i32) -> (i32, i32, i32) {
    %c0_i32 = arith.constant 0 : i32
    %c0_i32_0 = arith.constant 0 : i32
    %c0_i32_1 = arith.constant 0 : i32
    return %arg0, %c0_i32, %c0_i32_0 : i32, i32, i32
  }
  func.func @transform_6(%arg0: i32, %arg1: i32) -> (i32, i32, i32) {
    %c0_i32 = arith.constant 0 : i32
    %c0_i32_0 = arith.constant 0 : i32
    %c0_i32_1 = arith.constant 0 : i32
    return %arg0, %c0_i32, %c0_i32_0 : i32, i32, i32
  }
  func.func @transform_7(%arg0: i32, %arg1: i32) -> (i32, i32, i32) {
    %c0_i32 = arith.constant 0 : i32
    %c0_i32_0 = arith.constant 0 : i32
    %c0_i32_1 = arith.constant 0 : i32
    return %arg0, %c0_i32, %c0_i32_0 : i32, i32, i32
  }
}

module attributes {stable_mosaic.version = 11 : i64} {
  func.func @kernel(%arg0: i32, %arg1: i32, %arg2: memref<2x1024xf32, #tpu.memory_space<vmem>>, %arg3: memref<2x1024xf32, #tpu.memory_space<vmem>>, %arg4: memref<1x2x2xf32, #tpu.memory_space<vmem>>, %arg5: memref<1x2x1xf32, #tpu.memory_space<vmem>>, %arg6: memref<1x2x1xf32, #tpu.memory_space<vmem>>, %arg7: memref<1x2x1xf32, #tpu.memory_space<vmem>>, %arg8: memref<1x2x1xf32, #tpu.memory_space<vmem>>, %arg9: memref<1x2x1xf32, #tpu.memory_space<vmem>>) attributes {dimension_semantics = [#tpu.dimension_semantics<parallel>, #tpu.dimension_semantics<arbitrary>], iteration_bounds = array<i64: 1, 1>, scalar_prefetch = 0 : i64, scratch_operands = 0 : i64, tpu.core_type = #tpu.core_type<tc>, window_params = [{transform_indices = @transform_0, window_bounds = array<i64: 2, 1024>}, {transform_indices = @transform_1, window_bounds = array<i64: 2, 1024>}, {transform_indices = @transform_2, window_bounds = array<i64: 1, 2, 2>}, {transform_indices = @transform_3, window_bounds = array<i64: 1, 2, 1>}, {transform_indices = @transform_4, window_bounds = array<i64: 1, 2, 1>}, {transform_indices = @transform_5, window_bounds = array<i64: 1, 2, 1>}, {transform_indices = @transform_6, window_bounds = array<i64: 1, 2, 1>}, {transform_indices = @transform_7, window_bounds = array<i64: 1, 2, 1>}]} {
    %c0_i32 = arith.constant 0 : i32
    %0 = arith.cmpi eq, %arg1, %c0_i32 : i32
    %1 = arith.extui %0 : i1 to i32
    %c0_i32_0 = arith.constant 0 : i32
    %2 = arith.cmpi ne, %1, %c0_i32_0 : i32
    scf.if %2 {
      %cst_46 = arith.constant 0.000000e+00 : f32
      %63 = vector.broadcast %cst_46 : f32 to vector<2x2xf32>
      %c0_47 = arith.constant 0 : index
      %c0_48 = arith.constant 0 : index
      %c0_49 = arith.constant 0 : index
      %64 = vector.load %arg4[%c0_47, %c0_48, %c0_49] : memref<1x2x2xf32, #tpu.memory_space<vmem>>, vector<1x2x2xf32>
      %65 = vector.shape_cast %64 : vector<1x2x2xf32> to vector<2x2xf32>
      %66 = vector.shape_cast %63 : vector<2x2xf32> to vector<1x2x2xf32>
      tpu.vector_store %arg4[%c0_47, %c0_48, %c0_49], %66 {strides = array<i32>} : memref<1x2x2xf32, #tpu.memory_space<vmem>>, vector<1x2x2xf32>,
      %cst_50 = arith.constant 0xFF800000 : f32
      %67 = vector.broadcast %cst_50 : f32 to vector<2x1xf32>
      %c0_51 = arith.constant 0 : index
      %c0_52 = arith.constant 0 : index
      %c0_53 = arith.constant 0 : index
      %68 = vector.load %arg5[%c0_51, %c0_52, %c0_53] : memref<1x2x1xf32, #tpu.memory_space<vmem>>, vector<1x2x1xf32>
      %69 = vector.shape_cast %68 : vector<1x2x1xf32> to vector<2x1xf32>
      %70 = vector.shape_cast %67 : vector<2x1xf32> to vector<1x2x1xf32>
      tpu.vector_store %arg5[%c0_51, %c0_52, %c0_53], %70 {strides = array<i32>} : memref<1x2x1xf32, #tpu.memory_space<vmem>>, vector<1x2x1xf32>,
      %cst_54 = arith.constant 0.000000e+00 : f32
      %71 = vector.broadcast %cst_54 : f32 to vector<2x1xf32>
      %c0_55 = arith.constant 0 : index
      %c0_56 = arith.constant 0 : index
      %c0_57 = arith.constant 0 : index
      %72 = vector.load %arg6[%c0_55, %c0_56, %c0_57] : memref<1x2x1xf32, #tpu.memory_space<vmem>>, vector<1x2x1xf32>
      %73 = vector.shape_cast %72 : vector<1x2x1xf32> to vector<2x1xf32>
      %74 = vector.shape_cast %71 : vector<2x1xf32> to vector<1x2x1xf32>
      tpu.vector_store %arg6[%c0_55, %c0_56, %c0_57], %74 {strides = array<i32>} : memref<1x2x1xf32, #tpu.memory_space<vmem>>, vector<1x2x1xf32>,
      %cst_58 = arith.constant 0.000000e+00 : f32
      %75 = vector.broadcast %cst_58 : f32 to vector<2x1xf32>
      %c0_59 = arith.constant 0 : index
      %c0_60 = arith.constant 0 : index
      %c0_61 = arith.constant 0 : index
      %76 = vector.load %arg7[%c0_59, %c0_60, %c0_61] : memref<1x2x1xf32, #tpu.memory_space<vmem>>, vector<1x2x1xf32>
      %77 = vector.shape_cast %76 : vector<1x2x1xf32> to vector<2x1xf32>
      %78 = vector.shape_cast %75 : vector<2x1xf32> to vector<1x2x1xf32>
      tpu.vector_store %arg7[%c0_59, %c0_60, %c0_61], %78 {strides = array<i32>} : memref<1x2x1xf32, #tpu.memory_space<vmem>>, vector<1x2x1xf32>,
      %cst_62 = arith.constant 0.000000e+00 : f32
      %79 = vector.broadcast %cst_62 : f32 to vector<2x1xf32>
      %c0_63 = arith.constant 0 : index
      %c0_64 = arith.constant 0 : index
      %c0_65 = arith.constant 0 : index
      %80 = vector.load %arg8[%c0_63, %c0_64, %c0_65] : memref<1x2x1xf32, #tpu.memory_space<vmem>>, vector<1x2x1xf32>
      %81 = vector.shape_cast %80 : vector<1x2x1xf32> to vector<2x1xf32>
      %82 = vector.shape_cast %79 : vector<2x1xf32> to vector<1x2x1xf32>
      tpu.vector_store %arg8[%c0_63, %c0_64, %c0_65], %82 {strides = array<i32>} : memref<1x2x1xf32, #tpu.memory_space<vmem>>, vector<1x2x1xf32>,
      %cst_66 = arith.constant 0.000000e+00 : f32
      %83 = vector.broadcast %cst_66 : f32 to vector<2x1xf32>
      %c0_67 = arith.constant 0 : index
      %c0_68 = arith.constant 0 : index
      %c0_69 = arith.constant 0 : index
      %84 = vector.load %arg9[%c0_67, %c0_68, %c0_69] : memref<1x2x1xf32, #tpu.memory_space<vmem>>, vector<1x2x1xf32>
      %85 = vector.shape_cast %84 : vector<1x2x1xf32> to vector<2x1xf32>
      %86 = vector.shape_cast %83 : vector<2x1xf32> to vector<1x2x1xf32>
      tpu.vector_store %arg9[%c0_67, %c0_68, %c0_69], %86 {strides = array<i32>} : memref<1x2x1xf32, #tpu.memory_space<vmem>>, vector<1x2x1xf32>,
    } else {
    }
    %c0 = arith.constant 0 : index
    %c0_1 = arith.constant 0 : index
    %3 = vector.load %arg2[%c0, %c0_1] : memref<2x1024xf32, #tpu.memory_space<vmem>>, vector<2x1024xf32>
    %c0_2 = arith.constant 0 : index
    %c0_3 = arith.constant 0 : index
    %4 = vector.load %arg3[%c0_2, %c0_3] : memref<2x1024xf32, #tpu.memory_space<vmem>>, vector<2x1024xf32>
    %c0_4 = arith.constant 0 : index
    %c0_5 = arith.constant 0 : index
    %c0_6 = arith.constant 0 : index
    %5 = vector.load %arg7[%c0_4, %c0_5, %c0_6] : memref<1x2x1xf32, #tpu.memory_space<vmem>>, vector<1x2x1xf32>
    %6 = vector.shape_cast %5 : vector<1x2x1xf32> to vector<2x1xf32>
    %7 = arith.mulf %4, %3 : vector<2x1024xf32>
    %cst = arith.constant dense<0.000000e+00> : vector<2xf32>
    %8 = vector.multi_reduction <add>, %7, %cst [1] : vector<2x1024xf32> to vector<2xf32>
    %9 = vector.shape_cast %8 : vector<2xf32> to vector<2x1xf32>
    %10 = arith.addf %6, %9 : vector<2x1xf32>
    %c0_7 = arith.constant 0 : index
    %c0_8 = arith.constant 0 : index
    %c0_9 = arith.constant 0 : index
    %11 = vector.load %arg7[%c0_7, %c0_8, %c0_9] : memref<1x2x1xf32, #tpu.memory_space<vmem>>, vector<1x2x1xf32>
    %12 = vector.shape_cast %11 : vector<1x2x1xf32> to vector<2x1xf32>
    %13 = vector.shape_cast %10 : vector<2x1xf32> to vector<1x2x1xf32>
    tpu.vector_store %arg7[%c0_7, %c0_8, %c0_9], %13 {strides = array<i32>} : memref<1x2x1xf32, #tpu.memory_space<vmem>>, vector<1x2x1xf32>,
    %c0_10 = arith.constant 0 : index
    %c0_11 = arith.constant 0 : index
    %c0_12 = arith.constant 0 : index
    %14 = vector.load %arg8[%c0_10, %c0_11, %c0_12] : memref<1x2x1xf32, #tpu.memory_space<vmem>>, vector<1x2x1xf32>
    %15 = vector.shape_cast %14 : vector<1x2x1xf32> to vector<2x1xf32>
    %16 = arith.mulf %4, %4 : vector<2x1024xf32>
    %cst_13 = arith.constant dense<0.000000e+00> : vector<2xf32>
    %17 = vector.multi_reduction <add>, %16, %cst_13 [1] : vector<2x1024xf32> to vector<2xf32>
    %18 = vector.shape_cast %17 : vector<2xf32> to vector<2x1xf32>
    %19 = arith.addf %15, %18 : vector<2x1xf32>
    %c0_14 = arith.constant 0 : index
    %c0_15 = arith.constant 0 : index
    %c0_16 = arith.constant 0 : index
    %20 = vector.load %arg8[%c0_14, %c0_15, %c0_16] : memref<1x2x1xf32, #tpu.memory_space<vmem>>, vector<1x2x1xf32>
    %21 = vector.shape_cast %20 : vector<1x2x1xf32> to vector<2x1xf32>
    %22 = vector.shape_cast %19 : vector<2x1xf32> to vector<1x2x1xf32>
    tpu.vector_store %arg8[%c0_14, %c0_15, %c0_16], %22 {strides = array<i32>} : memref<1x2x1xf32, #tpu.memory_space<vmem>>, vector<1x2x1xf32>,
    %c0_17 = arith.constant 0 : index
    %c0_18 = arith.constant 0 : index
    %c0_19 = arith.constant 0 : index
    %23 = vector.load %arg9[%c0_17, %c0_18, %c0_19] : memref<1x2x1xf32, #tpu.memory_space<vmem>>, vector<1x2x1xf32>
    %24 = vector.shape_cast %23 : vector<1x2x1xf32> to vector<2x1xf32>
    %25 = arith.mulf %3, %3 : vector<2x1024xf32>
    %cst_20 = arith.constant dense<0.000000e+00> : vector<2xf32>
    %26 = vector.multi_reduction <add>, %25, %cst_20 [1] : vector<2x1024xf32> to vector<2xf32>
    %27 = vector.shape_cast %26 : vector<2xf32> to vector<2x1xf32>
    %28 = arith.addf %24, %27 : vector<2x1xf32>
    %c0_21 = arith.constant 0 : index
    %c0_22 = arith.constant 0 : index
    %c0_23 = arith.constant 0 : index
    %29 = vector.load %arg9[%c0_21, %c0_22, %c0_23] : memref<1x2x1xf32, #tpu.memory_space<vmem>>, vector<1x2x1xf32>
    %30 = vector.shape_cast %29 : vector<1x2x1xf32> to vector<2x1xf32>
    %31 = vector.shape_cast %28 : vector<2x1xf32> to vector<1x2x1xf32>
    tpu.vector_store %arg9[%c0_21, %c0_22, %c0_23], %31 {strides = array<i32>} : memref<1x2x1xf32, #tpu.memory_space<vmem>>, vector<1x2x1xf32>,
    %c0_24 = arith.constant 0 : index
    %c0_25 = arith.constant 0 : index
    %c0_26 = arith.constant 0 : index
    %32 = vector.load %arg5[%c0_24, %c0_25, %c0_26] : memref<1x2x1xf32, #tpu.memory_space<vmem>>, vector<1x2x1xf32>
    %33 = vector.shape_cast %32 : vector<1x2x1xf32> to vector<2x1xf32>
    %cst_27 = arith.constant dense<0xFF800000> : vector<2xf32>
    %34 = vector.multi_reduction <maximumf>, %3, %cst_27 [1] : vector<2x1024xf32> to vector<2xf32>
    %35 = vector.shape_cast %34 : vector<2xf32> to vector<2x1xf32>
    %36 = arith.maximumf %33, %35 : vector<2x1xf32>
    %37 = arith.subf %33, %36 : vector<2x1xf32>
    %38 = math.exp %37 : vector<2x1xf32>
    %39 = vector.broadcast %36 : vector<2x1xf32> to vector<2x1024xf32>
    %40 = arith.subf %3, %39 : vector<2x1024xf32>
    %41 = math.exp %40 : vector<2x1024xf32>
    %c0_28 = arith.constant 0 : index
    %c0_29 = arith.constant 0 : index
    %c0_30 = arith.constant 0 : index
    %42 = vector.load %arg6[%c0_28, %c0_29, %c0_30] : memref<1x2x1xf32, #tpu.memory_space<vmem>>, vector<1x2x1xf32>
    %43 = vector.shape_cast %42 : vector<1x2x1xf32> to vector<2x1xf32>
    %44 = arith.mulf %43, %38 : vector<2x1xf32>
    %cst_31 = arith.constant dense<0.000000e+00> : vector<2xf32>
    %45 = vector.multi_reduction <add>, %41, %cst_31 [1] : vector<2x1024xf32> to vector<2xf32>
    %46 = vector.shape_cast %45 : vector<2xf32> to vector<2x1xf32>
    %47 = arith.addf %44, %46 : vector<2x1xf32>
    %c0_32 = arith.constant 0 : index
    %c0_33 = arith.constant 0 : index
    %c0_34 = arith.constant 0 : index
    %48 = vector.load %arg6[%c0_32, %c0_33, %c0_34] : memref<1x2x1xf32, #tpu.memory_space<vmem>>, vector<1x2x1xf32>
    %49 = vector.shape_cast %48 : vector<1x2x1xf32> to vector<2x1xf32>
    %50 = vector.shape_cast %47 : vector<2x1xf32> to vector<1x2x1xf32>
    tpu.vector_store %arg6[%c0_32, %c0_33, %c0_34], %50 {strides = array<i32>} : memref<1x2x1xf32, #tpu.memory_space<vmem>>, vector<1x2x1xf32>,
    %cst_35 = arith.constant dense<0.000000e+00> : vector<2x2xf32>
    %51 = tpu.matmul %38, %38, %cst_35 {dimension_numbers = #tpu.dot_dimension_numbers<[1], [1], [0], [0], [0, 0, 1, 0], [], []>} : vector<2x1xf32>, vector<2x1xf32>, vector<2x2xf32> -> vector<2x2xf32>
    %cst_36 = arith.constant dense<0.000000e+00> : vector<2x2xf32>
    %52 = tpu.matmul %41, %41, %cst_36 {dimension_numbers = #tpu.dot_dimension_numbers<[1], [1], [0], [0], [0, 0, 1, 0], [], []>} : vector<2x1024xf32>, vector<2x1024xf32>, vector<2x2xf32> -> vector<2x2xf32>
    %c0_37 = arith.constant 0 : index
    %c0_38 = arith.constant 0 : index
    %c0_39 = arith.constant 0 : index
    %53 = vector.load %arg4[%c0_37, %c0_38, %c0_39] : memref<1x2x2xf32, #tpu.memory_space<vmem>>, vector<1x2x2xf32>
    %54 = vector.shape_cast %53 : vector<1x2x2xf32> to vector<2x2xf32>
    %55 = arith.mulf %54, %51 : vector<2x2xf32>
    %56 = arith.addf %55, %52 : vector<2x2xf32>
    %c0_40 = arith.constant 0 : index
    %c0_41 = arith.constant 0 : index
    %c0_42 = arith.constant 0 : index
    %57 = vector.load %arg4[%c0_40, %c0_41, %c0_42] : memref<1x2x2xf32, #tpu.memory_space<vmem>>, vector<1x2x2xf32>
    %58 = vector.shape_cast %57 : vector<1x2x2xf32> to vector<2x2xf32>
    %59 = vector.shape_cast %56 : vector<2x2xf32> to vector<1x2x2xf32>
    tpu.vector_store %arg4[%c0_40, %c0_41, %c0_42], %59 {strides = array<i32>} : memref<1x2x2xf32, #tpu.memory_space<vmem>>, vector<1x2x2xf32>,
    %c0_43 = arith.constant 0 : index
    %c0_44 = arith.constant 0 : index
    %c0_45 = arith.constant 0 : index
    %60 = vector.load %arg5[%c0_43, %c0_44, %c0_45] : memref<1x2x1xf32, #tpu.memory_space<vmem>>, vector<1x2x1xf32>
    %61 = vector.shape_cast %60 : vector<1x2x1xf32> to vector<2x1xf32>
    %62 = vector.shape_cast %36 : vector<2x1xf32> to vector<1x2x1xf32>
    tpu.vector_store %arg5[%c0_43, %c0_44, %c0_45], %62 {strides = array<i32>} : memref<1x2x1xf32, #tpu.memory_space<vmem>>, vector<1x2x1xf32>,
    return
  }
  func.func @transform_0(%arg0: i32, %arg1: i32) -> (i32, i32) {
    %c1_i32 = arith.constant 1 : i32
    %0 = arith.muli %arg0, %c1_i32 : i32
    %1 = arith.addi %0, %arg1 : i32
    %c0_i32 = arith.constant 0 : i32
    %c0_i32_0 = arith.constant 0 : i32
    return %c0_i32, %1 : i32, i32
  }
  func.func @transform_1(%arg0: i32, %arg1: i32) -> (i32, i32) {
    %c1_i32 = arith.constant 1 : i32
    %0 = arith.muli %arg0, %c1_i32 : i32
    %1 = arith.addi %0, %arg1 : i32
    %c0_i32 = arith.constant 0 : i32
    %c0_i32_0 = arith.constant 0 : i32
    return %c0_i32, %1 : i32, i32
  }
  func.func @transform_2(%arg0: i32, %arg1: i32) -> (i32, i32, i32) {
    %c0_i32 = arith.constant 0 : i32
    %c0_i32_0 = arith.constant 0 : i32
    %c0_i32_1 = arith.constant 0 : i32
    return %arg0, %c0_i32, %c0_i32_0 : i32, i32, i32
  }
  func.func @transform_3(%arg0: i32, %arg1: i32) -> (i32, i32, i32) {
    %c0_i32 = arith.constant 0 : i32
    %c0_i32_0 = arith.constant 0 : i32
    %c0_i32_1 = arith.constant 0 : i32
    return %arg0, %c0_i32, %c0_i32_0 : i32, i32, i32
  }
  func.func @transform_4(%arg0: i32, %arg1: i32) -> (i32, i32, i32) {
    %c0_i32 = arith.constant 0 : i32
    %c0_i32_0 = arith.constant 0 : i32
    %c0_i32_1 = arith.constant 0 : i32
    return %arg0, %c0_i32, %c0_i32_0 : i32, i32, i32
  }
  func.func @transform_5(%arg0: i32, %arg1: i32) -> (i32, i32, i32) {
    %c0_i32 = arith.constant 0 : i32
    %c0_i32_0 = arith.constant 0 : i32
    %c0_i32_1 = arith.constant 0 : i32
    return %arg0, %c0_i32, %c0_i32_0 : i32, i32, i32
  }
  func.func @transform_6(%arg0: i32, %arg1: i32) -> (i32, i32, i32) {
    %c0_i32 = arith.constant 0 : i32
    %c0_i32_0 = arith.constant 0 : i32
    %c0_i32_1 = arith.constant 0 : i32
    return %arg0, %c0_i32, %c0_i32_0 : i32, i32, i32
  }
  func.func @transform_7(%arg0: i32, %arg1: i32) -> (i32, i32, i32) {
    %c0_i32 = arith.constant 0 : i32
    %c0_i32_0 = arith.constant 0 : i32
    %c0_i32_1 = arith.constant 0 : i32
    return %arg0, %c0_i32, %c0_i32_0 : i32, i32, i32
  }
}

module attributes {stable_mosaic.version = 11 : i64} {
  func.func @_sinkhorn_kernel(%arg0: memref<80xf32, #tpu.memory_space<smem>>, %arg1: memref<3x2x2xf32, #tpu.memory_space<vmem>>, %arg2: memref<3x2x2xf32, #tpu.memory_space<vmem>>, %arg3: memref<1x1xf32, #tpu.memory_space<smem>>) attributes {dimension_semantics = [], scalar_prefetch = 0 : i64, scratch_operands = 0 : i64, tpu.core_type = #tpu.core_type<tc>} {
    %c0 = arith.constant 0 : index
    %c0_0 = arith.constant 0 : index
    %c0_1 = arith.constant 0 : index
    %0 = vector.load %arg1[%c0, %c0_0, %c0_1] : memref<3x2x2xf32, #tpu.memory_space<vmem>>, vector<3x2x2xf32>
    %c0_2 = arith.constant 0 : index
    %c0_3 = arith.constant 0 : index
    %c0_4 = arith.constant 0 : index
    %1 = vector.load %arg2[%c0_2, %c0_3, %c0_4] : memref<3x2x2xf32, #tpu.memory_space<vmem>>, vector<3x2x2xf32>
    %cst = arith.constant 0.000000e+00 : f32
    %2 = vector.broadcast %cst : f32 to vector<3x2x1xf32>
    %cst_5 = arith.constant 0.000000e+00 : f32
    %3 = vector.broadcast %cst_5 : f32 to vector<3x1x2xf32>
    %cst_6 = arith.constant 0.000000e+00 : f32
    %4 = vector.broadcast %cst_6 : f32 to vector<3x2x1xf32>
    %cst_7 = arith.constant 0.000000e+00 : f32
    %5 = vector.broadcast %cst_7 : f32 to vector<3x1x2xf32>
    %c0_i32 = arith.constant 0 : i32
    %c80_i32 = arith.constant 80 : i32
    %6 = arith.addi %c0_i32, %c80_i32 : i32
    %c1_i32 = arith.constant 1 : i32
    %7:4 = scf.for %arg4 = %c0_i32 to %6 step %c1_i32 iter_args(%arg5 = %2, %arg6 = %3, %arg7 = %4, %arg8 = %5) -> (vector<3x2x1xf32>, vector<3x1x2xf32>, vector<3x2x1xf32>, vector<3x1x2xf32>)  : i32 {
      %25 = arith.index_cast %arg4 : i32 to index
      %26 = memref.load %arg0[%25] : memref<80xf32, #tpu.memory_space<smem>>
      %cst_16 = arith.constant 1.000000e+00 : f32
      %27 = arith.divf %cst_16, %26 : f32
      %cst_17 = arith.constant 0.000000e+00 : f32
      %28 = arith.subf %cst_17, %26 : f32
      %29 = vector.broadcast %arg6 : vector<3x1x2xf32> to vector<3x2x2xf32>
      %30 = arith.subf %29, %0 : vector<3x2x2xf32>
      %31 = vector.broadcast %27 : f32 to vector<3x2x2xf32>
      %32 = arith.mulf %30, %31 : vector<3x2x2xf32>
      %cst_18 = arith.constant -0.693147182 : f32
      %33 = vector.broadcast %cst_18 : f32 to vector<3x2x2xf32>
      %34 = arith.addf %33, %32 : vector<3x2x2xf32>
      %cst_19 = arith.constant dense<0xFF800000> : vector<3x2xf32>
      %35 = vector.multi_reduction <maximumf>, %34, %cst_19 [2] : vector<3x2x2xf32> to vector<3x2xf32>
      %36 = vector.shape_cast %35 : vector<3x2xf32> to vector<3x2x1xf32>
      %37 = vector.broadcast %36 : vector<3x2x1xf32> to vector<3x2x2xf32>
      %38 = arith.subf %34, %37 : vector<3x2x2xf32>
      %39 = math.exp %38 : vector<3x2x2xf32>
      %cst_20 = arith.constant dense<0.000000e+00> : vector<3x2xf32>
      %40 = vector.multi_reduction <add>, %39, %cst_20 [2] : vector<3x2x2xf32> to vector<3x2xf32>
      %41 = vector.shape_cast %40 : vector<3x2xf32> to vector<3x2x1xf32>
      %42 = math.log %41 : vector<3x2x1xf32>
      %43 = arith.addf %36, %42 : vector<3x2x1xf32>
      %44 = vector.broadcast %28 : f32 to vector<3x2x1xf32>
      %45 = arith.mulf %44, %43 : vector<3x2x1xf32>
      %cst_21 = arith.constant 0.000000e+00 : f32
      %46 = arith.subf %cst_21, %26 : f32
      %47 = vector.broadcast %arg5 : vector<3x2x1xf32> to vector<3x2x2xf32>
      %48 = arith.subf %47, %0 : vector<3x2x2xf32>
      %49 = vector.broadcast %27 : f32 to vector<3x2x2xf32>
      %50 = arith.mulf %48, %49 : vector<3x2x2xf32>
      %cst_22 = arith.constant -0.693147182 : f32
      %51 = vector.broadcast %cst_22 : f32 to vector<3x2x2xf32>
      %52 = arith.addf %51, %50 : vector<3x2x2xf32>
      %cst_23 = arith.constant dense<0xFF800000> : vector<3x2xf32>
      %53 = vector.multi_reduction <maximumf>, %52, %cst_23 [1] : vector<3x2x2xf32> to vector<3x2xf32>
      %54 = vector.shape_cast %53 : vector<3x2xf32> to vector<3x1x2xf32>
      %55 = vector.broadcast %54 : vector<3x1x2xf32> to vector<3x2x2xf32>
      %56 = arith.subf %52, %55 : vector<3x2x2xf32>
      %57 = math.exp %56 : vector<3x2x2xf32>
      %cst_24 = arith.constant dense<0.000000e+00> : vector<3x2xf32>
      %58 = vector.multi_reduction <add>, %57, %cst_24 [1] : vector<3x2x2xf32> to vector<3x2xf32>
      %59 = vector.shape_cast %58 : vector<3x2xf32> to vector<3x1x2xf32>
      %60 = math.log %59 : vector<3x1x2xf32>
      %61 = arith.addf %54, %60 : vector<3x1x2xf32>
      %62 = vector.broadcast %46 : f32 to vector<3x1x2xf32>
      %63 = arith.mulf %62, %61 : vector<3x1x2xf32>
      %64 = arith.addf %arg5, %45 : vector<3x2x1xf32>
      %cst_25 = arith.constant 5.000000e-01 : f32
      %65 = vector.broadcast %cst_25 : f32 to vector<3x2x1xf32>
      %66 = arith.mulf %65, %64 : vector<3x2x1xf32>
      %67 = arith.addf %arg6, %63 : vector<3x1x2xf32>
      %cst_26 = arith.constant 5.000000e-01 : f32
      %68 = vector.broadcast %cst_26 : f32 to vector<3x1x2xf32>
      %69 = arith.mulf %68, %67 : vector<3x1x2xf32>
      %cst_27 = arith.constant 0.000000e+00 : f32
      %70 = arith.subf %cst_27, %26 : f32
      %71 = vector.broadcast %arg8 : vector<3x1x2xf32> to vector<3x2x2xf32>
      %72 = arith.subf %71, %1 : vector<3x2x2xf32>
      %73 = vector.broadcast %27 : f32 to vector<3x2x2xf32>
      %74 = arith.mulf %72, %73 : vector<3x2x2xf32>
      %cst_28 = arith.constant -0.693147182 : f32
      %75 = vector.broadcast %cst_28 : f32 to vector<3x2x2xf32>
      %76 = arith.addf %75, %74 : vector<3x2x2xf32>
      %cst_29 = arith.constant dense<0xFF800000> : vector<3x2xf32>
      %77 = vector.multi_reduction <maximumf>, %76, %cst_29 [2] : vector<3x2x2xf32> to vector<3x2xf32>
      %78 = vector.shape_cast %77 : vector<3x2xf32> to vector<3x2x1xf32>
      %79 = vector.broadcast %78 : vector<3x2x1xf32> to vector<3x2x2xf32>
      %80 = arith.subf %76, %79 : vector<3x2x2xf32>
      %81 = math.exp %80 : vector<3x2x2xf32>
      %cst_30 = arith.constant dense<0.000000e+00> : vector<3x2xf32>
      %82 = vector.multi_reduction <add>, %81, %cst_30 [2] : vector<3x2x2xf32> to vector<3x2xf32>
      %83 = vector.shape_cast %82 : vector<3x2xf32> to vector<3x2x1xf32>
      %84 = math.log %83 : vector<3x2x1xf32>
      %85 = arith.addf %78, %84 : vector<3x2x1xf32>
      %86 = vector.broadcast %70 : f32 to vector<3x2x1xf32>
      %87 = arith.mulf %86, %85 : vector<3x2x1xf32>
      %cst_31 = arith.constant 0.000000e+00 : f32
      %88 = arith.subf %cst_31, %26 : f32
      %89 = vector.broadcast %87 : vector<3x2x1xf32> to vector<3x2x2xf32>
      %90 = arith.subf %89, %1 : vector<3x2x2xf32>
      %91 = vector.broadcast %27 : f32 to vector<3x2x2xf32>
      %92 = arith.mulf %90, %91 : vector<3x2x2xf32>
      %cst_32 = arith.constant -0.693147182 : f32
      %93 = vector.broadcast %cst_32 : f32 to vector<3x2x2xf32>
      %94 = arith.addf %93, %92 : vector<3x2x2xf32>
      %cst_33 = arith.constant dense<0xFF800000> : vector<3x2xf32>
      %95 = vector.multi_reduction <maximumf>, %94, %cst_33 [1] : vector<3x2x2xf32> to vector<3x2xf32>
      %96 = vector.shape_cast %95 : vector<3x2xf32> to vector<3x1x2xf32>
      %97 = vector.broadcast %96 : vector<3x1x2xf32> to vector<3x2x2xf32>
      %98 = arith.subf %94, %97 : vector<3x2x2xf32>
      %99 = math.exp %98 : vector<3x2x2xf32>
      %cst_34 = arith.constant dense<0.000000e+00> : vector<3x2xf32>
      %100 = vector.multi_reduction <add>, %99, %cst_34 [1] : vector<3x2x2xf32> to vector<3x2xf32>
      %101 = vector.shape_cast %100 : vector<3x2xf32> to vector<3x1x2xf32>
      %102 = math.log %101 : vector<3x1x2xf32>
      %103 = arith.addf %96, %102 : vector<3x1x2xf32>
      %104 = vector.broadcast %88 : f32 to vector<3x1x2xf32>
      %105 = arith.mulf %104, %103 : vector<3x1x2xf32>
      scf.yield %66, %69, %87, %105 : vector<3x2x1xf32>, vector<3x1x2xf32>, vector<3x2x1xf32>, vector<3x1x2xf32>
    }
    %c80_i32_8 = arith.constant 80 : i32
    %8 = vector.shape_cast %7#2 : vector<3x2x1xf32> to vector<1x3x2x1xf32>
    %cst_9 = arith.constant dense<0.000000e+00> : vector<1xf32>
    %9 = vector.multi_reduction <add>, %8, %cst_9 [1, 2, 3] : vector<1x3x2x1xf32> to vector<1xf32>
    %10 = vector.shape_cast %9 : vector<1xf32> to vector<1x1x1x1xf32>
    %11 = vector.extract %10[0, 0, 0, 0] : f32 from vector<1x1x1x1xf32>
    %12 = vector.shape_cast %7#3 : vector<3x1x2xf32> to vector<1x3x1x2xf32>
    %cst_10 = arith.constant dense<0.000000e+00> : vector<1xf32>
    %13 = vector.multi_reduction <add>, %12, %cst_10 [1, 2, 3] : vector<1x3x1x2xf32> to vector<1xf32>
    %14 = vector.shape_cast %13 : vector<1xf32> to vector<1x1x1x1xf32>
    %15 = vector.extract %14[0, 0, 0, 0] : f32 from vector<1x1x1x1xf32>
    %16 = arith.addf %11, %15 : f32
    %17 = vector.shape_cast %7#0 : vector<3x2x1xf32> to vector<1x3x2x1xf32>
    %cst_11 = arith.constant dense<0.000000e+00> : vector<1xf32>
    %18 = vector.multi_reduction <add>, %17, %cst_11 [1, 2, 3] : vector<1x3x2x1xf32> to vector<1xf32>
    %19 = vector.shape_cast %18 : vector<1xf32> to vector<1x1x1x1xf32>
    %20 = vector.extract %19[0, 0, 0, 0] : f32 from vector<1x1x1x1xf32>
    %cst_12 = arith.constant 2.000000e+00 : f32
    %21 = arith.mulf %cst_12, %20 : f32
    %22 = arith.subf %16, %21 : f32
    %cst_13 = arith.constant 2.000000e+00 : f32
    %23 = arith.divf %22, %cst_13 : f32
    %c0_14 = arith.constant 0 : index
    %c0_15 = arith.constant 0 : index
    %24 = memref.load %arg3[%c0_14, %c0_15] : memref<1x1xf32, #tpu.memory_space<smem>>
    memref.store %23, %arg3[%c0_14, %c0_15] : memref<1x1xf32, #tpu.memory_space<smem>>
    return
  }
}

module attributes {stable_mosaic.version = 11 : i64} {
  func.func @_recon_partial_kernel(%arg0: i32, %arg1: i32, %arg2: i32, %arg3: memref<2x4x256xf32, #tpu.memory_space<vmem>>, %arg4: memref<2x4x256xf32, #tpu.memory_space<vmem>>, %arg5: memref<1x2x256xf32, #tpu.memory_space<vmem>>, %arg6: memref<1x2x256xf32, #tpu.memory_space<vmem>>, %arg7: memref<1x2x256xf32, #tpu.memory_space<vmem>>) attributes {dimension_semantics = [#tpu.dimension_semantics<parallel>, #tpu.dimension_semantics<arbitrary>, #tpu.dimension_semantics<arbitrary>], iteration_bounds = array<i64: 1, 1, 1>, scalar_prefetch = 0 : i64, scratch_operands = 0 : i64, tpu.core_type = #tpu.core_type<tc>, window_params = [{transform_indices = @transform_0, window_bounds = array<i64: 2, 4, 256>}, {transform_indices = @transform_1, window_bounds = array<i64: 2, 4, 256>}, {transform_indices = @transform_2, window_bounds = array<i64: 1, 2, 256>}, {transform_indices = @transform_3, window_bounds = array<i64: 1, 2, 256>}, {transform_indices = @transform_4, window_bounds = array<i64: 1, 2, 256>}]} {
    %c0_i32 = arith.constant 0 : i32
    %0 = arith.cmpi eq, %arg2, %c0_i32 : i32
    %1 = arith.extui %0 : i1 to i32
    %c0_i32_0 = arith.constant 0 : i32
    %2 = arith.cmpi ne, %1, %c0_i32_0 : i32
    scf.if %2 {
      %cst_26 = arith.constant 0.000000e+00 : f32
      %29 = vector.broadcast %cst_26 : f32 to vector<2x256xf32>
      %c0_27 = arith.constant 0 : index
      %c0_28 = arith.constant 0 : index
      %c0_29 = arith.constant 0 : index
      %30 = vector.load %arg5[%c0_27, %c0_28, %c0_29] : memref<1x2x256xf32, #tpu.memory_space<vmem>>, vector<1x2x256xf32>
      %31 = vector.shape_cast %30 : vector<1x2x256xf32> to vector<2x256xf32>
      %32 = vector.shape_cast %29 : vector<2x256xf32> to vector<1x2x256xf32>
      tpu.vector_store %arg5[%c0_27, %c0_28, %c0_29], %32 {strides = array<i32>} : memref<1x2x256xf32, #tpu.memory_space<vmem>>, vector<1x2x256xf32>,
      %cst_30 = arith.constant 0.000000e+00 : f32
      %33 = vector.broadcast %cst_30 : f32 to vector<2x256xf32>
      %c0_31 = arith.constant 0 : index
      %c0_32 = arith.constant 0 : index
      %c0_33 = arith.constant 0 : index
      %34 = vector.load %arg6[%c0_31, %c0_32, %c0_33] : memref<1x2x256xf32, #tpu.memory_space<vmem>>, vector<1x2x256xf32>
      %35 = vector.shape_cast %34 : vector<1x2x256xf32> to vector<2x256xf32>
      %36 = vector.shape_cast %33 : vector<2x256xf32> to vector<1x2x256xf32>
      tpu.vector_store %arg6[%c0_31, %c0_32, %c0_33], %36 {strides = array<i32>} : memref<1x2x256xf32, #tpu.memory_space<vmem>>, vector<1x2x256xf32>,
      %cst_34 = arith.constant 0.000000e+00 : f32
      %37 = vector.broadcast %cst_34 : f32 to vector<2x256xf32>
      %c0_35 = arith.constant 0 : index
      %c0_36 = arith.constant 0 : index
      %c0_37 = arith.constant 0 : index
      %38 = vector.load %arg7[%c0_35, %c0_36, %c0_37] : memref<1x2x256xf32, #tpu.memory_space<vmem>>, vector<1x2x256xf32>
      %39 = vector.shape_cast %38 : vector<1x2x256xf32> to vector<2x256xf32>
      %40 = vector.shape_cast %37 : vector<2x256xf32> to vector<1x2x256xf32>
      tpu.vector_store %arg7[%c0_35, %c0_36, %c0_37], %40 {strides = array<i32>} : memref<1x2x256xf32, #tpu.memory_space<vmem>>, vector<1x2x256xf32>,
    } else {
    }
    %c0 = arith.constant 0 : index
    %c0_1 = arith.constant 0 : index
    %c0_2 = arith.constant 0 : index
    %3 = vector.load %arg3[%c0, %c0_1, %c0_2] : memref<2x4x256xf32, #tpu.memory_space<vmem>>, vector<2x4x256xf32>
    %c0_3 = arith.constant 0 : index
    %c0_4 = arith.constant 0 : index
    %c0_5 = arith.constant 0 : index
    %4 = vector.load %arg4[%c0_3, %c0_4, %c0_5] : memref<2x4x256xf32, #tpu.memory_space<vmem>>, vector<2x4x256xf32>
    %c0_6 = arith.constant 0 : index
    %c0_7 = arith.constant 0 : index
    %c0_8 = arith.constant 0 : index
    %5 = vector.load %arg5[%c0_6, %c0_7, %c0_8] : memref<1x2x256xf32, #tpu.memory_space<vmem>>, vector<1x2x256xf32>
    %6 = vector.shape_cast %5 : vector<1x2x256xf32> to vector<2x256xf32>
    %7 = arith.mulf %3, %4 : vector<2x4x256xf32>
    %cst = arith.constant dense<0.000000e+00> : vector<2x256xf32>
    %8 = vector.multi_reduction <add>, %7, %cst [1] : vector<2x4x256xf32> to vector<2x256xf32>
    %9 = arith.addf %6, %8 : vector<2x256xf32>
    %c0_9 = arith.constant 0 : index
    %c0_10 = arith.constant 0 : index
    %c0_11 = arith.constant 0 : index
    %10 = vector.load %arg5[%c0_9, %c0_10, %c0_11] : memref<1x2x256xf32, #tpu.memory_space<vmem>>, vector<1x2x256xf32>
    %11 = vector.shape_cast %10 : vector<1x2x256xf32> to vector<2x256xf32>
    %12 = vector.shape_cast %9 : vector<2x256xf32> to vector<1x2x256xf32>
    tpu.vector_store %arg5[%c0_9, %c0_10, %c0_11], %12 {strides = array<i32>} : memref<1x2x256xf32, #tpu.memory_space<vmem>>, vector<1x2x256xf32>,
    %c0_12 = arith.constant 0 : index
    %c0_13 = arith.constant 0 : index
    %c0_14 = arith.constant 0 : index
    %13 = vector.load %arg6[%c0_12, %c0_13, %c0_14] : memref<1x2x256xf32, #tpu.memory_space<vmem>>, vector<1x2x256xf32>
    %14 = vector.shape_cast %13 : vector<1x2x256xf32> to vector<2x256xf32>
    %15 = arith.mulf %3, %3 : vector<2x4x256xf32>
    %cst_15 = arith.constant dense<0.000000e+00> : vector<2x256xf32>
    %16 = vector.multi_reduction <add>, %15, %cst_15 [1] : vector<2x4x256xf32> to vector<2x256xf32>
    %17 = arith.addf %14, %16 : vector<2x256xf32>
    %c0_16 = arith.constant 0 : index
    %c0_17 = arith.constant 0 : index
    %c0_18 = arith.constant 0 : index
    %18 = vector.load %arg6[%c0_16, %c0_17, %c0_18] : memref<1x2x256xf32, #tpu.memory_space<vmem>>, vector<1x2x256xf32>
    %19 = vector.shape_cast %18 : vector<1x2x256xf32> to vector<2x256xf32>
    %20 = vector.shape_cast %17 : vector<2x256xf32> to vector<1x2x256xf32>
    tpu.vector_store %arg6[%c0_16, %c0_17, %c0_18], %20 {strides = array<i32>} : memref<1x2x256xf32, #tpu.memory_space<vmem>>, vector<1x2x256xf32>,
    %c0_19 = arith.constant 0 : index
    %c0_20 = arith.constant 0 : index
    %c0_21 = arith.constant 0 : index
    %21 = vector.load %arg7[%c0_19, %c0_20, %c0_21] : memref<1x2x256xf32, #tpu.memory_space<vmem>>, vector<1x2x256xf32>
    %22 = vector.shape_cast %21 : vector<1x2x256xf32> to vector<2x256xf32>
    %23 = arith.mulf %4, %4 : vector<2x4x256xf32>
    %cst_22 = arith.constant dense<0.000000e+00> : vector<2x256xf32>
    %24 = vector.multi_reduction <add>, %23, %cst_22 [1] : vector<2x4x256xf32> to vector<2x256xf32>
    %25 = arith.addf %22, %24 : vector<2x256xf32>
    %c0_23 = arith.constant 0 : index
    %c0_24 = arith.constant 0 : index
    %c0_25 = arith.constant 0 : index
    %26 = vector.load %arg7[%c0_23, %c0_24, %c0_25] : memref<1x2x256xf32, #tpu.memory_space<vmem>>, vector<1x2x256xf32>
    %27 = vector.shape_cast %26 : vector<1x2x256xf32> to vector<2x256xf32>
    %28 = vector.shape_cast %25 : vector<2x256xf32> to vector<1x2x256xf32>
    tpu.vector_store %arg7[%c0_23, %c0_24, %c0_25], %28 {strides = array<i32>} : memref<1x2x256xf32, #tpu.memory_space<vmem>>, vector<1x2x256xf32>,
    return
  }
  func.func @transform_0(%arg0: i32, %arg1: i32, %arg2: i32) -> (i32, i32, i32) {
    %c1_i32 = arith.constant 1 : i32
    %0 = arith.muli %arg0, %c1_i32 : i32
    %1 = arith.addi %0, %arg2 : i32
    %c0_i32 = arith.constant 0 : i32
    %c0_i32_0 = arith.constant 0 : i32
    return %c0_i32, %1, %arg1 : i32, i32, i32
  }
  func.func @transform_1(%arg0: i32, %arg1: i32, %arg2: i32) -> (i32, i32, i32) {
    %c1_i32 = arith.constant 1 : i32
    %0 = arith.muli %arg0, %c1_i32 : i32
    %1 = arith.addi %0, %arg2 : i32
    %c0_i32 = arith.constant 0 : i32
    %c0_i32_0 = arith.constant 0 : i32
    return %c0_i32, %1, %arg1 : i32, i32, i32
  }
  func.func @transform_2(%arg0: i32, %arg1: i32, %arg2: i32) -> (i32, i32, i32) {
    %c0_i32 = arith.constant 0 : i32
    %c0_i32_0 = arith.constant 0 : i32
    return %arg0, %c0_i32, %arg1 : i32, i32, i32
  }
  func.func @transform_3(%arg0: i32, %arg1: i32, %arg2: i32) -> (i32, i32, i32) {
    %c0_i32 = arith.constant 0 : i32
    %c0_i32_0 = arith.constant 0 : i32
    return %arg0, %c0_i32, %arg1 : i32, i32, i32
  }
  func.func @transform_4(%arg0: i32, %arg1: i32, %arg2: i32) -> (i32, i32, i32) {
    %c0_i32 = arith.constant 0 : i32
    %c0_i32_0 = arith.constant 0 : i32
    return %arg0, %c0_i32, %arg1 : i32, i32, i32
  }
}

module attributes {stable_mosaic.version = 11 : i64} {
  func.func @_recon_partial_kernel(%arg0: i32, %arg1: i32, %arg2: i32, %arg3: memref<2x8x64xf32, #tpu.memory_space<vmem>>, %arg4: memref<2x8x64xf32, #tpu.memory_space<vmem>>, %arg5: memref<1x2x64xf32, #tpu.memory_space<vmem>>, %arg6: memref<1x2x64xf32, #tpu.memory_space<vmem>>, %arg7: memref<1x2x64xf32, #tpu.memory_space<vmem>>) attributes {dimension_semantics = [#tpu.dimension_semantics<parallel>, #tpu.dimension_semantics<arbitrary>, #tpu.dimension_semantics<arbitrary>], iteration_bounds = array<i64: 1, 1, 1>, scalar_prefetch = 0 : i64, scratch_operands = 0 : i64, tpu.core_type = #tpu.core_type<tc>, window_params = [{transform_indices = @transform_0, window_bounds = array<i64: 2, 8, 64>}, {transform_indices = @transform_1, window_bounds = array<i64: 2, 8, 64>}, {transform_indices = @transform_2, window_bounds = array<i64: 1, 2, 64>}, {transform_indices = @transform_3, window_bounds = array<i64: 1, 2, 64>}, {transform_indices = @transform_4, window_bounds = array<i64: 1, 2, 64>}]} {
    %c0_i32 = arith.constant 0 : i32
    %0 = arith.cmpi eq, %arg2, %c0_i32 : i32
    %1 = arith.extui %0 : i1 to i32
    %c0_i32_0 = arith.constant 0 : i32
    %2 = arith.cmpi ne, %1, %c0_i32_0 : i32
    scf.if %2 {
      %cst_26 = arith.constant 0.000000e+00 : f32
      %29 = vector.broadcast %cst_26 : f32 to vector<2x64xf32>
      %c0_27 = arith.constant 0 : index
      %c0_28 = arith.constant 0 : index
      %c0_29 = arith.constant 0 : index
      %30 = vector.load %arg5[%c0_27, %c0_28, %c0_29] : memref<1x2x64xf32, #tpu.memory_space<vmem>>, vector<1x2x64xf32>
      %31 = vector.shape_cast %30 : vector<1x2x64xf32> to vector<2x64xf32>
      %32 = vector.shape_cast %29 : vector<2x64xf32> to vector<1x2x64xf32>
      tpu.vector_store %arg5[%c0_27, %c0_28, %c0_29], %32 {strides = array<i32>} : memref<1x2x64xf32, #tpu.memory_space<vmem>>, vector<1x2x64xf32>,
      %cst_30 = arith.constant 0.000000e+00 : f32
      %33 = vector.broadcast %cst_30 : f32 to vector<2x64xf32>
      %c0_31 = arith.constant 0 : index
      %c0_32 = arith.constant 0 : index
      %c0_33 = arith.constant 0 : index
      %34 = vector.load %arg6[%c0_31, %c0_32, %c0_33] : memref<1x2x64xf32, #tpu.memory_space<vmem>>, vector<1x2x64xf32>
      %35 = vector.shape_cast %34 : vector<1x2x64xf32> to vector<2x64xf32>
      %36 = vector.shape_cast %33 : vector<2x64xf32> to vector<1x2x64xf32>
      tpu.vector_store %arg6[%c0_31, %c0_32, %c0_33], %36 {strides = array<i32>} : memref<1x2x64xf32, #tpu.memory_space<vmem>>, vector<1x2x64xf32>,
      %cst_34 = arith.constant 0.000000e+00 : f32
      %37 = vector.broadcast %cst_34 : f32 to vector<2x64xf32>
      %c0_35 = arith.constant 0 : index
      %c0_36 = arith.constant 0 : index
      %c0_37 = arith.constant 0 : index
      %38 = vector.load %arg7[%c0_35, %c0_36, %c0_37] : memref<1x2x64xf32, #tpu.memory_space<vmem>>, vector<1x2x64xf32>
      %39 = vector.shape_cast %38 : vector<1x2x64xf32> to vector<2x64xf32>
      %40 = vector.shape_cast %37 : vector<2x64xf32> to vector<1x2x64xf32>
      tpu.vector_store %arg7[%c0_35, %c0_36, %c0_37], %40 {strides = array<i32>} : memref<1x2x64xf32, #tpu.memory_space<vmem>>, vector<1x2x64xf32>,
    } else {
    }
    %c0 = arith.constant 0 : index
    %c0_1 = arith.constant 0 : index
    %c0_2 = arith.constant 0 : index
    %3 = vector.load %arg3[%c0, %c0_1, %c0_2] : memref<2x8x64xf32, #tpu.memory_space<vmem>>, vector<2x8x64xf32>
    %c0_3 = arith.constant 0 : index
    %c0_4 = arith.constant 0 : index
    %c0_5 = arith.constant 0 : index
    %4 = vector.load %arg4[%c0_3, %c0_4, %c0_5] : memref<2x8x64xf32, #tpu.memory_space<vmem>>, vector<2x8x64xf32>
    %c0_6 = arith.constant 0 : index
    %c0_7 = arith.constant 0 : index
    %c0_8 = arith.constant 0 : index
    %5 = vector.load %arg5[%c0_6, %c0_7, %c0_8] : memref<1x2x64xf32, #tpu.memory_space<vmem>>, vector<1x2x64xf32>
    %6 = vector.shape_cast %5 : vector<1x2x64xf32> to vector<2x64xf32>
    %7 = arith.mulf %3, %4 : vector<2x8x64xf32>
    %cst = arith.constant dense<0.000000e+00> : vector<2x64xf32>
    %8 = vector.multi_reduction <add>, %7, %cst [1] : vector<2x8x64xf32> to vector<2x64xf32>
    %9 = arith.addf %6, %8 : vector<2x64xf32>
    %c0_9 = arith.constant 0 : index
    %c0_10 = arith.constant 0 : index
    %c0_11 = arith.constant 0 : index
    %10 = vector.load %arg5[%c0_9, %c0_10, %c0_11] : memref<1x2x64xf32, #tpu.memory_space<vmem>>, vector<1x2x64xf32>
    %11 = vector.shape_cast %10 : vector<1x2x64xf32> to vector<2x64xf32>
    %12 = vector.shape_cast %9 : vector<2x64xf32> to vector<1x2x64xf32>
    tpu.vector_store %arg5[%c0_9, %c0_10, %c0_11], %12 {strides = array<i32>} : memref<1x2x64xf32, #tpu.memory_space<vmem>>, vector<1x2x64xf32>,
    %c0_12 = arith.constant 0 : index
    %c0_13 = arith.constant 0 : index
    %c0_14 = arith.constant 0 : index
    %13 = vector.load %arg6[%c0_12, %c0_13, %c0_14] : memref<1x2x64xf32, #tpu.memory_space<vmem>>, vector<1x2x64xf32>
    %14 = vector.shape_cast %13 : vector<1x2x64xf32> to vector<2x64xf32>
    %15 = arith.mulf %3, %3 : vector<2x8x64xf32>
    %cst_15 = arith.constant dense<0.000000e+00> : vector<2x64xf32>
    %16 = vector.multi_reduction <add>, %15, %cst_15 [1] : vector<2x8x64xf32> to vector<2x64xf32>
    %17 = arith.addf %14, %16 : vector<2x64xf32>
    %c0_16 = arith.constant 0 : index
    %c0_17 = arith.constant 0 : index
    %c0_18 = arith.constant 0 : index
    %18 = vector.load %arg6[%c0_16, %c0_17, %c0_18] : memref<1x2x64xf32, #tpu.memory_space<vmem>>, vector<1x2x64xf32>
    %19 = vector.shape_cast %18 : vector<1x2x64xf32> to vector<2x64xf32>
    %20 = vector.shape_cast %17 : vector<2x64xf32> to vector<1x2x64xf32>
    tpu.vector_store %arg6[%c0_16, %c0_17, %c0_18], %20 {strides = array<i32>} : memref<1x2x64xf32, #tpu.memory_space<vmem>>, vector<1x2x64xf32>,
    %c0_19 = arith.constant 0 : index
    %c0_20 = arith.constant 0 : index
    %c0_21 = arith.constant 0 : index
    %21 = vector.load %arg7[%c0_19, %c0_20, %c0_21] : memref<1x2x64xf32, #tpu.memory_space<vmem>>, vector<1x2x64xf32>
    %22 = vector.shape_cast %21 : vector<1x2x64xf32> to vector<2x64xf32>
    %23 = arith.mulf %4, %4 : vector<2x8x64xf32>
    %cst_22 = arith.constant dense<0.000000e+00> : vector<2x64xf32>
    %24 = vector.multi_reduction <add>, %23, %cst_22 [1] : vector<2x8x64xf32> to vector<2x64xf32>
    %25 = arith.addf %22, %24 : vector<2x64xf32>
    %c0_23 = arith.constant 0 : index
    %c0_24 = arith.constant 0 : index
    %c0_25 = arith.constant 0 : index
    %26 = vector.load %arg7[%c0_23, %c0_24, %c0_25] : memref<1x2x64xf32, #tpu.memory_space<vmem>>, vector<1x2x64xf32>
    %27 = vector.shape_cast %26 : vector<1x2x64xf32> to vector<2x64xf32>
    %28 = vector.shape_cast %25 : vector<2x64xf32> to vector<1x2x64xf32>
    tpu.vector_store %arg7[%c0_23, %c0_24, %c0_25], %28 {strides = array<i32>} : memref<1x2x64xf32, #tpu.memory_space<vmem>>, vector<1x2x64xf32>,
    return
  }
  func.func @transform_0(%arg0: i32, %arg1: i32, %arg2: i32) -> (i32, i32, i32) {
    %c1_i32 = arith.constant 1 : i32
    %0 = arith.muli %arg0, %c1_i32 : i32
    %1 = arith.addi %0, %arg2 : i32
    %c0_i32 = arith.constant 0 : i32
    %c0_i32_0 = arith.constant 0 : i32
    return %c0_i32, %1, %arg1 : i32, i32, i32
  }
  func.func @transform_1(%arg0: i32, %arg1: i32, %arg2: i32) -> (i32, i32, i32) {
    %c1_i32 = arith.constant 1 : i32
    %0 = arith.muli %arg0, %c1_i32 : i32
    %1 = arith.addi %0, %arg2 : i32
    %c0_i32 = arith.constant 0 : i32
    %c0_i32_0 = arith.constant 0 : i32
    return %c0_i32, %1, %arg1 : i32, i32, i32
  }
  func.func @transform_2(%arg0: i32, %arg1: i32, %arg2: i32) -> (i32, i32, i32) {
    %c0_i32 = arith.constant 0 : i32
    %c0_i32_0 = arith.constant 0 : i32
    return %arg0, %c0_i32, %arg1 : i32, i32, i32
  }
  func.func @transform_3(%arg0: i32, %arg1: i32, %arg2: i32) -> (i32, i32, i32) {
    %c0_i32 = arith.constant 0 : i32
    %c0_i32_0 = arith.constant 0 : i32
    return %arg0, %c0_i32, %arg1 : i32, i32, i32
  }
  func.func @transform_4(%arg0: i32, %arg1: i32, %arg2: i32) -> (i32, i32, i32) {
    %c0_i32 = arith.constant 0 : i32
    %c0_i32_0 = arith.constant 0 : i32
    return %arg0, %c0_i32, %arg1 : i32, i32, i32
  }
}

module attributes {stable_mosaic.version = 11 : i64} {
  func.func @_recon_partial_kernel(%arg0: i32, %arg1: i32, %arg2: i32, %arg3: memref<2x16x16xf32, #tpu.memory_space<vmem>>, %arg4: memref<2x16x16xf32, #tpu.memory_space<vmem>>, %arg5: memref<1x2x16xf32, #tpu.memory_space<vmem>>, %arg6: memref<1x2x16xf32, #tpu.memory_space<vmem>>, %arg7: memref<1x2x16xf32, #tpu.memory_space<vmem>>) attributes {dimension_semantics = [#tpu.dimension_semantics<parallel>, #tpu.dimension_semantics<arbitrary>, #tpu.dimension_semantics<arbitrary>], iteration_bounds = array<i64: 1, 1, 1>, scalar_prefetch = 0 : i64, scratch_operands = 0 : i64, tpu.core_type = #tpu.core_type<tc>, window_params = [{transform_indices = @transform_0, window_bounds = array<i64: 2, 16, 16>}, {transform_indices = @transform_1, window_bounds = array<i64: 2, 16, 16>}, {transform_indices = @transform_2, window_bounds = array<i64: 1, 2, 16>}, {transform_indices = @transform_3, window_bounds = array<i64: 1, 2, 16>}, {transform_indices = @transform_4, window_bounds = array<i64: 1, 2, 16>}]} {
    %c0_i32 = arith.constant 0 : i32
    %0 = arith.cmpi eq, %arg2, %c0_i32 : i32
    %1 = arith.extui %0 : i1 to i32
    %c0_i32_0 = arith.constant 0 : i32
    %2 = arith.cmpi ne, %1, %c0_i32_0 : i32
    scf.if %2 {
      %cst_26 = arith.constant 0.000000e+00 : f32
      %29 = vector.broadcast %cst_26 : f32 to vector<2x16xf32>
      %c0_27 = arith.constant 0 : index
      %c0_28 = arith.constant 0 : index
      %c0_29 = arith.constant 0 : index
      %30 = vector.load %arg5[%c0_27, %c0_28, %c0_29] : memref<1x2x16xf32, #tpu.memory_space<vmem>>, vector<1x2x16xf32>
      %31 = vector.shape_cast %30 : vector<1x2x16xf32> to vector<2x16xf32>
      %32 = vector.shape_cast %29 : vector<2x16xf32> to vector<1x2x16xf32>
      tpu.vector_store %arg5[%c0_27, %c0_28, %c0_29], %32 {strides = array<i32>} : memref<1x2x16xf32, #tpu.memory_space<vmem>>, vector<1x2x16xf32>,
      %cst_30 = arith.constant 0.000000e+00 : f32
      %33 = vector.broadcast %cst_30 : f32 to vector<2x16xf32>
      %c0_31 = arith.constant 0 : index
      %c0_32 = arith.constant 0 : index
      %c0_33 = arith.constant 0 : index
      %34 = vector.load %arg6[%c0_31, %c0_32, %c0_33] : memref<1x2x16xf32, #tpu.memory_space<vmem>>, vector<1x2x16xf32>
      %35 = vector.shape_cast %34 : vector<1x2x16xf32> to vector<2x16xf32>
      %36 = vector.shape_cast %33 : vector<2x16xf32> to vector<1x2x16xf32>
      tpu.vector_store %arg6[%c0_31, %c0_32, %c0_33], %36 {strides = array<i32>} : memref<1x2x16xf32, #tpu.memory_space<vmem>>, vector<1x2x16xf32>,
      %cst_34 = arith.constant 0.000000e+00 : f32
      %37 = vector.broadcast %cst_34 : f32 to vector<2x16xf32>
      %c0_35 = arith.constant 0 : index
      %c0_36 = arith.constant 0 : index
      %c0_37 = arith.constant 0 : index
      %38 = vector.load %arg7[%c0_35, %c0_36, %c0_37] : memref<1x2x16xf32, #tpu.memory_space<vmem>>, vector<1x2x16xf32>
      %39 = vector.shape_cast %38 : vector<1x2x16xf32> to vector<2x16xf32>
      %40 = vector.shape_cast %37 : vector<2x16xf32> to vector<1x2x16xf32>
      tpu.vector_store %arg7[%c0_35, %c0_36, %c0_37], %40 {strides = array<i32>} : memref<1x2x16xf32, #tpu.memory_space<vmem>>, vector<1x2x16xf32>,
    } else {
    }
    %c0 = arith.constant 0 : index
    %c0_1 = arith.constant 0 : index
    %c0_2 = arith.constant 0 : index
    %3 = vector.load %arg3[%c0, %c0_1, %c0_2] : memref<2x16x16xf32, #tpu.memory_space<vmem>>, vector<2x16x16xf32>
    %c0_3 = arith.constant 0 : index
    %c0_4 = arith.constant 0 : index
    %c0_5 = arith.constant 0 : index
    %4 = vector.load %arg4[%c0_3, %c0_4, %c0_5] : memref<2x16x16xf32, #tpu.memory_space<vmem>>, vector<2x16x16xf32>
    %c0_6 = arith.constant 0 : index
    %c0_7 = arith.constant 0 : index
    %c0_8 = arith.constant 0 : index
    %5 = vector.load %arg5[%c0_6, %c0_7, %c0_8] : memref<1x2x16xf32, #tpu.memory_space<vmem>>, vector<1x2x16xf32>
    %6 = vector.shape_cast %5 : vector<1x2x16xf32> to vector<2x16xf32>
    %7 = arith.mulf %3, %4 : vector<2x16x16xf32>
    %cst = arith.constant dense<0.000000e+00> : vector<2x16xf32>
    %8 = vector.multi_reduction <add>, %7, %cst [1] : vector<2x16x16xf32> to vector<2x16xf32>
    %9 = arith.addf %6, %8 : vector<2x16xf32>
    %c0_9 = arith.constant 0 : index
    %c0_10 = arith.constant 0 : index
    %c0_11 = arith.constant 0 : index
    %10 = vector.load %arg5[%c0_9, %c0_10, %c0_11] : memref<1x2x16xf32, #tpu.memory_space<vmem>>, vector<1x2x16xf32>
    %11 = vector.shape_cast %10 : vector<1x2x16xf32> to vector<2x16xf32>
    %12 = vector.shape_cast %9 : vector<2x16xf32> to vector<1x2x16xf32>
    tpu.vector_store %arg5[%c0_9, %c0_10, %c0_11], %12 {strides = array<i32>} : memref<1x2x16xf32, #tpu.memory_space<vmem>>, vector<1x2x16xf32>,
    %c0_12 = arith.constant 0 : index
    %c0_13 = arith.constant 0 : index
    %c0_14 = arith.constant 0 : index
    %13 = vector.load %arg6[%c0_12, %c0_13, %c0_14] : memref<1x2x16xf32, #tpu.memory_space<vmem>>, vector<1x2x16xf32>
    %14 = vector.shape_cast %13 : vector<1x2x16xf32> to vector<2x16xf32>
    %15 = arith.mulf %3, %3 : vector<2x16x16xf32>
    %cst_15 = arith.constant dense<0.000000e+00> : vector<2x16xf32>
    %16 = vector.multi_reduction <add>, %15, %cst_15 [1] : vector<2x16x16xf32> to vector<2x16xf32>
    %17 = arith.addf %14, %16 : vector<2x16xf32>
    %c0_16 = arith.constant 0 : index
    %c0_17 = arith.constant 0 : index
    %c0_18 = arith.constant 0 : index
    %18 = vector.load %arg6[%c0_16, %c0_17, %c0_18] : memref<1x2x16xf32, #tpu.memory_space<vmem>>, vector<1x2x16xf32>
    %19 = vector.shape_cast %18 : vector<1x2x16xf32> to vector<2x16xf32>
    %20 = vector.shape_cast %17 : vector<2x16xf32> to vector<1x2x16xf32>
    tpu.vector_store %arg6[%c0_16, %c0_17, %c0_18], %20 {strides = array<i32>} : memref<1x2x16xf32, #tpu.memory_space<vmem>>, vector<1x2x16xf32>,
    %c0_19 = arith.constant 0 : index
    %c0_20 = arith.constant 0 : index
    %c0_21 = arith.constant 0 : index
    %21 = vector.load %arg7[%c0_19, %c0_20, %c0_21] : memref<1x2x16xf32, #tpu.memory_space<vmem>>, vector<1x2x16xf32>
    %22 = vector.shape_cast %21 : vector<1x2x16xf32> to vector<2x16xf32>
    %23 = arith.mulf %4, %4 : vector<2x16x16xf32>
    %cst_22 = arith.constant dense<0.000000e+00> : vector<2x16xf32>
    %24 = vector.multi_reduction <add>, %23, %cst_22 [1] : vector<2x16x16xf32> to vector<2x16xf32>
    %25 = arith.addf %22, %24 : vector<2x16xf32>
    %c0_23 = arith.constant 0 : index
    %c0_24 = arith.constant 0 : index
    %c0_25 = arith.constant 0 : index
    %26 = vector.load %arg7[%c0_23, %c0_24, %c0_25] : memref<1x2x16xf32, #tpu.memory_space<vmem>>, vector<1x2x16xf32>
    %27 = vector.shape_cast %26 : vector<1x2x16xf32> to vector<2x16xf32>
    %28 = vector.shape_cast %25 : vector<2x16xf32> to vector<1x2x16xf32>
    tpu.vector_store %arg7[%c0_23, %c0_24, %c0_25], %28 {strides = array<i32>} : memref<1x2x16xf32, #tpu.memory_space<vmem>>, vector<1x2x16xf32>,
    return
  }
  func.func @transform_0(%arg0: i32, %arg1: i32, %arg2: i32) -> (i32, i32, i32) {
    %c1_i32 = arith.constant 1 : i32
    %0 = arith.muli %arg0, %c1_i32 : i32
    %1 = arith.addi %0, %arg2 : i32
    %c0_i32 = arith.constant 0 : i32
    %c0_i32_0 = arith.constant 0 : i32
    return %c0_i32, %1, %arg1 : i32, i32, i32
  }
  func.func @transform_1(%arg0: i32, %arg1: i32, %arg2: i32) -> (i32, i32, i32) {
    %c1_i32 = arith.constant 1 : i32
    %0 = arith.muli %arg0, %c1_i32 : i32
    %1 = arith.addi %0, %arg2 : i32
    %c0_i32 = arith.constant 0 : i32
    %c0_i32_0 = arith.constant 0 : i32
    return %c0_i32, %1, %arg1 : i32, i32, i32
  }
  func.func @transform_2(%arg0: i32, %arg1: i32, %arg2: i32) -> (i32, i32, i32) {
    %c0_i32 = arith.constant 0 : i32
    %c0_i32_0 = arith.constant 0 : i32
    return %arg0, %c0_i32, %arg1 : i32, i32, i32
  }
  func.func @transform_3(%arg0: i32, %arg1: i32, %arg2: i32) -> (i32, i32, i32) {
    %c0_i32 = arith.constant 0 : i32
    %c0_i32_0 = arith.constant 0 : i32
    return %arg0, %c0_i32, %arg1 : i32, i32, i32
  }
  func.func @transform_4(%arg0: i32, %arg1: i32, %arg2: i32) -> (i32, i32, i32) {
    %c0_i32 = arith.constant 0 : i32
    %c0_i32_0 = arith.constant 0 : i32
    return %arg0, %c0_i32, %arg1 : i32, i32, i32
  }
}

</mosaic_0001>

<llo_original>
// kernel: revisit_rd_loss.9
$region0: #{revisit_rd_loss.9}
  #allocation0 [shape = 'u32[]', space=smem, size = 0x4, offset = 0x4, fixed_abs, tag = 'smem constant byte address 0x4 - core index']
  #allocation1 [shape = 'u32[144,128]{1,0:T(1,128)}', space=vmem, size = 0x12000, scoped, tag = 'internal scratch']
  %s0 = inlined_call_operand.vmem [shape: f32[2,256], index: 0, kind: input, shape index: {}]
  %s1 = inlined_call_operand.vmem [shape: f32[2,256], index: 1, kind: input, shape index: {}]
  %s2 = inlined_call_operand.vmem [shape: f32[1,2,2], index: 2, kind: output, shape index: {0}]
  %s3 = inlined_call_operand.vmem [shape: f32[1,2,1], index: 3, kind: output, shape index: {1}]
  %s4 = inlined_call_operand.vmem [shape: f32[1,2,1], index: 4, kind: output, shape index: {2}]
  %s5 = inlined_call_operand.vmem [shape: f32[1,2,1], index: 5, kind: output, shape index: {3}]
  %s6 = inlined_call_operand.vmem [shape: f32[1,2,1], index: 6, kind: output, shape index: {4}]
  %s7 = inlined_call_operand.vmem [shape: f32[1,2,1], index: 7, kind: output, shape index: {5}]
  %8 = xla_tuple %s2, %s3, %s4, %s5, %s6, %s7
  %s9 = sld [smem:[#allocation0]]
  $region62: #{revisit_rd_loss.9} parent=0
    _
  %s11 = ssub.s32 1, %s9
  %s12 = scalar_select 0, %s11, %s9
  // Predicated region
  $region2: #{revisit_rd_loss.9} parent=0 // pred_check
    _
  $region3: #{revisit_rd_loss.9} parent=0 // pred_check_branch
    %14 = sbr.rel (0) target = $region5
  $region4: #{revisit_rd_loss.9} parent=0 // pred_region
    %s15 = sadd.s32 0, 0
    %s16 = smul.u32 2, %s15
    %p17 = scmp.lt.s32.totalorder %s16, 1
    %s18 = scalar_select %p17, %s16, 1
    %s19 = smul.addr %s18, 2
    %s20 = scalar_lea.vmem %s0, %s19
    %s21 = sadd.s32 0, 0
    %s22 = smul.u32 2, %s21
  $region5: #{revisit_rd_loss.9} parent=0 // pred_fallthru
    _
  // Predicated region
  $region6: #{revisit_rd_loss.9} parent=0 // pred_check
    _
  $region7: #{revisit_rd_loss.9} parent=0 // pred_check_branch
    %24 = sbr.rel (0) target = $region9
  $region8: #{revisit_rd_loss.9} parent=0 // pred_region
    %s25 = sadd.s32 0, 0
    %s26 = smul.u32 2, %s25
    %p27 = scmp.lt.s32.totalorder %s26, 1
    %s28 = scalar_select %p27, %s26, 1
    %s29 = smul.addr %s28, 2
    %s30 = scalar_lea.vmem %s1, %s29
    %s31 = sadd.s32 0, 0
    %s32 = smul.u32 2, %s31
  $region9: #{revisit_rd_loss.9} parent=0 // pred_fallthru
    _
  %s33 = sadd.s32 0, 0
  %s34 = smul.u32 2, %s33
  %p35 = scmp.lt.s32.totalorder %s34, 1
  %s36 = scalar_select %p35, %s34, 1
  %s37 = smul.addr %s36, 2
  %s38 = scalar_lea.vmem %s0, %s37
  %s39 = sadd.s32 0, 0
  %s40 = smul.u32 2, %s39
  %p41 = scmp.lt.s32.totalorder %s40, 1
  %s42 = scalar_select %p41, %s40, 1
  %s43 = smul.addr %s42, 2
  %s44 = scalar_lea.vmem %s1, %s43
  %s45 = sadd.s32 0, 0
  %s46 = smul.u32 2, %s45
  %p47 = scmp.lt.s32.totalorder %s46, 1
  %s48 = scalar_select %p47, %s46, 1
  %s49 = smul.addr %s48, 2
  %s50 = scalar_lea.vmem %s0, %s49
  %s51 = sadd.s32 0, 0
  %s52 = smul.u32 2, %s51
  %s53 = sadd.s32 0, 0
  %s54 = smul.u32 2, %s53
  %p55 = scmp.lt.s32.totalorder %s54, 1
  %s56 = scalar_select %p55, %s54, 1
  %s57 = smul.addr %s56, 2
  %s58 = scalar_lea.vmem %s1, %s57
  %s59 = sadd.s32 0, 0
  %s60 = smul.u32 2, %s59
  %p61 = scmp.eq.s32.totalorder 0, 0
  // Predicated region
  $region10: #{revisit_rd_loss.9} parent=0 // pred_check
    %p62 = pneg %p61
  $region11: #{revisit_rd_loss.9} parent=0 // pred_check_branch
    %64 = sbr.rel (%p62) target = $region13
  $region12: #{revisit_rd_loss.9} parent=0 // pred_region
    %vm65 = vcmask 9216
    %66 = vst.msk [vmem:[%s2] sm:$0x3] %vm65, 0.0
    %vm67 = vcmask 1024
    %68 = vst.msk [vmem:[%s3] sm:$0x3] %vm67, -inf
    %69 = vst.msk [vmem:[%s4] sm:$0x3] %vm67, 0.0
    %70 = vst.msk [vmem:[%s5] sm:$0x3] %vm67, 0.0
    %71 = vst.msk [vmem:[%s6] sm:$0x3] %vm67, 0.0
    %72 = vst.msk [vmem:[%s7] sm:$0x3] %vm67, 0.0
  $region13: #{revisit_rd_loss.9} parent=0 // pred_fallthru
    _
  %v73 = vld [vmem:[%s50] sm:$0xf]
  %v74 = vld [vmem:[%s58] sm:$0xf]
  %v75 = vld [vmem:[%s5] sm:$0x3]
  %v76 = vmul.f32 %v74, %v73
  %v79 = vunpack.c.l.s4 1983009808
  %v80 = vunpack.c.0.s8 %v79
  %v81 = vlaneseq
  %v82 = vshrl.u32 %v81, 7
  %v83 = vsub.s32 %v80, %v82
  %v84 = vrot.slane %v76, %v83
  %v85 = vcombine.high %v84, %v84
  %vm88 = vcmask 1041408
  %v89 = vsel %vm88, %v84, 0.0
  %v90 = vsel %vm88, %v85, 0.0
  %v91 = vadd.f32 %v89, %v90
  %92 = vadd.xlane.f32.xlu0 %v91
  %v93 = vpop.xlane.xlu0 %92
  %v94 = vadd.f32 %v75, %v93
  %vm95 = vcmask 1024
  %96 = vst.msk [vmem:[%s5] sm:$0x3] %vm95, %v94
  %v97 = vld [vmem:[%s6] sm:$0x3]
  %v98 = vmul.f32 %v74, %v74
  %v101 = vunpack.c.l.s4 1983009808
  %v102 = vunpack.c.0.s8 %v101
  %v103 = vlaneseq
  %v104 = vshrl.u32 %v103, 7
  %v105 = vsub.s32 %v102, %v104
  %v106 = vrot.slane %v98, %v105
  %v107 = vcombine.high %v106, %v106
  %v110 = vsel %vm88, %v106, 0.0
  %v111 = vsel %vm88, %v107, 0.0
  %v112 = vadd.f32 %v110, %v111
  %113 = vadd.xlane.f32.xlu0 %v112
  %v114 = vpop.xlane.xlu0 %113
  %v115 = vadd.f32 %v97, %v114
  %116 = vst.msk [vmem:[%s6] sm:$0x3] %vm95, %v115
  %v117 = vld [vmem:[%s7] sm:$0x3]
  %v118 = vmul.f32 %v73, %v73
  %v121 = vunpack.c.l.s4 1983009808
  %v122 = vunpack.c.0.s8 %v121
  %v123 = vlaneseq
  %v124 = vshrl.u32 %v123, 7
  %v125 = vsub.s32 %v122, %v124
  %v126 = vrot.slane %v118, %v125
  %v127 = vcombine.high %v126, %v126
  %v130 = vsel %vm88, %v126, 0.0
  %v131 = vsel %vm88, %v127, 0.0
  %v132 = vadd.f32 %v130, %v131
  %133 = vadd.xlane.f32.xlu0 %v132
  %v134 = vpop.xlane.xlu0 %133
  %v135 = vadd.f32 %v117, %v134
  %136 = vst.msk [vmem:[%s7] sm:$0x3] %vm95, %v135
  %v137 = vld [vmem:[%s3] sm:$0x3]
  %v140 = vunpack.c.l.s4 1983009808
  %v141 = vunpack.c.0.s8 %v140
  %v142 = vlaneseq
  %v143 = vshrl.u32 %v142, 7
  %v144 = vsub.s32 %v141, %v143
  %v145 = vrot.slane %v73, %v144
  %v146 = vcombine.high %v145, %v145
  %v149 = vsel %vm88, %v145, -inf
  %v150 = vsel %vm88, %v146, -inf
  %v151 = vmax.f32 %v149, %v150
  %152 = vmax.xlane.f32.xlu0 %v151
  %v153 = vpop.xlane.xlu0 %152
  %v154 = vmax.f32 %v137, %v153
  %v155 = vsub.f32 %v137, %v154
  %v156 = vmul.f32 %v155, 1.442695
  %v157 = vpow.pop %v156
  %159 = vset.pattern.permute.xlu0 0
  %160 = vperm.xlu0 %159, %v154
  %v161 = vpop.permute.xlu0 %160
  %v163 = vunpack.c.l.s4 269488144
  %v164 = vunpack.c.0.s8 %v163
  %v165 = vlaneseq
  %v166 = vshrl.u32 %v165, 7
  %v167 = vsub.s32 %v164, %v166
  %v168 = vrot.slane %v161, %v167
  %v170 = vsub.f32 %v73, %v168
  %v171 = vmul.f32 %v170, 1.442695
  %v172 = vpow.pop %v171
  %v173 = vld [vmem:[%s4] sm:$0x3]
  %v174 = vmul.f32 %v173, %v157
  %v177 = vunpack.c.l.s4 1983009808
  %v178 = vunpack.c.0.s8 %v177
  %v179 = vlaneseq
  %v180 = vshrl.u32 %v179, 7
  %v181 = vsub.s32 %v178, %v180
  %v182 = vrot.slane %v172, %v181
  %v183 = vcombine.high %v182, %v182
  %v186 = vsel %vm88, %v182, 0.0
  %v187 = vsel %vm88, %v183, 0.0
  %v188 = vadd.f32 %v186, %v187
  %189 = vadd.xlane.f32.xlu0 %v188
  %v190 = vpop.xlane.xlu0 %189
  %v191 = vadd.f32 %v174, %v190
  %192 = vst.msk [vmem:[%s4] sm:$0x3] %vm95, %v191
  %vm193 = vcmask 7168
  %v195 = vsel %vm193, %v157, 0
  %197 = vmatprep.subr.mxu0 0.0
  %198 = vmatpush1.xpose.msra.mxu0 %v195
  %199 = vmatprep.subr.mxu0 0.0
  %200 = vmatpush1.xpose.msra.mxu0 0.0
  %201 = vmatprep.subr.mxu0 0.0
  %202 = vmatpush1.xpose.msra.mxu0 0.0
  %203 = vmatprep.subr.mxu0 0.0
  %204 = vmatpush1.xpose.msra.mxu0 0.0
  %205 = vmatprep.subr.mxu0 0.0
  %206 = vmatpush1.xpose.msra.mxu0 0.0
  %207 = vmatprep.subr.mxu0 0.0
  %208 = vmatpush1.xpose.msra.mxu0 0.0
  %209 = vmatprep.subr.mxu0 0.0
  %210 = vmatpush1.xpose.msra.mxu0 0.0
  %211 = vmatprep.subr.mxu0 0.0
  %212 = vmatpush1.xpose.msra.mxu0 0.0
  %213 = vmatprep.subr.mxu0 0.0
  %214 = vmatpush1.xpose.msra.mxu0 0.0
  %215 = vmatprep.subr.mxu0 0.0
  %216 = vmatpush1.xpose.msra.mxu0 0.0
  %217 = vmatprep.subr.mxu0 0.0
  %218 = vmatpush1.xpose.msra.mxu0 0.0
  %219 = vmatprep.subr.mxu0 0.0
  %220 = vmatpush1.xpose.msra.mxu0 0.0
  %221 = vmatprep.subr.mxu0 0.0
  %222 = vmatpush1.xpose.msra.mxu0 0.0
  %223 = vmatprep.subr.mxu0 0.0
  %224 = vmatpush1.xpose.msra.mxu0 0.0
  %225 = vmatprep.subr.mxu0 0.0
  %226 = vmatpush1.xpose.msra.mxu0 0.0
  %227 = vmatprep.subr.mxu0 0.0
  %228 = vmatpush1.xpose.msra.mxu0 0.0
  %229 = vmatprep.subr.mxu0 0.0
  %230 = vmatpush1.xpose.msra.mxu0 0.0
  %231 = vmatprep.subr.mxu0 0.0
  %232 = vmatpush1.xpose.msra.mxu0 0.0
  %233 = vmatprep.subr.mxu0 0.0
  %234 = vmatpush1.xpose.msra.mxu0 0.0
  %235 = vmatprep.subr.mxu0 0.0
  %236 = vmatpush1.xpose.msra.mxu0 0.0
  %237 = vmatprep.subr.mxu0 0.0
  %238 = vmatpush1.xpose.msra.mxu0 0.0
  %239 = vmatprep.subr.mxu0 0.0
  %240 = vmatpush1.xpose.msra.mxu0 0.0
  %241 = vmatprep.subr.mxu0 0.0
  %242 = vmatpush1.xpose.msra.mxu0 0.0
  %243 = vmatprep.subr.mxu0 0.0
  %244 = vmatpush1.xpose.msra.mxu0 0.0
  %245 = vmatprep.subr.mxu0 0.0
  %246 = vmatpush1.xpose.msra.mxu0 0.0
  %247 = vmatprep.subr.mxu0 0.0
  %248 = vmatpush1.xpose.msra.mxu0 0.0
  %249 = vmatprep.subr.mxu0 0.0
  %250 = vmatpush1.xpose.msra.mxu0 0.0
  %251 = vmatprep.subr.mxu0 0.0
  %252 = vmatpush1.xpose.msra.mxu0 0.0
  %253 = vmatprep.subr.mxu0 0.0
  %254 = vmatpush1.xpose.msra.mxu0 0.0
  %255 = vmatprep.subr.mxu0 0.0
  %256 = vmatpush1.xpose.msra.mxu0 0.0
  %257 = vmatprep.subr.mxu0 0.0
  %258 = vmatpush1.xpose.msra.mxu0 0.0
  %259 = vmatprep.subr.mxu0 0.0
  %260 = vmatpush1.xpose.msra.mxu0 0.0
  %261 = vmatprep.mubr.f32.mxu0 0.0
  %262 = vmatmul.mubr.f32.gmra.mrb[0].mxu0 %v195
  %v263 = vpop.f32.mrb[0].mxu0
  %v264 = vadd.f32 0.0, %v263
  %v265 = vpop.f32.mrb[0].mxu0
  %266 = vdwg.mxu0
  %267 = vmatprep.subr.mxu0 %v183
  %268 = vmatpush1.xpose.msra.mxu0 %v182
  %269 = vmatprep.subr.mxu0 0.0
  %270 = vmatpush1.xpose.msra.mxu0 0.0
  %271 = vmatprep.subr.mxu0 0.0
  %272 = vmatpush1.xpose.msra.mxu0 0.0
  %273 = vmatprep.subr.mxu0 0.0
  %274 = vmatpush1.xpose.msra.mxu0 0.0
  %275 = vmatprep.subr.mxu0 0.0
  %276 = vmatpush1.xpose.msra.mxu0 0.0
  %277 = vmatprep.subr.mxu0 0.0
  %278 = vmatpush1.xpose.msra.mxu0 0.0
  %279 = vmatprep.subr.mxu0 0.0
  %280 = vmatpush1.xpose.msra.mxu0 0.0
  %281 = vmatprep.subr.mxu0 0.0
  %282 = vmatpush1.xpose.msra.mxu0 0.0
  %283 = vmatprep.subr.mxu0 0.0
  %284 = vmatpush1.xpose.msra.mxu0 0.0
  %285 = vmatprep.subr.mxu0 0.0
  %286 = vmatpush1.xpose.msra.mxu0 0.0
  %287 = vmatprep.subr.mxu0 0.0
  %288 = vmatpush1.xpose.msra.mxu0 0.0
  %289 = vmatprep.subr.mxu0 0.0
  %290 = vmatpush1.xpose.msra.mxu0 0.0
  %291 = vmatprep.subr.mxu0 0.0
  %292 = vmatpush1.xpose.msra.mxu0 0.0
  %293 = vmatprep.subr.mxu0 0.0
  %294 = vmatpush1.xpose.msra.mxu0 0.0
  %295 = vmatprep.subr.mxu0 0.0
  %296 = vmatpush1.xpose.msra.mxu0 0.0
  %297 = vmatprep.subr.mxu0 0.0
  %298 = vmatpush1.xpose.msra.mxu0 0.0
  %299 = vmatprep.subr.mxu0 0.0
  %300 = vmatpush1.xpose.msra.mxu0 0.0
  %301 = vmatprep.subr.mxu0 0.0
  %302 = vmatpush1.xpose.msra.mxu0 0.0
  %303 = vmatprep.subr.mxu0 0.0
  %304 = vmatpush1.xpose.msra.mxu0 0.0
  %305 = vmatprep.subr.mxu0 0.0
  %306 = vmatpush1.xpose.msra.mxu0 0.0
  %307 = vmatprep.subr.mxu0 0.0
  %308 = vmatpush1.xpose.msra.mxu0 0.0
  %309 = vmatprep.subr.mxu0 0.0
  %310 = vmatpush1.xpose.msra.mxu0 0.0
  %311 = vmatprep.subr.mxu0 0.0
  %312 = vmatpush1.xpose.msra.mxu0 0.0
  %313 = vmatprep.subr.mxu0 0.0
  %314 = vmatpush1.xpose.msra.mxu0 0.0
  %315 = vmatprep.subr.mxu0 0.0
  %316 = vmatpush1.xpose.msra.mxu0 0.0
  %317 = vmatprep.subr.mxu0 0.0
  %318 = vmatpush1.xpose.msra.mxu0 0.0
  %319 = vmatprep.subr.mxu0 0.0
  %320 = vmatpush1.xpose.msra.mxu0 0.0
  %321 = vmatprep.subr.mxu0 0.0
  %322 = vmatpush1.xpose.msra.mxu0 0.0
  %323 = vmatprep.subr.mxu0 0.0
  %324 = vmatpush1.xpose.msra.mxu0 0.0
  %325 = vmatprep.subr.mxu0 0.0
  %326 = vmatpush1.xpose.msra.mxu0 0.0
  %327 = vmatprep.subr.mxu0 0.0
  %328 = vmatpush1.xpose.msra.mxu0 0.0
  %329 = vmatprep.subr.mxu0 0.0
  %330 = vmatpush1.xpose.msra.mxu0 0.0
  %331 = vmatprep.mubr.f32.mxu0 %v183
  %332 = vmatmul.mubr.f32.gmra.mrb[0].mxu0 %v182
  %v333 = vpop.f32.mrb[0].mxu0
  %v334 = vadd.f32 0.0, %v333
  %v335 = vpop.f32.mrb[0].mxu0
  %336 = vdwg.mxu0
  %v337 = vld [vmem:[%s2] sm:$0x3]
  %v338 = vmul.f32 %v337, %v264
  %v339 = vadd.f32 %v338, %v334
  %vm340 = vcmask 9216
  %341 = vst.msk [vmem:[%s2] sm:$0x3] %vm340, %v339
  %342 = vst.msk [vmem:[%s3] sm:$0x3] %vm95, %v154
  // Predicated region
  $region14: #{revisit_rd_loss.9} parent=0 // pred_check
    _
  $region15: #{revisit_rd_loss.9} parent=0 // pred_check_branch
    %344 = sbr.rel (0) target = $region17
  $region16: #{revisit_rd_loss.9} parent=0 // pred_region
    _
  $region17: #{revisit_rd_loss.9} parent=0 // pred_fallthru
    _
  // Predicated region
  $region18: #{revisit_rd_loss.9} parent=0 // pred_check
    _
  $region19: #{revisit_rd_loss.9} parent=0 // pred_check_branch
    %346 = sbr.rel (0) target = $region21
  $region20: #{revisit_rd_loss.9} parent=0 // pred_region
    _
  $region21: #{revisit_rd_loss.9} parent=0 // pred_fallthru
    _
  // Predicated region
  $region22: #{revisit_rd_loss.9} parent=0 // pred_check
    _
  $region23: #{revisit_rd_loss.9} parent=0 // pred_check_branch
    %348 = sbr.rel (0) target = $region25
  $region24: #{revisit_rd_loss.9} parent=0 // pred_region
    _
  $region25: #{revisit_rd_loss.9} parent=0 // pred_fallthru
    _
  // Predicated region
  $region26: #{revisit_rd_loss.9} parent=0 // pred_check
    _
  $region27: #{revisit_rd_loss.9} parent=0 // pred_check_branch
    %350 = sbr.rel (0) target = $region29
  $region28: #{revisit_rd_loss.9} parent=0 // pred_region
    _
  $region29: #{revisit_rd_loss.9} parent=0 // pred_fallthru
    _
  // Predicated region
  $region30: #{revisit_rd_loss.9} parent=0 // pred_check
    _
  $region31: #{revisit_rd_loss.9} parent=0 // pred_check_branch
    %352 = sbr.rel (0) target = $region33
  $region32: #{revisit_rd_loss.9} parent=0 // pred_region
    _
  $region33: #{revisit_rd_loss.9} parent=0 // pred_fallthru
    _
  // Predicated region
  $region34: #{revisit_rd_loss.9} parent=0 // pred_check
    _
  $region35: #{revisit_rd_loss.9} parent=0 // pred_check_branch
    %354 = sbr.rel (0) target = $region37
  $region36: #{revisit_rd_loss.9} parent=0 // pred_region
    _
  $region37: #{revisit_rd_loss.9} parent=0 // pred_fallthru
    _
  // Predicated region
  $region38: #{revisit_rd_loss.9} parent=0 // pred_check
    _
  $region39: #{revisit_rd_loss.9} parent=0 // pred_check_branch
    %356 = sbr.rel (0) target = $region41
  $region40: #{revisit_rd_loss.9} parent=0 // pred_region
    _
  $region41: #{revisit_rd_loss.9} parent=0 // pred_fallthru
    _
  // Predicated region
  $region42: #{revisit_rd_loss.9} parent=0 // pred_check
    _
  $region43: #{revisit_rd_loss.9} parent=0 // pred_check_branch
    %358 = sbr.rel (0) target = $region45
  $region44: #{revisit_rd_loss.9} parent=0 // pred_region
    _
  $region45: #{revisit_rd_loss.9} parent=0 // pred_fallthru
    _
  // Predicated region
  $region46: #{revisit_rd_loss.9} parent=0 // pred_check
    _
  $region47: #{revisit_rd_loss.9} parent=0 // pred_check_branch
    %360 = sbr.rel (0) target = $region49
  $region48: #{revisit_rd_loss.9} parent=0 // pred_region
    _
  $region49: #{revisit_rd_loss.9} parent=0 // pred_fallthru
    _
  // Predicated region
  $region50: #{revisit_rd_loss.9} parent=0 // pred_check
    _
  $region51: #{revisit_rd_loss.9} parent=0 // pred_check_branch
    %362 = sbr.rel (0) target = $region53
  $region52: #{revisit_rd_loss.9} parent=0 // pred_region
    _
  $region53: #{revisit_rd_loss.9} parent=0 // pred_fallthru
    _
  // Predicated region
  $region54: #{revisit_rd_loss.9} parent=0 // pred_check
    _
  $region55: #{revisit_rd_loss.9} parent=0 // pred_check_branch
    %364 = sbr.rel (0) target = $region57
  $region56: #{revisit_rd_loss.9} parent=0 // pred_region
    _
  $region57: #{revisit_rd_loss.9} parent=0 // pred_fallthru
    _
  // Predicated region
  $region58: #{revisit_rd_loss.9} parent=0 // pred_check
    _
  $region59: #{revisit_rd_loss.9} parent=0 // pred_check_branch
    %366 = sbr.rel (0) target = $region61
  $region60: #{revisit_rd_loss.9} parent=0 // pred_region
    _
  $region61: #{revisit_rd_loss.9} parent=0 // pred_fallthru
    _

// kernel: revisit_rd_loss.8
$region0: #{revisit_rd_loss.8}
  #allocation0 [shape = 'u32[]', space=smem, size = 0x4, offset = 0x4, fixed_abs, tag = 'smem constant byte address 0x4 - core index']
  #allocation1 [shape = 'u32[144,128]{1,0:T(1,128)}', space=vmem, size = 0x12000, scoped, tag = 'internal scratch']
  %s0 = inlined_call_operand.vmem [shape: f32[2,512], index: 0, kind: input, shape index: {}]
  %s1 = inlined_call_operand.vmem [shape: f32[2,512], index: 1, kind: input, shape index: {}]
  %s2 = inlined_call_operand.vmem [shape: f32[1,2,2], index: 2, kind: output, shape index: {0}]
  %s3 = inlined_call_operand.vmem [shape: f32[1,2,1], index: 3, kind: output, shape index: {1}]
  %s4 = inlined_call_operand.vmem [shape: f32[1,2,1], index: 4, kind: output, shape index: {2}]
  %s5 = inlined_call_operand.vmem [shape: f32[1,2,1], index: 5, kind: output, shape index: {3}]
  %s6 = inlined_call_operand.vmem [shape: f32[1,2,1], index: 6, kind: output, shape index: {4}]
  %s7 = inlined_call_operand.vmem [shape: f32[1,2,1], index: 7, kind: output, shape index: {5}]
  %8 = xla_tuple %s2, %s3, %s4, %s5, %s6, %s7
  %s9 = sld [smem:[#allocation0]]
  $region62: #{revisit_rd_loss.8} parent=0
    _
  %s11 = ssub.s32 1, %s9
  %s12 = scalar_select 0, %s11, %s9
  // Predicated region
  $region2: #{revisit_rd_loss.8} parent=0 // pred_check
    _
  $region3: #{revisit_rd_loss.8} parent=0 // pred_check_branch
    %14 = sbr.rel (0) target = $region5
  $region4: #{revisit_rd_loss.8} parent=0 // pred_region
    %s15 = sadd.s32 0, 0
    %s16 = smul.u32 4, %s15
    %p17 = scmp.lt.s32.totalorder %s16, 3
    %s18 = scalar_select %p17, %s16, 3
    %s19 = smul.addr %s18, 2
    %s20 = scalar_lea.vmem %s0, %s19
    %s21 = sadd.s32 0, 0
    %s22 = smul.u32 4, %s21
  $region5: #{revisit_rd_loss.8} parent=0 // pred_fallthru
    _
  // Predicated region
  $region6: #{revisit_rd_loss.8} parent=0 // pred_check
    _
  $region7: #{revisit_rd_loss.8} parent=0 // pred_check_branch
    %24 = sbr.rel (0) target = $region9
  $region8: #{revisit_rd_loss.8} parent=0 // pred_region
    %s25 = sadd.s32 0, 0
    %s26 = smul.u32 4, %s25
    %p27 = scmp.lt.s32.totalorder %s26, 3
    %s28 = scalar_select %p27, %s26, 3
    %s29 = smul.addr %s28, 2
    %s30 = scalar_lea.vmem %s1, %s29
    %s31 = sadd.s32 0, 0
    %s32 = smul.u32 4, %s31
  $region9: #{revisit_rd_loss.8} parent=0 // pred_fallthru
    _
  %s33 = sadd.s32 0, 0
  %s34 = smul.u32 4, %s33
  %p35 = scmp.lt.s32.totalorder %s34, 3
  %s36 = scalar_select %p35, %s34, 3
  %s37 = smul.addr %s36, 2
  %s38 = scalar_lea.vmem %s0, %s37
  %s39 = sadd.s32 0, 0
  %s40 = smul.u32 4, %s39
  %p41 = scmp.lt.s32.totalorder %s40, 3
  %s42 = scalar_select %p41, %s40, 3
  %s43 = smul.addr %s42, 2
  %s44 = scalar_lea.vmem %s1, %s43
  %s45 = sadd.s32 0, 0
  %s46 = smul.u32 4, %s45
  %p47 = scmp.lt.s32.totalorder %s46, 3
  %s48 = scalar_select %p47, %s46, 3
  %s49 = smul.addr %s48, 2
  %s50 = scalar_lea.vmem %s0, %s49
  %s51 = sadd.s32 0, 0
  %s52 = smul.u32 4, %s51
  %s53 = sadd.s32 0, 0
  %s54 = smul.u32 4, %s53
  %p55 = scmp.lt.s32.totalorder %s54, 3
  %s56 = scalar_select %p55, %s54, 3
  %s57 = smul.addr %s56, 2
  %s58 = scalar_lea.vmem %s1, %s57
  %s59 = sadd.s32 0, 0
  %s60 = smul.u32 4, %s59
  %p61 = scmp.eq.s32.totalorder 0, 0
  // Predicated region
  $region10: #{revisit_rd_loss.8} parent=0 // pred_check
    %p62 = pneg %p61
  $region11: #{revisit_rd_loss.8} parent=0 // pred_check_branch
    %64 = sbr.rel (%p62) target = $region13
  $region12: #{revisit_rd_loss.8} parent=0 // pred_region
    %vm65 = vcmask 9216
    %66 = vst.msk [vmem:[%s2] sm:$0x3] %vm65, 0.0
    %vm67 = vcmask 1024
    %68 = vst.msk [vmem:[%s3] sm:$0x3] %vm67, -inf
    %69 = vst.msk [vmem:[%s4] sm:$0x3] %vm67, 0.0
    %70 = vst.msk [vmem:[%s5] sm:$0x3] %vm67, 0.0
    %71 = vst.msk [vmem:[%s6] sm:$0x3] %vm67, 0.0
    %72 = vst.msk [vmem:[%s7] sm:$0x3] %vm67, 0.0
  $region13: #{revisit_rd_loss.8} parent=0 // pred_fallthru
    _
  %v73 = vld [vmem:[%s50] sm:$0xff]
  %v74 = vld [vmem:[%s58] sm:$0xff]
  %v75 = vld [vmem:[%s5] sm:$0x3]
  %v76 = vmul.f32 %v74, %v73
  %v78 = vcombine.high %v76, %v76
  %v80 = vunpack.c.l.s4 1983009808
  %v81 = vunpack.c.0.s8 %v80
  %v82 = vlaneseq
  %v83 = vshrl.u32 %v82, 7
  %v84 = vsub.s32 %v81, %v83
  %v85 = vrot.slane %v76, %v84
  %v87 = vunpack.c.l.s4 1983009808
  %v88 = vunpack.c.0.s8 %v87
  %v89 = vlaneseq
  %v90 = vshrl.u32 %v89, 7
  %v91 = vsub.s32 %v88, %v90
  %v92 = vrot.slane %v78, %v91
  %v93 = vcombine.high %v85, %v85
  %v94 = vcombine.high %v92, %v92
  %vm99 = vcmask 1041408
  %v100 = vsel %vm99, %v85, 0.0
  %v101 = vsel %vm99, %v93, 0.0
  %v102 = vadd.f32 %v100, %v101
  %v103 = vsel %vm99, %v92, 0.0
  %v104 = vadd.f32 %v102, %v103
  %v105 = vsel %vm99, %v94, 0.0
  %v106 = vadd.f32 %v104, %v105
  %107 = vadd.xlane.f32.xlu0 %v106
  %v108 = vpop.xlane.xlu0 %107
  %v109 = vadd.f32 %v75, %v108
  %vm110 = vcmask 1024
  %111 = vst.msk [vmem:[%s5] sm:$0x3] %vm110, %v109
  %v112 = vld [vmem:[%s6] sm:$0x3]
  %v113 = vmul.f32 %v74, %v74
  %v115 = vcombine.high %v113, %v113
  %v117 = vunpack.c.l.s4 1983009808
  %v118 = vunpack.c.0.s8 %v117
  %v119 = vlaneseq
  %v120 = vshrl.u32 %v119, 7
  %v121 = vsub.s32 %v118, %v120
  %v122 = vrot.slane %v113, %v121
  %v124 = vunpack.c.l.s4 1983009808
  %v125 = vunpack.c.0.s8 %v124
  %v126 = vlaneseq
  %v127 = vshrl.u32 %v126, 7
  %v128 = vsub.s32 %v125, %v127
  %v129 = vrot.slane %v115, %v128
  %v130 = vcombine.high %v122, %v122
  %v131 = vcombine.high %v129, %v129
  %v136 = vsel %vm99, %v122, 0.0
  %v137 = vsel %vm99, %v130, 0.0
  %v138 = vadd.f32 %v136, %v137
  %v139 = vsel %vm99, %v129, 0.0
  %v140 = vadd.f32 %v138, %v139
  %v141 = vsel %vm99, %v131, 0.0
  %v142 = vadd.f32 %v140, %v141
  %143 = vadd.xlane.f32.xlu0 %v142
  %v144 = vpop.xlane.xlu0 %143
  %v145 = vadd.f32 %v112, %v144
  %146 = vst.msk [vmem:[%s6] sm:$0x3] %vm110, %v145
  %v147 = vld [vmem:[%s7] sm:$0x3]
  %v148 = vmul.f32 %v73, %v73
  %v150 = vcombine.high %v148, %v148
  %v152 = vunpack.c.l.s4 1983009808
  %v153 = vunpack.c.0.s8 %v152
  %v154 = vlaneseq
  %v155 = vshrl.u32 %v154, 7
  %v156 = vsub.s32 %v153, %v155
  %v157 = vrot.slane %v148, %v156
  %v159 = vunpack.c.l.s4 1983009808
  %v160 = vunpack.c.0.s8 %v159
  %v161 = vlaneseq
  %v162 = vshrl.u32 %v161, 7
  %v163 = vsub.s32 %v160, %v162
  %v164 = vrot.slane %v150, %v163
  %v165 = vcombine.high %v157, %v157
  %v166 = vcombine.high %v164, %v164
  %v171 = vsel %vm99, %v157, 0.0
  %v172 = vsel %vm99, %v165, 0.0
  %v173 = vadd.f32 %v171, %v172
  %v174 = vsel %vm99, %v164, 0.0
  %v175 = vadd.f32 %v173, %v174
  %v176 = vsel %vm99, %v166, 0.0
  %v177 = vadd.f32 %v175, %v176
  %178 = vadd.xlane.f32.xlu0 %v177
  %v179 = vpop.xlane.xlu0 %178
  %v180 = vadd.f32 %v147, %v179
  %181 = vst.msk [vmem:[%s7] sm:$0x3] %vm110, %v180
  %v182 = vld [vmem:[%s3] sm:$0x3]
  %v184 = vcombine.high %v73, %v73
  %v186 = vunpack.c.l.s4 1983009808
  %v187 = vunpack.c.0.s8 %v186
  %v188 = vlaneseq
  %v189 = vshrl.u32 %v188, 7
  %v190 = vsub.s32 %v187, %v189
  %v191 = vrot.slane %v73, %v190
  %v193 = vunpack.c.l.s4 1983009808
  %v194 = vunpack.c.0.s8 %v193
  %v195 = vlaneseq
  %v196 = vshrl.u32 %v195, 7
  %v197 = vsub.s32 %v194, %v196
  %v198 = vrot.slane %v184, %v197
  %v199 = vcombine.high %v191, %v191
  %v200 = vcombine.high %v198, %v198
  %v205 = vsel %vm99, %v191, -inf
  %v206 = vsel %vm99, %v199, -inf
  %v207 = vsel %vm99, %v198, -inf
  %v208 = vsel %vm99, %v200, -inf
  %v209 = vmax.f32 %v205, %v206
  %v210 = vmax.f32 %v207, %v208
  %v211 = vmax.f32 %v209, %v210
  %212 = vmax.xlane.f32.xlu0 %v211
  %v213 = vpop.xlane.xlu0 %212
  %v214 = vmax.f32 %v182, %v213
  %v215 = vsub.f32 %v182, %v214
  %v216 = vmul.f32 %v215, 1.442695
  %v217 = vpow.pop %v216
  %219 = vset.pattern.permute.xlu0 0
  %220 = vperm.xlu0 %219, %v214
  %v221 = vpop.permute.xlu0 %220
  %v223 = vunpack.c.l.s4 269488144
  %v224 = vunpack.c.0.s8 %v223
  %v225 = vlaneseq
  %v226 = vshrl.u32 %v225, 7
  %v227 = vsub.s32 %v224, %v226
  %v228 = vrot.slane %v221, %v227
  %v230 = vsub.f32 %v73, %v228
  %v231 = vmul.f32 %v230, 1.442695
  %v232 = vpow.pop %v231
  %v233 = vld [vmem:[%s4] sm:$0x3]
  %v234 = vmul.f32 %v233, %v217
  %v236 = vcombine.high %v232, %v232
  %v238 = vunpack.c.l.s4 1983009808
  %v239 = vunpack.c.0.s8 %v238
  %v240 = vlaneseq
  %v241 = vshrl.u32 %v240, 7
  %v242 = vsub.s32 %v239, %v241
  %v243 = vrot.slane %v232, %v242
  %v245 = vunpack.c.l.s4 1983009808
  %v246 = vunpack.c.0.s8 %v245
  %v247 = vlaneseq
  %v248 = vshrl.u32 %v247, 7
  %v249 = vsub.s32 %v246, %v248
  %v250 = vrot.slane %v236, %v249
  %v251 = vcombine.high %v243, %v243
  %v252 = vcombine.high %v250, %v250
  %v257 = vsel %vm99, %v243, 0.0
  %v258 = vsel %vm99, %v251, 0.0
  %v259 = vadd.f32 %v257, %v258
  %v260 = vsel %vm99, %v250, 0.0
  %v261 = vadd.f32 %v259, %v260
  %v262 = vsel %vm99, %v252, 0.0
  %v263 = vadd.f32 %v261, %v262
  %264 = vadd.xlane.f32.xlu0 %v263
  %v265 = vpop.xlane.xlu0 %264
  %v266 = vadd.f32 %v234, %v265
  %267 = vst.msk [vmem:[%s4] sm:$0x3] %vm110, %v266
  %vm268 = vcmask 7168
  %v270 = vsel %vm268, %v217, 0
  %272 = vmatprep.subr.mxu0 0.0
  %273 = vmatpush1.xpose.msra.mxu0 %v270
  %274 = vmatprep.subr.mxu0 0.0
  %275 = vmatpush1.xpose.msra.mxu0 0.0
  %276 = vmatprep.subr.mxu0 0.0
  %277 = vmatpush1.xpose.msra.mxu0 0.0
  %278 = vmatprep.subr.mxu0 0.0
  %279 = vmatpush1.xpose.msra.mxu0 0.0
  %280 = vmatprep.subr.mxu0 0.0
  %281 = vmatpush1.xpose.msra.mxu0 0.0
  %282 = vmatprep.subr.mxu0 0.0
  %283 = vmatpush1.xpose.msra.mxu0 0.0
  %284 = vmatprep.subr.mxu0 0.0
  %285 = vmatpush1.xpose.msra.mxu0 0.0
  %286 = vmatprep.subr.mxu0 0.0
  %287 = vmatpush1.xpose.msra.mxu0 0.0
  %288 = vmatprep.subr.mxu0 0.0
  %289 = vmatpush1.xpose.msra.mxu0 0.0
  %290 = vmatprep.subr.mxu0 0.0
  %291 = vmatpush1.xpose.msra.mxu0 0.0
  %292 = vmatprep.subr.mxu0 0.0
  %293 = vmatpush1.xpose.msra.mxu0 0.0
  %294 = vmatprep.subr.mxu0 0.0
  %295 = vmatpush1.xpose.msra.mxu0 0.0
  %296 = vmatprep.subr.mxu0 0.0
  %297 = vmatpush1.xpose.msra.mxu0 0.0
  %298 = vmatprep.subr.mxu0 0.0
  %299 = vmatpush1.xpose.msra.mxu0 0.0
  %300 = vmatprep.subr.mxu0 0.0
  %301 = vmatpush1.xpose.msra.mxu0 0.0
  %302 = vmatprep.subr.mxu0 0.0
  %303 = vmatpush1.xpose.msra.mxu0 0.0
  %304 = vmatprep.subr.mxu0 0.0
  %305 = vmatpush1.xpose.msra.mxu0 0.0
  %306 = vmatprep.subr.mxu0 0.0
  %307 = vmatpush1.xpose.msra.mxu0 0.0
  %308 = vmatprep.subr.mxu0 0.0
  %309 = vmatpush1.xpose.msra.mxu0 0.0
  %310 = vmatprep.subr.mxu0 0.0
  %311 = vmatpush1.xpose.msra.mxu0 0.0
  %312 = vmatprep.subr.mxu0 0.0
  %313 = vmatpush1.xpose.msra.mxu0 0.0
  %314 = vmatprep.subr.mxu0 0.0
  %315 = vmatpush1.xpose.msra.mxu0 0.0
  %316 = vmatprep.subr.mxu0 0.0
  %317 = vmatpush1.xpose.msra.mxu0 0.0
  %318 = vmatprep.subr.mxu0 0.0
  %319 = vmatpush1.xpose.msra.mxu0 0.0
  %320 = vmatprep.subr.mxu0 0.0
  %321 = vmatpush1.xpose.msra.mxu0 0.0
  %322 = vmatprep.subr.mxu0 0.0
  %323 = vmatpush1.xpose.msra.mxu0 0.0
  %324 = vmatprep.subr.mxu0 0.0
  %325 = vmatpush1.xpose.msra.mxu0 0.0
  %326 = vmatprep.subr.mxu0 0.0
  %327 = vmatpush1.xpose.msra.mxu0 0.0
  %328 = vmatprep.subr.mxu0 0.0
  %329 = vmatpush1.xpose.msra.mxu0 0.0
  %330 = vmatprep.subr.mxu0 0.0
  %331 = vmatpush1.xpose.msra.mxu0 0.0
  %332 = vmatprep.subr.mxu0 0.0
  %333 = vmatpush1.xpose.msra.mxu0 0.0
  %334 = vmatprep.subr.mxu0 0.0
  %335 = vmatpush1.xpose.msra.mxu0 0.0
  %336 = vmatprep.mubr.f32.mxu0 0.0
  %337 = vmatmul.mubr.f32.gmra.mrb[0].mxu0 %v270
  %v338 = vpop.f32.mrb[0].mxu0
  %v339 = vadd.f32 0.0, %v338
  %v340 = vpop.f32.mrb[0].mxu0
  %341 = vdwg.mxu0
  %342 = vmatprep.subr.mxu0 %v251
  %343 = vmatpush1.xpose.msra.mxu0 %v243
  %344 = vmatprep.subr.mxu0 0.0
  %345 = vmatpush1.xpose.msra.mxu0 0.0
  %346 = vmatprep.subr.mxu0 0.0
  %347 = vmatpush1.xpose.msra.mxu0 0.0
  %348 = vmatprep.subr.mxu0 0.0
  %349 = vmatpush1.xpose.msra.mxu0 0.0
  %350 = vmatprep.subr.mxu0 0.0
  %351 = vmatpush1.xpose.msra.mxu0 0.0
  %352 = vmatprep.subr.mxu0 0.0
  %353 = vmatpush1.xpose.msra.mxu0 0.0
  %354 = vmatprep.subr.mxu0 0.0
  %355 = vmatpush1.xpose.msra.mxu0 0.0
  %356 = vmatprep.subr.mxu0 0.0
  %357 = vmatpush1.xpose.msra.mxu0 0.0
  %358 = vmatprep.subr.mxu0 0.0
  %359 = vmatpush1.xpose.msra.mxu0 0.0
  %360 = vmatprep.subr.mxu0 0.0
  %361 = vmatpush1.xpose.msra.mxu0 0.0
  %362 = vmatprep.subr.mxu0 0.0
  %363 = vmatpush1.xpose.msra.mxu0 0.0
  %364 = vmatprep.subr.mxu0 0.0
  %365 = vmatpush1.xpose.msra.mxu0 0.0
  %366 = vmatprep.subr.mxu0 0.0
  %367 = vmatpush1.xpose.msra.mxu0 0.0
  %368 = vmatprep.subr.mxu0 0.0
  %369 = vmatpush1.xpose.msra.mxu0 0.0
  %370 = vmatprep.subr.mxu0 0.0
  %371 = vmatpush1.xpose.msra.mxu0 0.0
  %372 = vmatprep.subr.mxu0 0.0
  %373 = vmatpush1.xpose.msra.mxu0 0.0
  %374 = vmatprep.subr.mxu0 0.0
  %375 = vmatpush1.xpose.msra.mxu0 0.0
  %376 = vmatprep.subr.mxu0 0.0
  %377 = vmatpush1.xpose.msra.mxu0 0.0
  %378 = vmatprep.subr.mxu0 0.0
  %379 = vmatpush1.xpose.msra.mxu0 0.0
  %380 = vmatprep.subr.mxu0 0.0
  %381 = vmatpush1.xpose.msra.mxu0 0.0
  %382 = vmatprep.subr.mxu0 0.0
  %383 = vmatpush1.xpose.msra.mxu0 0.0
  %384 = vmatprep.subr.mxu0 0.0
  %385 = vmatpush1.xpose.msra.mxu0 0.0
  %386 = vmatprep.subr.mxu0 0.0
  %387 = vmatpush1.xpose.msra.mxu0 0.0
  %388 = vmatprep.subr.mxu0 0.0
  %389 = vmatpush1.xpose.msra.mxu0 0.0
  %390 = vmatprep.subr.mxu0 0.0
  %391 = vmatpush1.xpose.msra.mxu0 0.0
  %392 = vmatprep.subr.mxu0 0.0
  %393 = vmatpush1.xpose.msra.mxu0 0.0
  %394 = vmatprep.subr.mxu0 0.0
  %395 = vmatpush1.xpose.msra.mxu0 0.0
  %396 = vmatprep.subr.mxu0 0.0
  %397 = vmatpush1.xpose.msra.mxu0 0.0
  %398 = vmatprep.subr.mxu0 0.0
  %399 = vmatpush1.xpose.msra.mxu0 0.0
  %400 = vmatprep.subr.mxu0 0.0
  %401 = vmatpush1.xpose.msra.mxu0 0.0
  %402 = vmatprep.subr.mxu0 0.0
  %403 = vmatpush1.xpose.msra.mxu0 0.0
  %404 = vmatprep.subr.mxu0 0.0
  %405 = vmatpush1.xpose.msra.mxu0 0.0
  %406 = vmatprep.mubr.f32.mxu0 %v251
  %407 = vmatmul.mubr.f32.gmra.mrb[0].mxu0 %v243
  %v408 = vpop.f32.mrb[0].mxu0
  %v409 = vadd.f32 0.0, %v408
  %v410 = vpop.f32.mrb[0].mxu0
  %411 = vdwg.mxu0
  %412 = vmatprep.subr.mxu0 %v252
  %413 = vmatpush1.xpose.msra.mxu0 %v250
  %414 = vmatprep.subr.mxu0 0.0
  %415 = vmatpush1.xpose.msra.mxu0 0.0
  %416 = vmatprep.subr.mxu0 0.0
  %417 = vmatpush1.xpose.msra.mxu0 0.0
  %418 = vmatprep.subr.mxu0 0.0
  %419 = vmatpush1.xpose.msra.mxu0 0.0
  %420 = vmatprep.subr.mxu0 0.0
  %421 = vmatpush1.xpose.msra.mxu0 0.0
  %422 = vmatprep.subr.mxu0 0.0
  %423 = vmatpush1.xpose.msra.mxu0 0.0
  %424 = vmatprep.subr.mxu0 0.0
  %425 = vmatpush1.xpose.msra.mxu0 0.0
  %426 = vmatprep.subr.mxu0 0.0
  %427 = vmatpush1.xpose.msra.mxu0 0.0
  %428 = vmatprep.subr.mxu0 0.0
  %429 = vmatpush1.xpose.msra.mxu0 0.0
  %430 = vmatprep.subr.mxu0 0.0
  %431 = vmatpush1.xpose.msra.mxu0 0.0
  %432 = vmatprep.subr.mxu0 0.0
  %433 = vmatpush1.xpose.msra.mxu0 0.0
  %434 = vmatprep.subr.mxu0 0.0
  %435 = vmatpush1.xpose.msra.mxu0 0.0
  %436 = vmatprep.subr.mxu0 0.0
  %437 = vmatpush1.xpose.msra.mxu0 0.0
  %438 = vmatprep.subr.mxu0 0.0
  %439 = vmatpush1.xpose.msra.mxu0 0.0
  %440 = vmatprep.subr.mxu0 0.0
  %441 = vmatpush1.xpose.msra.mxu0 0.0
  %442 = vmatprep.subr.mxu0 0.0
  %443 = vmatpush1.xpose.msra.mxu0 0.0
  %444 = vmatprep.subr.mxu0 0.0
  %445 = vmatpush1.xpose.msra.mxu0 0.0
  %446 = vmatprep.subr.mxu0 0.0
  %447 = vmatpush1.xpose.msra.mxu0 0.0
  %448 = vmatprep.subr.mxu0 0.0
  %449 = vmatpush1.xpose.msra.mxu0 0.0
  %450 = vmatprep.subr.mxu0 0.0
  %451 = vmatpush1.xpose.msra.mxu0 0.0
  %452 = vmatprep.subr.mxu0 0.0
  %453 = vmatpush1.xpose.msra.mxu0 0.0
  %454 = vmatprep.subr.mxu0 0.0
  %455 = vmatpush1.xpose.msra.mxu0 0.0
  %456 = vmatprep.subr.mxu0 0.0
  %457 = vmatpush1.xpose.msra.mxu0 0.0
  %458 = vmatprep.subr.mxu0 0.0
  %459 = vmatpush1.xpose.msra.mxu0 0.0
  %460 = vmatprep.subr.mxu0 0.0
  %461 = vmatpush1.xpose.msra.mxu0 0.0
  %462 = vmatprep.subr.mxu0 0.0
  %463 = vmatpush1.xpose.msra.mxu0 0.0
  %464 = vmatprep.subr.mxu0 0.0
  %465 = vmatpush1.xpose.msra.mxu0 0.0
  %466 = vmatprep.subr.mxu0 0.0
  %467 = vmatpush1.xpose.msra.mxu0 0.0
  %468 = vmatprep.subr.mxu0 0.0
  %469 = vmatpush1.xpose.msra.mxu0 0.0
  %470 = vmatprep.subr.mxu0 0.0
  %471 = vmatpush1.xpose.msra.mxu0 0.0
  %472 = vmatprep.subr.mxu0 0.0
  %473 = vmatpush1.xpose.msra.mxu0 0.0
  %474 = vmatprep.subr.mxu0 0.0
  %475 = vmatpush1.xpose.msra.mxu0 0.0
  %476 = vmatprep.mubr.f32.mxu0 %v252
  %477 = vmatmul.mubr.f32.gmra.mrb[0].mxu0 %v250
  %v478 = vpop.f32.mrb[0].mxu0
  %v479 = vadd.f32 %v409, %v478
  %v480 = vpop.f32.mrb[0].mxu0
  %481 = vdwg.mxu0
  %v482 = vld [vmem:[%s2] sm:$0x3]
  %v483 = vmul.f32 %v482, %v339
  %v484 = vadd.f32 %v483, %v479
  %vm485 = vcmask 9216
  %486 = vst.msk [vmem:[%s2] sm:$0x3] %vm485, %v484
  %487 = vst.msk [vmem:[%s3] sm:$0x3] %vm110, %v214
  // Predicated region
  $region14: #{revisit_rd_loss.8} parent=0 // pred_check
    _
  $region15: #{revisit_rd_loss.8} parent=0 // pred_check_branch
    %489 = sbr.rel (0) target = $region17
  $region16: #{revisit_rd_loss.8} parent=0 // pred_region
    _
  $region17: #{revisit_rd_loss.8} parent=0 // pred_fallthru
    _
  // Predicated region
  $region18: #{revisit_rd_loss.8} parent=0 // pred_check
    _
  $region19: #{revisit_rd_loss.8} parent=0 // pred_check_branch
    %491 = sbr.rel (0) target = $region21
  $region20: #{revisit_rd_loss.8} parent=0 // pred_region
    _
  $region21: #{revisit_rd_loss.8} parent=0 // pred_fallthru
    _
  // Predicated region
  $region22: #{revisit_rd_loss.8} parent=0 // pred_check
    _
  $region23: #{revisit_rd_loss.8} parent=0 // pred_check_branch
    %493 = sbr.rel (0) target = $region25
  $region24: #{revisit_rd_loss.8} parent=0 // pred_region
    _
  $region25: #{revisit_rd_loss.8} parent=0 // pred_fallthru
    _
  // Predicated region
  $region26: #{revisit_rd_loss.8} parent=0 // pred_check
    _
  $region27: #{revisit_rd_loss.8} parent=0 // pred_check_branch
    %495 = sbr.rel (0) target = $region29
  $region28: #{revisit_rd_loss.8} parent=0 // pred_region
    _
  $region29: #{revisit_rd_loss.8} parent=0 // pred_fallthru
    _
  // Predicated region
  $region30: #{revisit_rd_loss.8} parent=0 // pred_check
    _
  $region31: #{revisit_rd_loss.8} parent=0 // pred_check_branch
    %497 = sbr.rel (0) target = $region33
  $region32: #{revisit_rd_loss.8} parent=0 // pred_region
    _
  $region33: #{revisit_rd_loss.8} parent=0 // pred_fallthru
    _
  // Predicated region
  $region34: #{revisit_rd_loss.8} parent=0 // pred_check
    _
  $region35: #{revisit_rd_loss.8} parent=0 // pred_check_branch
    %499 = sbr.rel (0) target = $region37
  $region36: #{revisit_rd_loss.8} parent=0 // pred_region
    _
  $region37: #{revisit_rd_loss.8} parent=0 // pred_fallthru
    _
  // Predicated region
  $region38: #{revisit_rd_loss.8} parent=0 // pred_check
    _
  $region39: #{revisit_rd_loss.8} parent=0 // pred_check_branch
    %501 = sbr.rel (0) target = $region41
  $region40: #{revisit_rd_loss.8} parent=0 // pred_region
    _
  $region41: #{revisit_rd_loss.8} parent=0 // pred_fallthru
    _
  // Predicated region
  $region42: #{revisit_rd_loss.8} parent=0 // pred_check
    _
  $region43: #{revisit_rd_loss.8} parent=0 // pred_check_branch
    %503 = sbr.rel (0) target = $region45
  $region44: #{revisit_rd_loss.8} parent=0 // pred_region
    _
  $region45: #{revisit_rd_loss.8} parent=0 // pred_fallthru
    _
  // Predicated region
  $region46: #{revisit_rd_loss.8} parent=0 // pred_check
    _
  $region47: #{revisit_rd_loss.8} parent=0 // pred_check_branch
    %505 = sbr.rel (0) target = $region49
  $region48: #{revisit_rd_loss.8} parent=0 // pred_region
    _
  $region49: #{revisit_rd_loss.8} parent=0 // pred_fallthru
    _
  // Predicated region
  $region50: #{revisit_rd_loss.8} parent=0 // pred_check
    _
  $region51: #{revisit_rd_loss.8} parent=0 // pred_check_branch
    %507 = sbr.rel (0) target = $region53
  $region52: #{revisit_rd_loss.8} parent=0 // pred_region
    _
  $region53: #{revisit_rd_loss.8} parent=0 // pred_fallthru
    _
  // Predicated region
  $region54: #{revisit_rd_loss.8} parent=0 // pred_check
    _
  $region55: #{revisit_rd_loss.8} parent=0 // pred_check_branch
    %509 = sbr.rel (0) target = $region57
  $region56: #{revisit_rd_loss.8} parent=0 // pred_region
    _
  $region57: #{revisit_rd_loss.8} parent=0 // pred_fallthru
    _
  // Predicated region
  $region58: #{revisit_rd_loss.8} parent=0 // pred_check
    _
  $region59: #{revisit_rd_loss.8} parent=0 // pred_check_branch
    %511 = sbr.rel (0) target = $region61
  $region60: #{revisit_rd_loss.8} parent=0 // pred_region
    _
  $region61: #{revisit_rd_loss.8} parent=0 // pred_fallthru
    _

// kernel: revisit_rd_loss.10
$region0: #{revisit_rd_loss.10}
  #allocation0 [shape = 'u32[]', space=smem, size = 0x4, offset = 0x4, fixed_abs, tag = 'smem constant byte address 0x4 - core index']
  #allocation1 [shape = 'u32[144,128]{1,0:T(1,128)}', space=vmem, size = 0x12000, scoped, tag = 'internal scratch']
  %s0 = inlined_call_operand.vmem [shape: f32[80], index: 0, kind: input, shape index: {}]
  %s1 = inlined_call_operand.vmem [shape: f32[3,2,2], index: 1, kind: input, shape index: {}]
  %s2 = inlined_call_operand.vmem [shape: f32[3,2,2], index: 2, kind: input, shape index: {}]
  %s3 = inlined_call_operand.hbm [shape: f32[1,1], index: 3, kind: output, shape index: {}]
  %s4 = sld [smem:[#allocation0]]
  $region33: #{revisit_rd_loss.10} parent=0
    _
  %s6 = ssub.s32 1, %s4
  %s7 = scalar_select 0, %s6, %s4
  $region1: #{revisit_rd_loss.10} parent=0
    #allocation2 [shape = 'u8[512]{0}', space=smem, size = 0x200, scoped, tag = 'input window, operand 0, single buffered']
    #allocation3 [shape = 's32[1]{0}', space=sflag, size = 0x4, scoped, tag = 'scoped memory for revisit_rd_loss.10']
    #allocation4 [shape = 's32[1]{0}', space=sflag, size = 0x4, scoped, tag = 'scoped memory for revisit_rd_loss.10']
    #allocation5 [shape = 'u8[512]{0}', space=smem, size = 0x200, scoped, tag = 'output window, operand 0, single buffered']
    %8 = vsyncpa [#allocation4], 0
    %9 = vsyncpa [#allocation3], 0
    // Predicated region
    $region2: #{revisit_rd_loss.10} parent=1 // pred_check
      _
    $region3: #{revisit_rd_loss.10} parent=1 // pred_check_branch
      %11 = sbr.rel (0) target = $region5
    $region4: #{revisit_rd_loss.10} parent=1 // pred_region
      %s13 = ssub.s32 16, 16
      %14 = vsyncadd [#allocation4], %s13
      %s16 = sshll.u32 %s0, 4
      %s17 = int_to_ptr.vmem [resolvable:$true] %s16
      %19 = dma.vmem_to_smem %s17, 16, [#allocation2], [#allocation4]
    $region5: #{revisit_rd_loss.10} parent=1 // pred_fallthru
      _
    // Predicated region
    $region6: #{revisit_rd_loss.10} parent=1 // pred_check
      _
    $region7: #{revisit_rd_loss.10} parent=1 // pred_check_branch
      %21 = sbr.rel (0) target = $region9
    $region8: #{revisit_rd_loss.10} parent=1 // pred_region
      _
    $region9: #{revisit_rd_loss.10} parent=1 // pred_fallthru
      _
    // Predicated region
    $region10: #{revisit_rd_loss.10} parent=1 // pred_check
      _
    $region11: #{revisit_rd_loss.10} parent=1 // pred_check_branch
      %23 = sbr.rel (0) target = $region13
    $region12: #{revisit_rd_loss.10} parent=1 // pred_region
      _
    $region13: #{revisit_rd_loss.10} parent=1 // pred_fallthru
      _
    // Predicated region
    $region14: #{revisit_rd_loss.10} parent=1 // pred_check
      _
    $region15: #{revisit_rd_loss.10} parent=1 // pred_check_branch
      %25 = sbr.rel (0) target = $region17
    $region16: #{revisit_rd_loss.10} parent=1 // pred_region
      %26 = dma.done [#allocation4], 16
    $region17: #{revisit_rd_loss.10} parent=1 // pred_fallthru
      _
    %27 = sfence
    %v28 = vld [vmem:[%s1] sm:$0x3]
    %v29 = vld [vmem:[%s1 + $0x2] sm:$0x3]
    %v30 = vld [vmem:[%s1 + $0x4] sm:$0x3]
    %v31 = vld [vmem:[%s2] sm:$0x3]
    %v32 = vld [vmem:[%s2 + $0x2] sm:$0x3]
    %v33 = vld [vmem:[%s2 + $0x4] sm:$0x3]
    loop: start=0, step=1, limit=80
    $region18: #{revisit_rd_loss.10} parent=1 // loop_pre_header
      _
    $region19: #{revisit_rd_loss.10} parent=1 // loop_header
      %s35 = sphi 0, %s39
      %p36 = scmp.ge.s32.totalorder %s35, 80
      %v40 = vphi 0.0, %v183
      %v41 = vphi 0.0, %v184
      %v42 = vphi 0.0, %v185
      %v43 = vphi 0.0, %v189
      %v44 = vphi 0.0, %v190
      %v45 = vphi 0.0, %v191
      %v46 = vphi 0.0, %v237
      %v47 = vphi 0.0, %v238
      %v48 = vphi 0.0, %v239
      %v49 = vphi 0.0, %v309
      %v50 = vphi 0.0, %v310
      %v51 = vphi 0.0, %v311
    $region20: #{revisit_rd_loss.10} parent=1 // loop_header_branch
      %38 = sbr.rel (%p36) target = $region24
    $region21: #{revisit_rd_loss.10} parent=1 // loop_body
      %s52 = sld [smem:[#allocation2 + %s35]]
      %v53 = vstv %s52
      %v54 = vrcp.pop %v53
      %s55 = vtos %v54
      %s56 = ssub.f32 0.0, %s52
      %v57 = vsub.f32 %v43, %v28
      %v58 = vsub.f32 %v44, %v29
      %v59 = vsub.f32 %v45, %v30
      %v60 = vstv %s55
      %v61 = vmul.f32 %v57, %v60
      %v62 = vmul.f32 %v58, %v60
      %v63 = vmul.f32 %v59, %v60
      %v64 = vadd.f32 %v61, -0.6931472
      %v65 = vadd.f32 %v62, -0.6931472
      %v66 = vadd.f32 %v63, -0.6931472
      %vm67 = vcmask 9216
      %v68 = vsel %vm67, %v64, -inf
      %69 = vmax.xlane.f32.xlu0 %v68
      %v70 = vpop.xlane.xlu0 %69
      %v71 = vsel %vm67, %v65, -inf
      %72 = vmax.xlane.f32.xlu0 %v71
      %v73 = vpop.xlane.xlu0 %72
      %v74 = vsel %vm67, %v66, -inf
      %75 = vmax.xlane.f32.xlu0 %v74
      %v76 = vpop.xlane.xlu0 %75
      %v77 = vsub.f32 %v64, %v70
      %v78 = vsub.f32 %v65, %v73
      %v79 = vsub.f32 %v66, %v76
      %v80 = vmul.f32 %v77, 1.442695
      %v81 = vpow.pop %v80
      %v82 = vmul.f32 %v78, 1.442695
      %v83 = vpow.pop %v82
      %v84 = vmul.f32 %v79, 1.442695
      %v85 = vpow.pop %v84
      %v86 = vsel %vm67, %v81, 0.0
      %87 = vadd.xlane.f32.xlu0 %v86
      %v88 = vpop.xlane.xlu0 %87
      %v89 = vsel %vm67, %v83, 0.0
      %90 = vadd.xlane.f32.xlu0 %v89
      %v91 = vpop.xlane.xlu0 %90
      %v92 = vsel %vm67, %v85, 0.0
      %93 = vadd.xlane.f32.xlu0 %v92
      %v94 = vpop.xlane.xlu0 %93
      %v95 = vlog2.pop %v88
      %v96 = vmul.f32 %v95, 0.6931472
      %v97 = vlog2.pop %v91
      %v98 = vmul.f32 %v97, 0.6931472
      %v99 = vlog2.pop %v94
      %v100 = vmul.f32 %v99, 0.6931472
      %v101 = vadd.f32 %v70, %v96
      %v102 = vadd.f32 %v73, %v98
      %v103 = vadd.f32 %v76, %v100
      %v104 = vstv %s56
      %v105 = vmul.f32 %v104, %v101
      %v106 = vmul.f32 %v104, %v102
      %v107 = vmul.f32 %v104, %v103
      %v108 = vsub.f32 %v40, %v28
      %v109 = vsub.f32 %v41, %v29
      %v110 = vsub.f32 %v42, %v30
      %v111 = vmul.f32 %v108, %v60
      %v112 = vmul.f32 %v109, %v60
      %v113 = vmul.f32 %v110, %v60
      %v114 = vadd.f32 %v111, -0.6931472
      %v115 = vadd.f32 %v112, -0.6931472
      %v116 = vadd.f32 %v113, -0.6931472
      %v117 = vsel %vm67, %v114, -inf
      %v118 = vrot.slane %v117, 4
      %v119 = vmax.f32 %v117, %v118
      %v120 = vrot.slane %v119, 2
      %v121 = vmax.f32 %v119, %v120
      %v122 = vrot.slane %v121, 1
      %v123 = vmax.f32 %v121, %v122
      %v124 = vsel %vm67, %v115, -inf
      %v125 = vrot.slane %v124, 4
      %v126 = vmax.f32 %v124, %v125
      %v127 = vrot.slane %v126, 2
      %v128 = vmax.f32 %v126, %v127
      %v129 = vrot.slane %v128, 1
      %v130 = vmax.f32 %v128, %v129
      %v131 = vsel %vm67, %v116, -inf
      %v132 = vrot.slane %v131, 4
      %v133 = vmax.f32 %v131, %v132
      %v134 = vrot.slane %v133, 2
      %v135 = vmax.f32 %v133, %v134
      %v136 = vrot.slane %v135, 1
      %v137 = vmax.f32 %v135, %v136
      %v138 = vsub.f32 %v114, %v123
      %v139 = vsub.f32 %v115, %v130
      %v140 = vsub.f32 %v116, %v137
      %v141 = vmul.f32 %v138, 1.442695
      %v142 = vpow.pop %v141
      %v143 = vmul.f32 %v139, 1.442695
      %v144 = vpow.pop %v143
      %v145 = vmul.f32 %v140, 1.442695
      %v146 = vpow.pop %v145
      %v147 = vsel %vm67, %v142, 0.0
      %v148 = vrot.slane %v147, 4
      %v149 = vadd.f32 %v147, %v148
      %v150 = vrot.slane %v149, 2
      %v151 = vadd.f32 %v149, %v150
      %v152 = vrot.slane %v151, 1
      %v153 = vadd.f32 %v151, %v152
      %v154 = vsel %vm67, %v144, 0.0
      %v155 = vrot.slane %v154, 4
      %v156 = vadd.f32 %v154, %v155
      %v157 = vrot.slane %v156, 2
      %v158 = vadd.f32 %v156, %v157
      %v159 = vrot.slane %v158, 1
      %v160 = vadd.f32 %v158, %v159
      %v161 = vsel %vm67, %v146, 0.0
      %v162 = vrot.slane %v161, 4
      %v163 = vadd.f32 %v161, %v162
      %v164 = vrot.slane %v163, 2
      %v165 = vadd.f32 %v163, %v164
      %v166 = vrot.slane %v165, 1
      %v167 = vadd.f32 %v165, %v166
      %v168 = vlog2.pop %v153
      %v169 = vmul.f32 %v168, 0.6931472
      %v170 = vlog2.pop %v160
      %v171 = vmul.f32 %v170, 0.6931472
      %v172 = vlog2.pop %v167
      %v173 = vmul.f32 %v172, 0.6931472
      %v174 = vadd.f32 %v123, %v169
      %v175 = vadd.f32 %v130, %v171
      %v176 = vadd.f32 %v137, %v173
      %v177 = vmul.f32 %v104, %v174
      %v178 = vmul.f32 %v104, %v175
      %v179 = vmul.f32 %v104, %v176
      %v180 = vadd.f32 %v40, %v105
      %v181 = vadd.f32 %v41, %v106
      %v182 = vadd.f32 %v42, %v107
      %v183 = vmul.f32 %v180, 0.5
      %v184 = vmul.f32 %v181, 0.5
      %v185 = vmul.f32 %v182, 0.5
      %v186 = vadd.f32 %v43, %v177
      %v187 = vadd.f32 %v44, %v178
      %v188 = vadd.f32 %v45, %v179
      %v189 = vmul.f32 %v186, 0.5
      %v190 = vmul.f32 %v187, 0.5
      %v191 = vmul.f32 %v188, 0.5
      %v192 = vsub.f32 %v49, %v31
      %v193 = vsub.f32 %v50, %v32
      %v194 = vsub.f32 %v51, %v33
      %v195 = vmul.f32 %v192, %v60
      %v196 = vmul.f32 %v193, %v60
      %v197 = vmul.f32 %v194, %v60
      %v198 = vadd.f32 %v195, -0.6931472
      %v199 = vadd.f32 %v196, -0.6931472
      %v200 = vadd.f32 %v197, -0.6931472
      %v201 = vsel %vm67, %v198, -inf
      %202 = vmax.xlane.f32.xlu0 %v201
      %v203 = vpop.xlane.xlu0 %202
      %v204 = vsel %vm67, %v199, -inf
      %205 = vmax.xlane.f32.xlu0 %v204
      %v206 = vpop.xlane.xlu0 %205
      %v207 = vsel %vm67, %v200, -inf
      %208 = vmax.xlane.f32.xlu0 %v207
      %v209 = vpop.xlane.xlu0 %208
      %v210 = vsub.f32 %v198, %v203
      %v211 = vsub.f32 %v199, %v206
      %v212 = vsub.f32 %v200, %v209
      %v213 = vmul.f32 %v210, 1.442695
      %v214 = vpow.pop %v213
      %v215 = vmul.f32 %v211, 1.442695
      %v216 = vpow.pop %v215
      %v217 = vmul.f32 %v212, 1.442695
      %v218 = vpow.pop %v217
      %v219 = vsel %vm67, %v214, 0.0
      %220 = vadd.xlane.f32.xlu0 %v219
      %v221 = vpop.xlane.xlu0 %220
      %v222 = vsel %vm67, %v216, 0.0
      %223 = vadd.xlane.f32.xlu0 %v222
      %v224 = vpop.xlane.xlu0 %223
      %v225 = vsel %vm67, %v218, 0.0
      %226 = vadd.xlane.f32.xlu0 %v225
      %v227 = vpop.xlane.xlu0 %226
      %v228 = vlog2.pop %v221
      %v229 = vmul.f32 %v228, 0.6931472
      %v230 = vlog2.pop %v224
      %v231 = vmul.f32 %v230, 0.6931472
      %v232 = vlog2.pop %v227
      %v233 = vmul.f32 %v232, 0.6931472
      %v234 = vadd.f32 %v203, %v229
      %v235 = vadd.f32 %v206, %v231
      %v236 = vadd.f32 %v209, %v233
      %v237 = vmul.f32 %v104, %v234
      %v238 = vmul.f32 %v104, %v235
      %v239 = vmul.f32 %v104, %v236
      %v240 = vsub.f32 %v237, %v31
      %v241 = vsub.f32 %v238, %v32
      %v242 = vsub.f32 %v239, %v33
      %v243 = vmul.f32 %v240, %v60
      %v244 = vmul.f32 %v241, %v60
      %v245 = vmul.f32 %v242, %v60
      %v246 = vadd.f32 %v243, -0.6931472
      %v247 = vadd.f32 %v244, -0.6931472
      %v248 = vadd.f32 %v245, -0.6931472
      %v249 = vsel %vm67, %v246, -inf
      %v250 = vrot.slane %v249, 4
      %v251 = vmax.f32 %v249, %v250
      %v252 = vrot.slane %v251, 2
      %v253 = vmax.f32 %v251, %v252
      %v254 = vrot.slane %v253, 1
      %v255 = vmax.f32 %v253, %v254
      %v256 = vsel %vm67, %v247, -inf
      %v257 = vrot.slane %v256, 4
      %v258 = vmax.f32 %v256, %v257
      %v259 = vrot.slane %v258, 2
      %v260 = vmax.f32 %v258, %v259
      %v261 = vrot.slane %v260, 1
      %v262 = vmax.f32 %v260, %v261
      %v263 = vsel %vm67, %v248, -inf
      %v264 = vrot.slane %v263, 4
      %v265 = vmax.f32 %v263, %v264
      %v266 = vrot.slane %v265, 2
      %v267 = vmax.f32 %v265, %v266
      %v268 = vrot.slane %v267, 1
      %v269 = vmax.f32 %v267, %v268
      %v270 = vsub.f32 %v246, %v255
      %v271 = vsub.f32 %v247, %v262
      %v272 = vsub.f32 %v248, %v269
      %v273 = vmul.f32 %v270, 1.442695
      %v274 = vpow.pop %v273
      %v275 = vmul.f32 %v271, 1.442695
      %v276 = vpow.pop %v275
      %v277 = vmul.f32 %v272, 1.442695
      %v278 = vpow.pop %v277
      %v279 = vsel %vm67, %v274, 0.0
      %v280 = vrot.slane %v279, 4
      %v281 = vadd.f32 %v279, %v280
      %v282 = vrot.slane %v281, 2
      %v283 = vadd.f32 %v281, %v282
      %v284 = vrot.slane %v283, 1
      %v285 = vadd.f32 %v283, %v284
      %v286 = vsel %vm67, %v276, 0.0
      %v287 = vrot.slane %v286, 4
      %v288 = vadd.f32 %v286, %v287
      %v289 = vrot.slane %v288, 2
      %v290 = vadd.f32 %v288, %v289
      %v291 = vrot.slane %v290, 1
      %v292 = vadd.f32 %v290, %v291
      %v293 = vsel %vm67, %v278, 0.0
      %v294 = vrot.slane %v293, 4
      %v295 = vadd.f32 %v293, %v294
      %v296 = vrot.slane %v295, 2
      %v297 = vadd.f32 %v295, %v296
      %v298 = vrot.slane %v297, 1
      %v299 = vadd.f32 %v297, %v298
      %v300 = vlog2.pop %v285
      %v301 = vmul.f32 %v300, 0.6931472
      %v302 = vlog2.pop %v292
      %v303 = vmul.f32 %v302, 0.6931472
      %v304 = vlog2.pop %v299
      %v305 = vmul.f32 %v304, 0.6931472
      %v306 = vadd.f32 %v255, %v301
      %v307 = vadd.f32 %v262, %v303
      %v308 = vadd.f32 %v269, %v305
      %v309 = vmul.f32 %v104, %v306
      %v310 = vmul.f32 %v104, %v307
      %v311 = vmul.f32 %v104, %v308
    $region22: #{revisit_rd_loss.10} parent=1 // loop_footer
      %s39 = sadd.s32 1, %s35
    $region23: #{revisit_rd_loss.10} parent=1 // loop_footer_branch
      %34 = sbr.rel target = $region19
    $region24: #{revisit_rd_loss.10} parent=1 // loop_exit
      _
    %vm312 = vcmask 1024
    %v313 = vsel %vm312, %v46, 0.0
    %v314 = vsel %vm312, %v47, 0.0
    %v315 = vadd.f32 %v313, %v314
    %v316 = vsel %vm312, %v48, 0.0
    %v317 = vadd.f32 %v315, %v316
    %318 = vadd.xlane.f32.xlu0 %v317
    %v319 = vpop.xlane.xlu0 %318
    %v320 = vrot.slane %v319, 4
    %v321 = vadd.f32 %v319, %v320
    %v322 = vrot.slane %v321, 2
    %v323 = vadd.f32 %v321, %v322
    %v324 = vrot.slane %v323, 1
    %v325 = vadd.f32 %v323, %v324
    %s326 = vtos %v325
    %vm327 = vcmask 8192
    %v328 = vsel %vm327, %v49, 0.0
    %v329 = vsel %vm327, %v50, 0.0
    %v330 = vadd.f32 %v328, %v329
    %v331 = vsel %vm327, %v51, 0.0
    %v332 = vadd.f32 %v330, %v331
    %333 = vadd.xlane.f32.xlu0 %v332
    %v334 = vpop.xlane.xlu0 %333
    %v335 = vrot.slane %v334, 4
    %v336 = vadd.f32 %v334, %v335
    %v337 = vrot.slane %v336, 2
    %v338 = vadd.f32 %v336, %v337
    %v339 = vrot.slane %v338, 1
    %v340 = vadd.f32 %v338, %v339
    %s341 = vtos %v340
    %s342 = sadd.f32 %s326, %s341
    %v343 = vsel %vm312, %v40, 0.0
    %v344 = vsel %vm312, %v41, 0.0
    %v345 = vadd.f32 %v343, %v344
    %v346 = vsel %vm312, %v42, 0.0
    %v347 = vadd.f32 %v345, %v346
    %348 = vadd.xlane.f32.xlu0 %v347
    %v349 = vpop.xlane.xlu0 %348
    %v350 = vrot.slane %v349, 4
    %v351 = vadd.f32 %v349, %v350
    %v352 = vrot.slane %v351, 2
    %v353 = vadd.f32 %v351, %v352
    %v354 = vrot.slane %v353, 1
    %v355 = vadd.f32 %v353, %v354
    %s356 = vtos %v355
    %s357 = smul.f32 %s356, 2.0
    %s358 = ssub.f32 %s342, %s357
    %v359 = vrcp.pop 2.0
    %s360 = vtos %v359
    %s361 = smul.f32 %s358, %s360
    %s362 = scalar_lea.smem [#allocation5], 0
    %363 = sst [smem:[%s362]] %s361
    // Predicated region
    $region25: #{revisit_rd_loss.10} parent=1 // pred_check
      _
    $region26: #{revisit_rd_loss.10} parent=1 // pred_check_branch
      %365 = sbr.rel (0) target = $region28
    $region27: #{revisit_rd_loss.10} parent=1 // pred_region
      %s367 = ssub.s32 16, 16
      %368 = vsyncadd [#allocation3], %s367
      %371 = dma.smem_to_hbm [#allocation5], 16, %s3, [#allocation3]
    $region28: #{revisit_rd_loss.10} parent=1 // pred_fallthru
      _
    // Predicated region
    $region29: #{revisit_rd_loss.10} parent=1 // pred_check
      _
    $region30: #{revisit_rd_loss.10} parent=1 // pred_check_branch
      %373 = sbr.rel (0) target = $region32
    $region31: #{revisit_rd_loss.10} parent=1 // pred_region
      %374 = dma.done [#allocation3], 16
    $region32: #{revisit_rd_loss.10} parent=1 // pred_fallthru
      _
    %375 = sfence
    %376 = vsyncpa [#allocation3], 1
    %377 = vsyncpa [#allocation4], 1

// kernel: revisit_rd_loss.7
$region0: #{revisit_rd_loss.7}
  #allocation0 [shape = 'u32[]', space=smem, size = 0x4, offset = 0x4, fixed_abs, tag = 'smem constant byte address 0x4 - core index']
  #allocation1 [shape = 'u32[144,128]{1,0:T(1,128)}', space=vmem, size = 0x12000, scoped, tag = 'internal scratch']
  %s0 = inlined_call_operand.vmem [shape: f32[2,1024], index: 0, kind: input, shape index: {}]
  %s1 = inlined_call_operand.vmem [shape: f32[2,1024], index: 1, kind: input, shape index: {}]
  %s2 = inlined_call_operand.vmem [shape: f32[1,2,2], index: 2, kind: output, shape index: {0}]
  %s3 = inlined_call_operand.vmem [shape: f32[1,2,1], index: 3, kind: output, shape index: {1}]
  %s4 = inlined_call_operand.vmem [shape: f32[1,2,1], index: 4, kind: output, shape index: {2}]
  %s5 = inlined_call_operand.vmem [shape: f32[1,2,1], index: 5, kind: output, shape index: {3}]
  %s6 = inlined_call_operand.vmem [shape: f32[1,2,1], index: 6, kind: output, shape index: {4}]
  %s7 = inlined_call_operand.vmem [shape: f32[1,2,1], index: 7, kind: output, shape index: {5}]
  %8 = xla_tuple %s2, %s3, %s4, %s5, %s6, %s7
  %s9 = sld [smem:[#allocation0]]
  $region62: #{revisit_rd_loss.7} parent=0
    _
  %s11 = ssub.s32 1, %s9
  %s12 = scalar_select 0, %s11, %s9
  // Predicated region
  $region2: #{revisit_rd_loss.7} parent=0 // pred_check
    _
  $region3: #{revisit_rd_loss.7} parent=0 // pred_check_branch
    %14 = sbr.rel (0) target = $region5
  $region4: #{revisit_rd_loss.7} parent=0 // pred_region
    %s15 = sadd.s32 0, 0
    %s16 = smul.u32 8, %s15
    %p17 = scmp.lt.s32.totalorder %s16, 7
    %s18 = scalar_select %p17, %s16, 7
    %s19 = smul.addr %s18, 2
    %s20 = scalar_lea.vmem %s0, %s19
    %s21 = sadd.s32 0, 0
    %s22 = smul.u32 8, %s21
  $region5: #{revisit_rd_loss.7} parent=0 // pred_fallthru
    _
  // Predicated region
  $region6: #{revisit_rd_loss.7} parent=0 // pred_check
    _
  $region7: #{revisit_rd_loss.7} parent=0 // pred_check_branch
    %24 = sbr.rel (0) target = $region9
  $region8: #{revisit_rd_loss.7} parent=0 // pred_region
    %s25 = sadd.s32 0, 0
    %s26 = smul.u32 8, %s25
    %p27 = scmp.lt.s32.totalorder %s26, 7
    %s28 = scalar_select %p27, %s26, 7
    %s29 = smul.addr %s28, 2
    %s30 = scalar_lea.vmem %s1, %s29
    %s31 = sadd.s32 0, 0
    %s32 = smul.u32 8, %s31
  $region9: #{revisit_rd_loss.7} parent=0 // pred_fallthru
    _
  %s33 = sadd.s32 0, 0
  %s34 = smul.u32 8, %s33
  %p35 = scmp.lt.s32.totalorder %s34, 7
  %s36 = scalar_select %p35, %s34, 7
  %s37 = smul.addr %s36, 2
  %s38 = scalar_lea.vmem %s0, %s37
  %s39 = sadd.s32 0, 0
  %s40 = smul.u32 8, %s39
  %p41 = scmp.lt.s32.totalorder %s40, 7
  %s42 = scalar_select %p41, %s40, 7
  %s43 = smul.addr %s42, 2
  %s44 = scalar_lea.vmem %s1, %s43
  %s45 = sadd.s32 0, 0
  %s46 = smul.u32 8, %s45
  %p47 = scmp.lt.s32.totalorder %s46, 7
  %s48 = scalar_select %p47, %s46, 7
  %s49 = smul.addr %s48, 2
  %s50 = scalar_lea.vmem %s0, %s49
  %s51 = sadd.s32 0, 0
  %s52 = smul.u32 8, %s51
  %s53 = sadd.s32 0, 0
  %s54 = smul.u32 8, %s53
  %p55 = scmp.lt.s32.totalorder %s54, 7
  %s56 = scalar_select %p55, %s54, 7
  %s57 = smul.addr %s56, 2
  %s58 = scalar_lea.vmem %s1, %s57
  %s59 = sadd.s32 0, 0
  %s60 = smul.u32 8, %s59
  %p61 = scmp.eq.s32.totalorder 0, 0
  // Predicated region
  $region10: #{revisit_rd_loss.7} parent=0 // pred_check
    %p62 = pneg %p61
  $region11: #{revisit_rd_loss.7} parent=0 // pred_check_branch
    %64 = sbr.rel (%p62) target = $region13
  $region12: #{revisit_rd_loss.7} parent=0 // pred_region
    %vm65 = vcmask 9216
    %66 = vst.msk [vmem:[%s2] sm:$0x3] %vm65, 0.0
    %vm67 = vcmask 1024
    %68 = vst.msk [vmem:[%s3] sm:$0x3] %vm67, -inf
    %69 = vst.msk [vmem:[%s4] sm:$0x3] %vm67, 0.0
    %70 = vst.msk [vmem:[%s5] sm:$0x3] %vm67, 0.0
    %71 = vst.msk [vmem:[%s6] sm:$0x3] %vm67, 0.0
    %72 = vst.msk [vmem:[%s7] sm:$0x3] %vm67, 0.0
  $region13: #{revisit_rd_loss.7} parent=0 // pred_fallthru
    _
  %v73 = vld [vmem:[%s50] sm:$0xff]
  %v74 = vld [vmem:[%s50 + $0x8] sm:$0xff]
  %v75 = vld [vmem:[%s58] sm:$0xff]
  %v76 = vld [vmem:[%s58 + $0x8] sm:$0xff]
  %v77 = vld [vmem:[%s5] sm:$0x3]
  %v78 = vmul.f32 %v75, %v73
  %v79 = vmul.f32 %v76, %v74
  %v82 = vcombine.high %v78, %v78
  %v84 = vunpack.c.l.s4 1983009808
  %v85 = vunpack.c.0.s8 %v84
  %v86 = vlaneseq
  %v87 = vshrl.u32 %v86, 7
  %v88 = vsub.s32 %v85, %v87
  %v89 = vrot.slane %v78, %v88
  %v91 = vunpack.c.l.s4 1983009808
  %v92 = vunpack.c.0.s8 %v91
  %v93 = vlaneseq
  %v94 = vshrl.u32 %v93, 7
  %v95 = vsub.s32 %v92, %v94
  %v96 = vrot.slane %v82, %v95
  %v97 = vcombine.high %v89, %v89
  %v98 = vcombine.high %v96, %v96
  %v99 = vcombine.high %v79, %v79
  %v101 = vunpack.c.l.s4 1983009808
  %v102 = vunpack.c.0.s8 %v101
  %v103 = vlaneseq
  %v104 = vshrl.u32 %v103, 7
  %v105 = vsub.s32 %v102, %v104
  %v106 = vrot.slane %v79, %v105
  %v108 = vunpack.c.l.s4 1983009808
  %v109 = vunpack.c.0.s8 %v108
  %v110 = vlaneseq
  %v111 = vshrl.u32 %v110, 7
  %v112 = vsub.s32 %v109, %v111
  %v113 = vrot.slane %v99, %v112
  %v114 = vcombine.high %v106, %v106
  %v115 = vcombine.high %v113, %v113
  %vm124 = vcmask 1041408
  %v125 = vsel %vm124, %v89, 0.0
  %v126 = vsel %vm124, %v97, 0.0
  %v127 = vadd.f32 %v125, %v126
  %v128 = vsel %vm124, %v96, 0.0
  %v129 = vadd.f32 %v127, %v128
  %v130 = vsel %vm124, %v98, 0.0
  %v131 = vadd.f32 %v129, %v130
  %v132 = vsel %vm124, %v106, 0.0
  %v133 = vadd.f32 %v131, %v132
  %v134 = vsel %vm124, %v114, 0.0
  %v135 = vadd.f32 %v133, %v134
  %v136 = vsel %vm124, %v113, 0.0
  %v137 = vadd.f32 %v135, %v136
  %v138 = vsel %vm124, %v115, 0.0
  %v139 = vadd.f32 %v137, %v138
  %140 = vadd.xlane.f32.xlu0 %v139
  %v141 = vpop.xlane.xlu0 %140
  %v142 = vadd.f32 %v77, %v141
  %vm143 = vcmask 1024
  %144 = vst.msk [vmem:[%s5] sm:$0x3] %vm143, %v142
  %v145 = vld [vmem:[%s6] sm:$0x3]
  %v146 = vmul.f32 %v75, %v75
  %v147 = vmul.f32 %v76, %v76
  %v150 = vcombine.high %v146, %v146
  %v152 = vunpack.c.l.s4 1983009808
  %v153 = vunpack.c.0.s8 %v152
  %v154 = vlaneseq
  %v155 = vshrl.u32 %v154, 7
  %v156 = vsub.s32 %v153, %v155
  %v157 = vrot.slane %v146, %v156
  %v159 = vunpack.c.l.s4 1983009808
  %v160 = vunpack.c.0.s8 %v159
  %v161 = vlaneseq
  %v162 = vshrl.u32 %v161, 7
  %v163 = vsub.s32 %v160, %v162
  %v164 = vrot.slane %v150, %v163
  %v165 = vcombine.high %v157, %v157
  %v166 = vcombine.high %v164, %v164
  %v167 = vcombine.high %v147, %v147
  %v169 = vunpack.c.l.s4 1983009808
  %v170 = vunpack.c.0.s8 %v169
  %v171 = vlaneseq
  %v172 = vshrl.u32 %v171, 7
  %v173 = vsub.s32 %v170, %v172
  %v174 = vrot.slane %v147, %v173
  %v176 = vunpack.c.l.s4 1983009808
  %v177 = vunpack.c.0.s8 %v176
  %v178 = vlaneseq
  %v179 = vshrl.u32 %v178, 7
  %v180 = vsub.s32 %v177, %v179
  %v181 = vrot.slane %v167, %v180
  %v182 = vcombine.high %v174, %v174
  %v183 = vcombine.high %v181, %v181
  %v192 = vsel %vm124, %v157, 0.0
  %v193 = vsel %vm124, %v165, 0.0
  %v194 = vadd.f32 %v192, %v193
  %v195 = vsel %vm124, %v164, 0.0
  %v196 = vadd.f32 %v194, %v195
  %v197 = vsel %vm124, %v166, 0.0
  %v198 = vadd.f32 %v196, %v197
  %v199 = vsel %vm124, %v174, 0.0
  %v200 = vadd.f32 %v198, %v199
  %v201 = vsel %vm124, %v182, 0.0
  %v202 = vadd.f32 %v200, %v201
  %v203 = vsel %vm124, %v181, 0.0
  %v204 = vadd.f32 %v202, %v203
  %v205 = vsel %vm124, %v183, 0.0
  %v206 = vadd.f32 %v204, %v205
  %207 = vadd.xlane.f32.xlu0 %v206
  %v208 = vpop.xlane.xlu0 %207
  %v209 = vadd.f32 %v145, %v208
  %210 = vst.msk [vmem:[%s6] sm:$0x3] %vm143, %v209
  %v211 = vld [vmem:[%s7] sm:$0x3]
  %v212 = vmul.f32 %v73, %v73
  %v213 = vmul.f32 %v74, %v74
  %v216 = vcombine.high %v212, %v212
  %v218 = vunpack.c.l.s4 1983009808
  %v219 = vunpack.c.0.s8 %v218
  %v220 = vlaneseq
  %v221 = vshrl.u32 %v220, 7
  %v222 = vsub.s32 %v219, %v221
  %v223 = vrot.slane %v212, %v222
  %v225 = vunpack.c.l.s4 1983009808
  %v226 = vunpack.c.0.s8 %v225
  %v227 = vlaneseq
  %v228 = vshrl.u32 %v227, 7
  %v229 = vsub.s32 %v226, %v228
  %v230 = vrot.slane %v216, %v229
  %v231 = vcombine.high %v223, %v223
  %v232 = vcombine.high %v230, %v230
  %v233 = vcombine.high %v213, %v213
  %v235 = vunpack.c.l.s4 1983009808
  %v236 = vunpack.c.0.s8 %v235
  %v237 = vlaneseq
  %v238 = vshrl.u32 %v237, 7
  %v239 = vsub.s32 %v236, %v238
  %v240 = vrot.slane %v213, %v239
  %v242 = vunpack.c.l.s4 1983009808
  %v243 = vunpack.c.0.s8 %v242
  %v244 = vlaneseq
  %v245 = vshrl.u32 %v244, 7
  %v246 = vsub.s32 %v243, %v245
  %v247 = vrot.slane %v233, %v246
  %v248 = vcombine.high %v240, %v240
  %v249 = vcombine.high %v247, %v247
  %v258 = vsel %vm124, %v223, 0.0
  %v259 = vsel %vm124, %v231, 0.0
  %v260 = vadd.f32 %v258, %v259
  %v261 = vsel %vm124, %v230, 0.0
  %v262 = vadd.f32 %v260, %v261
  %v263 = vsel %vm124, %v232, 0.0
  %v264 = vadd.f32 %v262, %v263
  %v265 = vsel %vm124, %v240, 0.0
  %v266 = vadd.f32 %v264, %v265
  %v267 = vsel %vm124, %v248, 0.0
  %v268 = vadd.f32 %v266, %v267
  %v269 = vsel %vm124, %v247, 0.0
  %v270 = vadd.f32 %v268, %v269
  %v271 = vsel %vm124, %v249, 0.0
  %v272 = vadd.f32 %v270, %v271
  %273 = vadd.xlane.f32.xlu0 %v272
  %v274 = vpop.xlane.xlu0 %273
  %v275 = vadd.f32 %v211, %v274
  %276 = vst.msk [vmem:[%s7] sm:$0x3] %vm143, %v275
  %v277 = vld [vmem:[%s3] sm:$0x3]
  %v280 = vcombine.high %v73, %v73
  %v282 = vunpack.c.l.s4 1983009808
  %v283 = vunpack.c.0.s8 %v282
  %v284 = vlaneseq
  %v285 = vshrl.u32 %v284, 7
  %v286 = vsub.s32 %v283, %v285
  %v287 = vrot.slane %v73, %v286
  %v289 = vunpack.c.l.s4 1983009808
  %v290 = vunpack.c.0.s8 %v289
  %v291 = vlaneseq
  %v292 = vshrl.u32 %v291, 7
  %v293 = vsub.s32 %v290, %v292
  %v294 = vrot.slane %v280, %v293
  %v295 = vcombine.high %v287, %v287
  %v296 = vcombine.high %v294, %v294
  %v297 = vcombine.high %v74, %v74
  %v299 = vunpack.c.l.s4 1983009808
  %v300 = vunpack.c.0.s8 %v299
  %v301 = vlaneseq
  %v302 = vshrl.u32 %v301, 7
  %v303 = vsub.s32 %v300, %v302
  %v304 = vrot.slane %v74, %v303
  %v306 = vunpack.c.l.s4 1983009808
  %v307 = vunpack.c.0.s8 %v306
  %v308 = vlaneseq
  %v309 = vshrl.u32 %v308, 7
  %v310 = vsub.s32 %v307, %v309
  %v311 = vrot.slane %v297, %v310
  %v312 = vcombine.high %v304, %v304
  %v313 = vcombine.high %v311, %v311
  %v322 = vsel %vm124, %v287, -inf
  %v323 = vsel %vm124, %v295, -inf
  %v324 = vsel %vm124, %v294, -inf
  %v325 = vsel %vm124, %v296, -inf
  %v326 = vsel %vm124, %v304, -inf
  %v327 = vmax.f32 %v322, %v326
  %v328 = vsel %vm124, %v312, -inf
  %v329 = vmax.f32 %v323, %v328
  %v330 = vsel %vm124, %v311, -inf
  %v331 = vmax.f32 %v324, %v330
  %v332 = vsel %vm124, %v313, -inf
  %v333 = vmax.f32 %v325, %v332
  %v334 = vmax.f32 %v327, %v329
  %v335 = vmax.f32 %v331, %v333
  %v336 = vmax.f32 %v334, %v335
  %337 = vmax.xlane.f32.xlu0 %v336
  %v338 = vpop.xlane.xlu0 %337
  %v339 = vmax.f32 %v277, %v338
  %v340 = vsub.f32 %v277, %v339
  %v341 = vmul.f32 %v340, 1.442695
  %v342 = vpow.pop %v341
  %344 = vset.pattern.permute.xlu0 0
  %345 = vperm.xlu0 %344, %v339
  %v346 = vpop.permute.xlu0 %345
  %v348 = vunpack.c.l.s4 269488144
  %v349 = vunpack.c.0.s8 %v348
  %v350 = vlaneseq
  %v351 = vshrl.u32 %v350, 7
  %v352 = vsub.s32 %v349, %v351
  %v353 = vrot.slane %v346, %v352
  %v355 = vsub.f32 %v73, %v353
  %v356 = vsub.f32 %v74, %v353
  %v357 = vmul.f32 %v355, 1.442695
  %v358 = vpow.pop %v357
  %v359 = vmul.f32 %v356, 1.442695
  %v360 = vpow.pop %v359
  %v361 = vld [vmem:[%s4] sm:$0x3]
  %v362 = vmul.f32 %v361, %v342
  %v365 = vcombine.high %v358, %v358
  %v367 = vunpack.c.l.s4 1983009808
  %v368 = vunpack.c.0.s8 %v367
  %v369 = vlaneseq
  %v370 = vshrl.u32 %v369, 7
  %v371 = vsub.s32 %v368, %v370
  %v372 = vrot.slane %v358, %v371
  %v374 = vunpack.c.l.s4 1983009808
  %v375 = vunpack.c.0.s8 %v374
  %v376 = vlaneseq
  %v377 = vshrl.u32 %v376, 7
  %v378 = vsub.s32 %v375, %v377
  %v379 = vrot.slane %v365, %v378
  %v380 = vcombine.high %v372, %v372
  %v381 = vcombine.high %v379, %v379
  %v382 = vcombine.high %v360, %v360
  %v384 = vunpack.c.l.s4 1983009808
  %v385 = vunpack.c.0.s8 %v384
  %v386 = vlaneseq
  %v387 = vshrl.u32 %v386, 7
  %v388 = vsub.s32 %v385, %v387
  %v389 = vrot.slane %v360, %v388
  %v391 = vunpack.c.l.s4 1983009808
  %v392 = vunpack.c.0.s8 %v391
  %v393 = vlaneseq
  %v394 = vshrl.u32 %v393, 7
  %v395 = vsub.s32 %v392, %v394
  %v396 = vrot.slane %v382, %v395
  %v397 = vcombine.high %v389, %v389
  %v398 = vcombine.high %v396, %v396
  %v407 = vsel %vm124, %v372, 0.0
  %v408 = vsel %vm124, %v380, 0.0
  %v409 = vadd.f32 %v407, %v408
  %v410 = vsel %vm124, %v379, 0.0
  %v411 = vadd.f32 %v409, %v410
  %v412 = vsel %vm124, %v381, 0.0
  %v413 = vadd.f32 %v411, %v412
  %v414 = vsel %vm124, %v389, 0.0
  %v415 = vadd.f32 %v413, %v414
  %v416 = vsel %vm124, %v397, 0.0
  %v417 = vadd.f32 %v415, %v416
  %v418 = vsel %vm124, %v396, 0.0
  %v419 = vadd.f32 %v417, %v418
  %v420 = vsel %vm124, %v398, 0.0
  %v421 = vadd.f32 %v419, %v420
  %422 = vadd.xlane.f32.xlu0 %v421
  %v423 = vpop.xlane.xlu0 %422
  %v424 = vadd.f32 %v362, %v423
  %425 = vst.msk [vmem:[%s4] sm:$0x3] %vm143, %v424
  %vm426 = vcmask 7168
  %v428 = vsel %vm426, %v342, 0
  %430 = vmatprep.subr.mxu0 0.0
  %431 = vmatpush1.xpose.msra.mxu0 %v428
  %432 = vmatprep.subr.mxu0 0.0
  %433 = vmatpush1.xpose.msra.mxu0 0.0
  %434 = vmatprep.subr.mxu0 0.0
  %435 = vmatpush1.xpose.msra.mxu0 0.0
  %436 = vmatprep.subr.mxu0 0.0
  %437 = vmatpush1.xpose.msra.mxu0 0.0
  %438 = vmatprep.subr.mxu0 0.0
  %439 = vmatpush1.xpose.msra.mxu0 0.0
  %440 = vmatprep.subr.mxu0 0.0
  %441 = vmatpush1.xpose.msra.mxu0 0.0
  %442 = vmatprep.subr.mxu0 0.0
  %443 = vmatpush1.xpose.msra.mxu0 0.0
  %444 = vmatprep.subr.mxu0 0.0
  %445 = vmatpush1.xpose.msra.mxu0 0.0
  %446 = vmatprep.subr.mxu0 0.0
  %447 = vmatpush1.xpose.msra.mxu0 0.0
  %448 = vmatprep.subr.mxu0 0.0
  %449 = vmatpush1.xpose.msra.mxu0 0.0
  %450 = vmatprep.subr.mxu0 0.0
  %451 = vmatpush1.xpose.msra.mxu0 0.0
  %452 = vmatprep.subr.mxu0 0.0
  %453 = vmatpush1.xpose.msra.mxu0 0.0
  %454 = vmatprep.subr.mxu0 0.0
  %455 = vmatpush1.xpose.msra.mxu0 0.0
  %456 = vmatprep.subr.mxu0 0.0
  %457 = vmatpush1.xpose.msra.mxu0 0.0
  %458 = vmatprep.subr.mxu0 0.0
  %459 = vmatpush1.xpose.msra.mxu0 0.0
  %460 = vmatprep.subr.mxu0 0.0
  %461 = vmatpush1.xpose.msra.mxu0 0.0
  %462 = vmatprep.subr.mxu0 0.0
  %463 = vmatpush1.xpose.msra.mxu0 0.0
  %464 = vmatprep.subr.mxu0 0.0
  %465 = vmatpush1.xpose.msra.mxu0 0.0
  %466 = vmatprep.subr.mxu0 0.0
  %467 = vmatpush1.xpose.msra.mxu0 0.0
  %468 = vmatprep.subr.mxu0 0.0
  %469 = vmatpush1.xpose.msra.mxu0 0.0
  %470 = vmatprep.subr.mxu0 0.0
  %471 = vmatpush1.xpose.msra.mxu0 0.0
  %472 = vmatprep.subr.mxu0 0.0
  %473 = vmatpush1.xpose.msra.mxu0 0.0
  %474 = vmatprep.subr.mxu0 0.0
  %475 = vmatpush1.xpose.msra.mxu0 0.0
  %476 = vmatprep.subr.mxu0 0.0
  %477 = vmatpush1.xpose.msra.mxu0 0.0
  %478 = vmatprep.subr.mxu0 0.0
  %479 = vmatpush1.xpose.msra.mxu0 0.0
  %480 = vmatprep.subr.mxu0 0.0
  %481 = vmatpush1.xpose.msra.mxu0 0.0
  %482 = vmatprep.subr.mxu0 0.0
  %483 = vmatpush1.xpose.msra.mxu0 0.0
  %484 = vmatprep.subr.mxu0 0.0
  %485 = vmatpush1.xpose.msra.mxu0 0.0
  %486 = vmatprep.subr.mxu0 0.0
  %487 = vmatpush1.xpose.msra.mxu0 0.0
  %488 = vmatprep.subr.mxu0 0.0
  %489 = vmatpush1.xpose.msra.mxu0 0.0
  %490 = vmatprep.subr.mxu0 0.0
  %491 = vmatpush1.xpose.msra.mxu0 0.0
  %492 = vmatprep.subr.mxu0 0.0
  %493 = vmatpush1.xpose.msra.mxu0 0.0
  %494 = vmatprep.mubr.f32.mxu0 0.0
  %495 = vmatmul.mubr.f32.gmra.mrb[0].mxu0 %v428
  %v496 = vpop.f32.mrb[0].mxu0
  %v497 = vadd.f32 0.0, %v496
  %v498 = vpop.f32.mrb[0].mxu0
  %499 = vdwg.mxu0
  %500 = vmatprep.subr.mxu0 %v380
  %501 = vmatpush1.xpose.msra.mxu0 %v372
  %502 = vmatprep.subr.mxu0 0.0
  %503 = vmatpush1.xpose.msra.mxu0 0.0
  %504 = vmatprep.subr.mxu0 0.0
  %505 = vmatpush1.xpose.msra.mxu0 0.0
  %506 = vmatprep.subr.mxu0 0.0
  %507 = vmatpush1.xpose.msra.mxu0 0.0
  %508 = vmatprep.subr.mxu0 0.0
  %509 = vmatpush1.xpose.msra.mxu0 0.0
  %510 = vmatprep.subr.mxu0 0.0
  %511 = vmatpush1.xpose.msra.mxu0 0.0
  %512 = vmatprep.subr.mxu0 0.0
  %513 = vmatpush1.xpose.msra.mxu0 0.0
  %514 = vmatprep.subr.mxu0 0.0
  %515 = vmatpush1.xpose.msra.mxu0 0.0
  %516 = vmatprep.subr.mxu0 0.0
  %517 = vmatpush1.xpose.msra.mxu0 0.0
  %518 = vmatprep.subr.mxu0 0.0
  %519 = vmatpush1.xpose.msra.mxu0 0.0
  %520 = vmatprep.subr.mxu0 0.0
  %521 = vmatpush1.xpose.msra.mxu0 0.0
  %522 = vmatprep.subr.mxu0 0.0
  %523 = vmatpush1.xpose.msra.mxu0 0.0
  %524 = vmatprep.subr.mxu0 0.0
  %525 = vmatpush1.xpose.msra.mxu0 0.0
  %526 = vmatprep.subr.mxu0 0.0
  %527 = vmatpush1.xpose.msra.mxu0 0.0
  %528 = vmatprep.subr.mxu0 0.0
  %529 = vmatpush1.xpose.msra.mxu0 0.0
  %530 = vmatprep.subr.mxu0 0.0
  %531 = vmatpush1.xpose.msra.mxu0 0.0
  %532 = vmatprep.subr.mxu0 0.0
  %533 = vmatpush1.xpose.msra.mxu0 0.0
  %534 = vmatprep.subr.mxu0 0.0
  %535 = vmatpush1.xpose.msra.mxu0 0.0
  %536 = vmatprep.subr.mxu0 0.0
  %537 = vmatpush1.xpose.msra.mxu0 0.0
  %538 = vmatprep.subr.mxu0 0.0
  %539 = vmatpush1.xpose.msra.mxu0 0.0
  %540 = vmatprep.subr.mxu0 0.0
  %541 = vmatpush1.xpose.msra.mxu0 0.0
  %542 = vmatprep.subr.mxu0 0.0
  %543 = vmatpush1.xpose.msra.mxu0 0.0
  %544 = vmatprep.subr.mxu0 0.0
  %545 = vmatpush1.xpose.msra.mxu0 0.0
  %546 = vmatprep.subr.mxu0 0.0
  %547 = vmatpush1.xpose.msra.mxu0 0.0
  %548 = vmatprep.subr.mxu0 0.0
  %549 = vmatpush1.xpose.msra.mxu0 0.0
  %550 = vmatprep.subr.mxu0 0.0
  %551 = vmatpush1.xpose.msra.mxu0 0.0
  %552 = vmatprep.subr.mxu0 0.0
  %553 = vmatpush1.xpose.msra.mxu0 0.0
  %554 = vmatprep.subr.mxu0 0.0
  %555 = vmatpush1.xpose.msra.mxu0 0.0
  %556 = vmatprep.subr.mxu0 0.0
  %557 = vmatpush1.xpose.msra.mxu0 0.0
  %558 = vmatprep.subr.mxu0 0.0
  %559 = vmatpush1.xpose.msra.mxu0 0.0
  %560 = vmatprep.subr.mxu0 0.0
  %561 = vmatpush1.xpose.msra.mxu0 0.0
  %562 = vmatprep.subr.mxu0 0.0
  %563 = vmatpush1.xpose.msra.mxu0 0.0
  %564 = vmatprep.mubr.f32.mxu0 %v380
  %565 = vmatmul.mubr.f32.gmra.mrb[0].mxu0 %v372
  %v566 = vpop.f32.mrb[0].mxu0
  %v567 = vadd.f32 0.0, %v566
  %v568 = vpop.f32.mrb[0].mxu0
  %569 = vdwg.mxu0
  %570 = vmatprep.subr.mxu0 %v381
  %571 = vmatpush1.xpose.msra.mxu0 %v379
  %572 = vmatprep.subr.mxu0 0.0
  %573 = vmatpush1.xpose.msra.mxu0 0.0
  %574 = vmatprep.subr.mxu0 0.0
  %575 = vmatpush1.xpose.msra.mxu0 0.0
  %576 = vmatprep.subr.mxu0 0.0
  %577 = vmatpush1.xpose.msra.mxu0 0.0
  %578 = vmatprep.subr.mxu0 0.0
  %579 = vmatpush1.xpose.msra.mxu0 0.0
  %580 = vmatprep.subr.mxu0 0.0
  %581 = vmatpush1.xpose.msra.mxu0 0.0
  %582 = vmatprep.subr.mxu0 0.0
  %583 = vmatpush1.xpose.msra.mxu0 0.0
  %584 = vmatprep.subr.mxu0 0.0
  %585 = vmatpush1.xpose.msra.mxu0 0.0
  %586 = vmatprep.subr.mxu0 0.0
  %587 = vmatpush1.xpose.msra.mxu0 0.0
  %588 = vmatprep.subr.mxu0 0.0
  %589 = vmatpush1.xpose.msra.mxu0 0.0
  %590 = vmatprep.subr.mxu0 0.0
  %591 = vmatpush1.xpose.msra.mxu0 0.0
  %592 = vmatprep.subr.mxu0 0.0
  %593 = vmatpush1.xpose.msra.mxu0 0.0
  %594 = vmatprep.subr.mxu0 0.0
  %595 = vmatpush1.xpose.msra.mxu0 0.0
  %596 = vmatprep.subr.mxu0 0.0
  %597 = vmatpush1.xpose.msra.mxu0 0.0
  %598 = vmatprep.subr.mxu0 0.0
  %599 = vmatpush1.xpose.msra.mxu0 0.0
  %600 = vmatprep.subr.mxu0 0.0
  %601 = vmatpush1.xpose.msra.mxu0 0.0
  %602 = vmatprep.subr.mxu0 0.0
  %603 = vmatpush1.xpose.msra.mxu0 0.0
  %604 = vmatprep.subr.mxu0 0.0
  %605 = vmatpush1.xpose.msra.mxu0 0.0
  %606 = vmatprep.subr.mxu0 0.0
  %607 = vmatpush1.xpose.msra.mxu0 0.0
  %608 = vmatprep.subr.mxu0 0.0
  %609 = vmatpush1.xpose.msra.mxu0 0.0
  %610 = vmatprep.subr.mxu0 0.0
  %611 = vmatpush1.xpose.msra.mxu0 0.0
  %612 = vmatprep.subr.mxu0 0.0
  %613 = vmatpush1.xpose.msra.mxu0 0.0
  %614 = vmatprep.subr.mxu0 0.0
  %615 = vmatpush1.xpose.msra.mxu0 0.0
  %616 = vmatprep.subr.mxu0 0.0
  %617 = vmatpush1.xpose.msra.mxu0 0.0
  %618 = vmatprep.subr.mxu0 0.0
  %619 = vmatpush1.xpose.msra.mxu0 0.0
  %620 = vmatprep.subr.mxu0 0.0
  %621 = vmatpush1.xpose.msra.mxu0 0.0
  %622 = vmatprep.subr.mxu0 0.0
  %623 = vmatpush1.xpose.msra.mxu0 0.0
  %624 = vmatprep.subr.mxu0 0.0
  %625 = vmatpush1.xpose.msra.mxu0 0.0
  %626 = vmatprep.subr.mxu0 0.0
  %627 = vmatpush1.xpose.msra.mxu0 0.0
  %628 = vmatprep.subr.mxu0 0.0
  %629 = vmatpush1.xpose.msra.mxu0 0.0
  %630 = vmatprep.subr.mxu0 0.0
  %631 = vmatpush1.xpose.msra.mxu0 0.0
  %632 = vmatprep.subr.mxu0 0.0
  %633 = vmatpush1.xpose.msra.mxu0 0.0
  %634 = vmatprep.mubr.f32.mxu0 %v381
  %635 = vmatmul.mubr.f32.gmra.mrb[0].mxu0 %v379
  %v636 = vpop.f32.mrb[0].mxu0
  %v637 = vadd.f32 %v567, %v636
  %v638 = vpop.f32.mrb[0].mxu0
  %639 = vdwg.mxu0
  %640 = vmatprep.subr.mxu0 %v397
  %641 = vmatpush1.xpose.msra.mxu0 %v389
  %642 = vmatprep.subr.mxu0 0.0
  %643 = vmatpush1.xpose.msra.mxu0 0.0
  %644 = vmatprep.subr.mxu0 0.0
  %645 = vmatpush1.xpose.msra.mxu0 0.0
  %646 = vmatprep.subr.mxu0 0.0
  %647 = vmatpush1.xpose.msra.mxu0 0.0
  %648 = vmatprep.subr.mxu0 0.0
  %649 = vmatpush1.xpose.msra.mxu0 0.0
  %650 = vmatprep.subr.mxu0 0.0
  %651 = vmatpush1.xpose.msra.mxu0 0.0
  %652 = vmatprep.subr.mxu0 0.0
  %653 = vmatpush1.xpose.msra.mxu0 0.0
  %654 = vmatprep.subr.mxu0 0.0
  %655 = vmatpush1.xpose.msra.mxu0 0.0
  %656 = vmatprep.subr.mxu0 0.0
  %657 = vmatpush1.xpose.msra.mxu0 0.0
  %658 = vmatprep.subr.mxu0 0.0
  %659 = vmatpush1.xpose.msra.mxu0 0.0
  %660 = vmatprep.subr.mxu0 0.0
  %661 = vmatpush1.xpose.msra.mxu0 0.0
  %662 = vmatprep.subr.mxu0 0.0
  %663 = vmatpush1.xpose.msra.mxu0 0.0
  %664 = vmatprep.subr.mxu0 0.0
  %665 = vmatpush1.xpose.msra.mxu0 0.0
  %666 = vmatprep.subr.mxu0 0.0
  %667 = vmatpush1.xpose.msra.mxu0 0.0
  %668 = vmatprep.subr.mxu0 0.0
  %669 = vmatpush1.xpose.msra.mxu0 0.0
  %670 = vmatprep.subr.mxu0 0.0
  %671 = vmatpush1.xpose.msra.mxu0 0.0
  %672 = vmatprep.subr.mxu0 0.0
  %673 = vmatpush1.xpose.msra.mxu0 0.0
  %674 = vmatprep.subr.mxu0 0.0
  %675 = vmatpush1.xpose.msra.mxu0 0.0
  %676 = vmatprep.subr.mxu0 0.0
  %677 = vmatpush1.xpose.msra.mxu0 0.0
  %678 = vmatprep.subr.mxu0 0.0
  %679 = vmatpush1.xpose.msra.mxu0 0.0
  %680 = vmatprep.subr.mxu0 0.0
  %681 = vmatpush1.xpose.msra.mxu0 0.0
  %682 = vmatprep.subr.mxu0 0.0
  %683 = vmatpush1.xpose.msra.mxu0 0.0
  %684 = vmatprep.subr.mxu0 0.0
  %685 = vmatpush1.xpose.msra.mxu0 0.0
  %686 = vmatprep.subr.mxu0 0.0
  %687 = vmatpush1.xpose.msra.mxu0 0.0
  %688 = vmatprep.subr.mxu0 0.0
  %689 = vmatpush1.xpose.msra.mxu0 0.0
  %690 = vmatprep.subr.mxu0 0.0
  %691 = vmatpush1.xpose.msra.mxu0 0.0
  %692 = vmatprep.subr.mxu0 0.0
  %693 = vmatpush1.xpose.msra.mxu0 0.0
  %694 = vmatprep.subr.mxu0 0.0
  %695 = vmatpush1.xpose.msra.mxu0 0.0
  %696 = vmatprep.subr.mxu0 0.0
  %697 = vmatpush1.xpose.msra.mxu0 0.0
  %698 = vmatprep.subr.mxu0 0.0
  %699 = vmatpush1.xpose.msra.mxu0 0.0
  %700 = vmatprep.subr.mxu0 0.0
  %701 = vmatpush1.xpose.msra.mxu0 0.0
  %702 = vmatprep.subr.mxu0 0.0
  %703 = vmatpush1.xpose.msra.mxu0 0.0
  %704 = vmatprep.mubr.f32.mxu0 %v397
  %705 = vmatmul.mubr.f32.gmra.mrb[0].mxu0 %v389
  %v706 = vpop.f32.mrb[0].mxu0
  %v707 = vadd.f32 %v637, %v706
  %v708 = vpop.f32.mrb[0].mxu0
  %709 = vdwg.mxu0
  %710 = vmatprep.subr.mxu0 %v398
  %711 = vmatpush1.xpose.msra.mxu0 %v396
  %712 = vmatprep.subr.mxu0 0.0
  %713 = vmatpush1.xpose.msra.mxu0 0.0
  %714 = vmatprep.subr.mxu0 0.0
  %715 = vmatpush1.xpose.msra.mxu0 0.0
  %716 = vmatprep.subr.mxu0 0.0
  %717 = vmatpush1.xpose.msra.mxu0 0.0
  %718 = vmatprep.subr.mxu0 0.0
  %719 = vmatpush1.xpose.msra.mxu0 0.0
  %720 = vmatprep.subr.mxu0 0.0
  %721 = vmatpush1.xpose.msra.mxu0 0.0
  %722 = vmatprep.subr.mxu0 0.0
  %723 = vmatpush1.xpose.msra.mxu0 0.0
  %724 = vmatprep.subr.mxu0 0.0
  %725 = vmatpush1.xpose.msra.mxu0 0.0
  %726 = vmatprep.subr.mxu0 0.0
  %727 = vmatpush1.xpose.msra.mxu0 0.0
  %728 = vmatprep.subr.mxu0 0.0
  %729 = vmatpush1.xpose.msra.mxu0 0.0
  %730 = vmatprep.subr.mxu0 0.0
  %731 = vmatpush1.xpose.msra.mxu0 0.0
  %732 = vmatprep.subr.mxu0 0.0
  %733 = vmatpush1.xpose.msra.mxu0 0.0
  %734 = vmatprep.subr.mxu0 0.0
  %735 = vmatpush1.xpose.msra.mxu0 0.0
  %736 = vmatprep.subr.mxu0 0.0
  %737 = vmatpush1.xpose.msra.mxu0 0.0
  %738 = vmatprep.subr.mxu0 0.0
  %739 = vmatpush1.xpose.msra.mxu0 0.0
  %740 = vmatprep.subr.mxu0 0.0
  %741 = vmatpush1.xpose.msra.mxu0 0.0
  %742 = vmatprep.subr.mxu0 0.0
  %743 = vmatpush1.xpose.msra.mxu0 0.0
  %744 = vmatprep.subr.mxu0 0.0
  %745 = vmatpush1.xpose.msra.mxu0 0.0
  %746 = vmatprep.subr.mxu0 0.0
  %747 = vmatpush1.xpose.msra.mxu0 0.0
  %748 = vmatprep.subr.mxu0 0.0
  %749 = vmatpush1.xpose.msra.mxu0 0.0
  %750 = vmatprep.subr.mxu0 0.0
  %751 = vmatpush1.xpose.msra.mxu0 0.0
  %752 = vmatprep.subr.mxu0 0.0
  %753 = vmatpush1.xpose.msra.mxu0 0.0
  %754 = vmatprep.subr.mxu0 0.0
  %755 = vmatpush1.xpose.msra.mxu0 0.0
  %756 = vmatprep.subr.mxu0 0.0
  %757 = vmatpush1.xpose.msra.mxu0 0.0
  %758 = vmatprep.subr.mxu0 0.0
  %759 = vmatpush1.xpose.msra.mxu0 0.0
  %760 = vmatprep.subr.mxu0 0.0
  %761 = vmatpush1.xpose.msra.mxu0 0.0
  %762 = vmatprep.subr.mxu0 0.0
  %763 = vmatpush1.xpose.msra.mxu0 0.0
  %764 = vmatprep.subr.mxu0 0.0
  %765 = vmatpush1.xpose.msra.mxu0 0.0
  %766 = vmatprep.subr.mxu0 0.0
  %767 = vmatpush1.xpose.msra.mxu0 0.0
  %768 = vmatprep.subr.mxu0 0.0
  %769 = vmatpush1.xpose.msra.mxu0 0.0
  %770 = vmatprep.subr.mxu0 0.0
  %771 = vmatpush1.xpose.msra.mxu0 0.0
  %772 = vmatprep.subr.mxu0 0.0
  %773 = vmatpush1.xpose.msra.mxu0 0.0
  %774 = vmatprep.mubr.f32.mxu0 %v398
  %775 = vmatmul.mubr.f32.gmra.mrb[0].mxu0 %v396
  %v776 = vpop.f32.mrb[0].mxu0
  %v777 = vadd.f32 %v707, %v776
  %v778 = vpop.f32.mrb[0].mxu0
  %779 = vdwg.mxu0
  %v780 = vld [vmem:[%s2] sm:$0x3]
  %v781 = vmul.f32 %v780, %v497
  %v782 = vadd.f32 %v781, %v777
  %vm783 = vcmask 9216
  %784 = vst.msk [vmem:[%s2] sm:$0x3] %vm783, %v782
  %785 = vst.msk [vmem:[%s3] sm:$0x3] %vm143, %v339
  // Predicated region
  $region14: #{revisit_rd_loss.7} parent=0 // pred_check
    _
  $region15: #{revisit_rd_loss.7} parent=0 // pred_check_branch
    %787 = sbr.rel (0) target = $region17
  $region16: #{revisit_rd_loss.7} parent=0 // pred_region
    _
  $region17: #{revisit_rd_loss.7} parent=0 // pred_fallthru
    _
  // Predicated region
  $region18: #{revisit_rd_loss.7} parent=0 // pred_check
    _
  $region19: #{revisit_rd_loss.7} parent=0 // pred_check_branch
    %789 = sbr.rel (0) target = $region21
  $region20: #{revisit_rd_loss.7} parent=0 // pred_region
    _
  $region21: #{revisit_rd_loss.7} parent=0 // pred_fallthru
    _
  // Predicated region
  $region22: #{revisit_rd_loss.7} parent=0 // pred_check
    _
  $region23: #{revisit_rd_loss.7} parent=0 // pred_check_branch
    %791 = sbr.rel (0) target = $region25
  $region24: #{revisit_rd_loss.7} parent=0 // pred_region
    _
  $region25: #{revisit_rd_loss.7} parent=0 // pred_fallthru
    _
  // Predicated region
  $region26: #{revisit_rd_loss.7} parent=0 // pred_check
    _
  $region27: #{revisit_rd_loss.7} parent=0 // pred_check_branch
    %793 = sbr.rel (0) target = $region29
  $region28: #{revisit_rd_loss.7} parent=0 // pred_region
    _
  $region29: #{revisit_rd_loss.7} parent=0 // pred_fallthru
    _
  // Predicated region
  $region30: #{revisit_rd_loss.7} parent=0 // pred_check
    _
  $region31: #{revisit_rd_loss.7} parent=0 // pred_check_branch
    %795 = sbr.rel (0) target = $region33
  $region32: #{revisit_rd_loss.7} parent=0 // pred_region
    _
  $region33: #{revisit_rd_loss.7} parent=0 // pred_fallthru
    _
  // Predicated region
  $region34: #{revisit_rd_loss.7} parent=0 // pred_check
    _
  $region35: #{revisit_rd_loss.7} parent=0 // pred_check_branch
    %797 = sbr.rel (0) target = $region37
  $region36: #{revisit_rd_loss.7} parent=0 // pred_region
    _
  $region37: #{revisit_rd_loss.7} parent=0 // pred_fallthru
    _
  // Predicated region
  $region38: #{revisit_rd_loss.7} parent=0 // pred_check
    _
  $region39: #{revisit_rd_loss.7} parent=0 // pred_check_branch
    %799 = sbr.rel (0) target = $region41
  $region40: #{revisit_rd_loss.7} parent=0 // pred_region
    _
  $region41: #{revisit_rd_loss.7} parent=0 // pred_fallthru
    _
  // Predicated region
  $region42: #{revisit_rd_loss.7} parent=0 // pred_check
    _
  $region43: #{revisit_rd_loss.7} parent=0 // pred_check_branch
    %801 = sbr.rel (0) target = $region45
  $region44: #{revisit_rd_loss.7} parent=0 // pred_region
    _
  $region45: #{revisit_rd_loss.7} parent=0 // pred_fallthru
    _
  // Predicated region
  $region46: #{revisit_rd_loss.7} parent=0 // pred_check
    _
  $region47: #{revisit_rd_loss.7} parent=0 // pred_check_branch
    %803 = sbr.rel (0) target = $region49
  $region48: #{revisit_rd_loss.7} parent=0 // pred_region
    _
  $region49: #{revisit_rd_loss.7} parent=0 // pred_fallthru
    _
  // Predicated region
  $region50: #{revisit_rd_loss.7} parent=0 // pred_check
    _
  $region51: #{revisit_rd_loss.7} parent=0 // pred_check_branch
    %805 = sbr.rel (0) target = $region53
  $region52: #{revisit_rd_loss.7} parent=0 // pred_region
    _
  $region53: #{revisit_rd_loss.7} parent=0 // pred_fallthru
    _
  // Predicated region
  $region54: #{revisit_rd_loss.7} parent=0 // pred_check
    _
  $region55: #{revisit_rd_loss.7} parent=0 // pred_check_branch
    %807 = sbr.rel (0) target = $region57
  $region56: #{revisit_rd_loss.7} parent=0 // pred_region
    _
  $region57: #{revisit_rd_loss.7} parent=0 // pred_fallthru
    _
  // Predicated region
  $region58: #{revisit_rd_loss.7} parent=0 // pred_check
    _
  $region59: #{revisit_rd_loss.7} parent=0 // pred_check_branch
    %809 = sbr.rel (0) target = $region61
  $region60: #{revisit_rd_loss.7} parent=0 // pred_region
    _
  $region61: #{revisit_rd_loss.7} parent=0 // pred_fallthru
    _

// kernel: revisit_rd_loss.11
$region0: #{revisit_rd_loss.11}
  #allocation0 [shape = 'u32[]', space=smem, size = 0x4, offset = 0x4, fixed_abs, tag = 'smem constant byte address 0x4 - core index']
  #allocation1 [shape = 'u32[144,128]{1,0:T(1,128)}', space=vmem, size = 0x12000, scoped, tag = 'internal scratch']
  %s0 = inlined_call_operand.vmem [shape: f32[2,4,256], index: 0, kind: input, shape index: {}]
  %s1 = inlined_call_operand.vmem [shape: f32[2,4,256], index: 1, kind: input, shape index: {}]
  %s2 = inlined_call_operand.vmem [shape: f32[1,2,256], index: 2, kind: output, shape index: {0}]
  %s3 = inlined_call_operand.vmem [shape: f32[1,2,256], index: 3, kind: output, shape index: {1}]
  %s4 = inlined_call_operand.vmem [shape: f32[1,2,256], index: 4, kind: output, shape index: {2}]
  %5 = xla_tuple %s2, %s3, %s4
  %s6 = sld [smem:[#allocation0]]
  $region38: #{revisit_rd_loss.11} parent=0
    _
  %s8 = ssub.s32 1, %s6
  %s9 = scalar_select 0, %s8, %s6
  // Predicated region
  $region2: #{revisit_rd_loss.11} parent=0 // pred_check
    _
  $region3: #{revisit_rd_loss.11} parent=0 // pred_check_branch
    %11 = sbr.rel (0) target = $region5
  $region4: #{revisit_rd_loss.11} parent=0 // pred_region
    %s12 = sadd.s32 0, 0
    %p13 = scmp.lt.s32.totalorder %s12, 0
    %s14 = scalar_select %p13, %s12, 0
    %s15 = smul.addr %s14, 2
    %s16 = smul.addr %s15, 4
    %s17 = scalar_lea.vmem %s0, %s16
    %s18 = sadd.s32 0, 0
  $region5: #{revisit_rd_loss.11} parent=0 // pred_fallthru
    _
  // Predicated region
  $region6: #{revisit_rd_loss.11} parent=0 // pred_check
    _
  $region7: #{revisit_rd_loss.11} parent=0 // pred_check_branch
    %20 = sbr.rel (0) target = $region9
  $region8: #{revisit_rd_loss.11} parent=0 // pred_region
    %s21 = sadd.s32 0, 0
    %p22 = scmp.lt.s32.totalorder %s21, 0
    %s23 = scalar_select %p22, %s21, 0
    %s24 = smul.addr %s23, 2
    %s25 = smul.addr %s24, 4
    %s26 = scalar_lea.vmem %s1, %s25
    %s27 = sadd.s32 0, 0
  $region9: #{revisit_rd_loss.11} parent=0 // pred_fallthru
    _
  %s28 = sadd.s32 0, 0
  %p29 = scmp.lt.s32.totalorder %s28, 0
  %s30 = scalar_select %p29, %s28, 0
  %s31 = smul.addr %s30, 2
  %s32 = smul.addr %s31, 4
  %s33 = scalar_lea.vmem %s0, %s32
  %s34 = sadd.s32 0, 0
  %p35 = scmp.lt.s32.totalorder %s34, 0
  %s36 = scalar_select %p35, %s34, 0
  %s37 = smul.addr %s36, 2
  %s38 = smul.addr %s37, 4
  %s39 = scalar_lea.vmem %s1, %s38
  %s40 = sadd.s32 0, 0
  %p41 = scmp.lt.s32.totalorder %s40, 0
  %s42 = scalar_select %p41, %s40, 0
  %s43 = smul.addr %s42, 2
  %s44 = smul.addr %s43, 4
  %s45 = scalar_lea.vmem %s0, %s44
  %s46 = sadd.s32 0, 0
  %s47 = sadd.s32 0, 0
  %p48 = scmp.lt.s32.totalorder %s47, 0
  %s49 = scalar_select %p48, %s47, 0
  %s50 = smul.addr %s49, 2
  %s51 = smul.addr %s50, 4
  %s52 = scalar_lea.vmem %s1, %s51
  %s53 = sadd.s32 0, 0
  %p54 = scmp.eq.s32.totalorder 0, 0
  // Predicated region
  $region10: #{revisit_rd_loss.11} parent=0 // pred_check
    %p55 = pneg %p54
  $region11: #{revisit_rd_loss.11} parent=0 // pred_check_branch
    %57 = sbr.rel (%p55) target = $region13
  $region12: #{revisit_rd_loss.11} parent=0 // pred_region
    %58 = vst [vmem:[%s2] sm:$0xf] 0.0
    %59 = vst [vmem:[%s3] sm:$0xf] 0.0
    %60 = vst [vmem:[%s4] sm:$0xf] 0.0
  $region13: #{revisit_rd_loss.11} parent=0 // pred_fallthru
    _
  %v61 = vld [vmem:[%s45] sm:$0xff]
  %v62 = vld [vmem:[%s45 + $0x8] sm:$0xff]
  %v63 = vld [vmem:[%s52] sm:$0xff]
  %v64 = vld [vmem:[%s52 + $0x8] sm:$0xff]
  %v65 = vld [vmem:[%s2] sm:$0xf]
  %v66 = vmul.f32 %v61, %v63
  %v67 = vmul.f32 %v62, %v64
  %v70 = vcombine.high %v66, %v66
  %v71 = vcombine.high %v67, %v67
  %vm74 = vcmask 1043456
  %v75 = vsel %vm74, %v66, 0.0
  %v76 = vrot.slane %v75, 4
  %v77 = vadd.f32 %v75, %v76
  %v78 = vrot.slane %v77, 2
  %v79 = vadd.f32 %v77, %v78
  %v80 = vrot.slane %v79, 1
  %v81 = vadd.f32 %v79, %v80
  %v82 = vsel %vm74, %v70, 0.0
  %v83 = vrot.slane %v82, 4
  %v84 = vadd.f32 %v82, %v83
  %v85 = vrot.slane %v84, 2
  %v86 = vadd.f32 %v84, %v85
  %v87 = vrot.slane %v86, 1
  %v88 = vadd.f32 %v86, %v87
  %v89 = vsel %vm74, %v67, 0.0
  %v90 = vrot.slane %v89, 4
  %v91 = vadd.f32 %v89, %v90
  %v92 = vrot.slane %v91, 2
  %v93 = vadd.f32 %v91, %v92
  %v94 = vrot.slane %v93, 1
  %v95 = vadd.f32 %v93, %v94
  %v96 = vsel %vm74, %v71, 0.0
  %v97 = vrot.slane %v96, 4
  %v98 = vadd.f32 %v96, %v97
  %v99 = vrot.slane %v98, 2
  %v100 = vadd.f32 %v98, %v99
  %v101 = vrot.slane %v100, 1
  %v102 = vadd.f32 %v100, %v101
  %v107 = vcombine.low %v81, %v88
  %v109 = vunpack.c.l.s4 1983009808
  %v110 = vunpack.c.0.s8 %v109
  %v111 = vlaneseq
  %v112 = vshrl.u32 %v111, 7
  %v113 = vsub.s32 %v110, %v112
  %v114 = vrot.slane %v107, %v113
  %v115 = vcombine.low %v95, %v102
  %v117 = vunpack.c.l.s4 1983009808
  %v118 = vunpack.c.0.s8 %v117
  %v119 = vlaneseq
  %v120 = vshrl.u32 %v119, 7
  %v121 = vsub.s32 %v118, %v120
  %v122 = vrot.slane %v115, %v121
  %vm123 = vcmask 1044484
  %v124 = vsel %vm123, %v114, %v114
  %vm125 = vcmask 1046534
  %v126 = vsel %vm125, %v114, %v124
  %v127 = vrot.slane %v122, 7
  %vm128 = vcmask 1041409
  %v129 = vsel %vm128, %v127, %v126
  %vm130 = vcmask 1043459
  %v131 = vsel %vm130, %v127, %v129
  %vm132 = vcmask 1045509
  %v133 = vsel %vm132, %v127, %v131
  %vm134 = vcmask 1047559
  %v135 = vsel %vm134, %v127, %v133
  %v137 = vadd.f32 %v65, %v135
  %138 = vst [vmem:[%s2] sm:$0xf] %v137
  %v139 = vld [vmem:[%s3] sm:$0xf]
  %v140 = vmul.f32 %v61, %v61
  %v141 = vmul.f32 %v62, %v62
  %v144 = vcombine.high %v140, %v140
  %v145 = vcombine.high %v141, %v141
  %v148 = vsel %vm74, %v140, 0.0
  %v149 = vrot.slane %v148, 4
  %v150 = vadd.f32 %v148, %v149
  %v151 = vrot.slane %v150, 2
  %v152 = vadd.f32 %v150, %v151
  %v153 = vrot.slane %v152, 1
  %v154 = vadd.f32 %v152, %v153
  %v155 = vsel %vm74, %v144, 0.0
  %v156 = vrot.slane %v155, 4
  %v157 = vadd.f32 %v155, %v156
  %v158 = vrot.slane %v157, 2
  %v159 = vadd.f32 %v157, %v158
  %v160 = vrot.slane %v159, 1
  %v161 = vadd.f32 %v159, %v160
  %v162 = vsel %vm74, %v141, 0.0
  %v163 = vrot.slane %v162, 4
  %v164 = vadd.f32 %v162, %v163
  %v165 = vrot.slane %v164, 2
  %v166 = vadd.f32 %v164, %v165
  %v167 = vrot.slane %v166, 1
  %v168 = vadd.f32 %v166, %v167
  %v169 = vsel %vm74, %v145, 0.0
  %v170 = vrot.slane %v169, 4
  %v171 = vadd.f32 %v169, %v170
  %v172 = vrot.slane %v171, 2
  %v173 = vadd.f32 %v171, %v172
  %v174 = vrot.slane %v173, 1
  %v175 = vadd.f32 %v173, %v174
  %v180 = vcombine.low %v154, %v161
  %v182 = vunpack.c.l.s4 1983009808
  %v183 = vunpack.c.0.s8 %v182
  %v184 = vlaneseq
  %v185 = vshrl.u32 %v184, 7
  %v186 = vsub.s32 %v183, %v185
  %v187 = vrot.slane %v180, %v186
  %v188 = vcombine.low %v168, %v175
  %v190 = vunpack.c.l.s4 1983009808
  %v191 = vunpack.c.0.s8 %v190
  %v192 = vlaneseq
  %v193 = vshrl.u32 %v192, 7
  %v194 = vsub.s32 %v191, %v193
  %v195 = vrot.slane %v188, %v194
  %v196 = vsel %vm123, %v187, %v187
  %v197 = vsel %vm125, %v187, %v196
  %v198 = vrot.slane %v195, 7
  %v199 = vsel %vm128, %v198, %v197
  %v200 = vsel %vm130, %v198, %v199
  %v201 = vsel %vm132, %v198, %v200
  %v202 = vsel %vm134, %v198, %v201
  %v204 = vadd.f32 %v139, %v202
  %205 = vst [vmem:[%s3] sm:$0xf] %v204
  %v206 = vld [vmem:[%s4] sm:$0xf]
  %v207 = vmul.f32 %v63, %v63
  %v208 = vmul.f32 %v64, %v64
  %v211 = vcombine.high %v207, %v207
  %v212 = vcombine.high %v208, %v208
  %v215 = vsel %vm74, %v207, 0.0
  %v216 = vrot.slane %v215, 4
  %v217 = vadd.f32 %v215, %v216
  %v218 = vrot.slane %v217, 2
  %v219 = vadd.f32 %v217, %v218
  %v220 = vrot.slane %v219, 1
  %v221 = vadd.f32 %v219, %v220
  %v222 = vsel %vm74, %v211, 0.0
  %v223 = vrot.slane %v222, 4
  %v224 = vadd.f32 %v222, %v223
  %v225 = vrot.slane %v224, 2
  %v226 = vadd.f32 %v224, %v225
  %v227 = vrot.slane %v226, 1
  %v228 = vadd.f32 %v226, %v227
  %v229 = vsel %vm74, %v208, 0.0
  %v230 = vrot.slane %v229, 4
  %v231 = vadd.f32 %v229, %v230
  %v232 = vrot.slane %v231, 2
  %v233 = vadd.f32 %v231, %v232
  %v234 = vrot.slane %v233, 1
  %v235 = vadd.f32 %v233, %v234
  %v236 = vsel %vm74, %v212, 0.0
  %v237 = vrot.slane %v236, 4
  %v238 = vadd.f32 %v236, %v237
  %v239 = vrot.slane %v238, 2
  %v240 = vadd.f32 %v238, %v239
  %v241 = vrot.slane %v240, 1
  %v242 = vadd.f32 %v240, %v241
  %v247 = vcombine.low %v221, %v228
  %v249 = vunpack.c.l.s4 1983009808
  %v250 = vunpack.c.0.s8 %v249
  %v251 = vlaneseq
  %v252 = vshrl.u32 %v251, 7
  %v253 = vsub.s32 %v250, %v252
  %v254 = vrot.slane %v247, %v253
  %v255 = vcombine.low %v235, %v242
  %v257 = vunpack.c.l.s4 1983009808
  %v258 = vunpack.c.0.s8 %v257
  %v259 = vlaneseq
  %v260 = vshrl.u32 %v259, 7
  %v261 = vsub.s32 %v258, %v260
  %v262 = vrot.slane %v255, %v261
  %v263 = vsel %vm123, %v254, %v254
  %v264 = vsel %vm125, %v254, %v263
  %v265 = vrot.slane %v262, 7
  %v266 = vsel %vm128, %v265, %v264
  %v267 = vsel %vm130, %v265, %v266
  %v268 = vsel %vm132, %v265, %v267
  %v269 = vsel %vm134, %v265, %v268
  %v271 = vadd.f32 %v206, %v269
  %272 = vst [vmem:[%s4] sm:$0xf] %v271
  // Predicated region
  $region14: #{revisit_rd_loss.11} parent=0 // pred_check
    _
  $region15: #{revisit_rd_loss.11} parent=0 // pred_check_branch
    %274 = sbr.rel (0) target = $region17
  $region16: #{revisit_rd_loss.11} parent=0 // pred_region
    _
  $region17: #{revisit_rd_loss.11} parent=0 // pred_fallthru
    _
  // Predicated region
  $region18: #{revisit_rd_loss.11} parent=0 // pred_check
    _
  $region19: #{revisit_rd_loss.11} parent=0 // pred_check_branch
    %276 = sbr.rel (0) target = $region21
  $region20: #{revisit_rd_loss.11} parent=0 // pred_region
    _
  $region21: #{revisit_rd_loss.11} parent=0 // pred_fallthru
    _
  // Predicated region
  $region22: #{revisit_rd_loss.11} parent=0 // pred_check
    _
  $region23: #{revisit_rd_loss.11} parent=0 // pred_check_branch
    %278 = sbr.rel (0) target = $region25
  $region24: #{revisit_rd_loss.11} parent=0 // pred_region
    _
  $region25: #{revisit_rd_loss.11} parent=0 // pred_fallthru
    _
  // Predicated region
  $region26: #{revisit_rd_loss.11} parent=0 // pred_check
    _
  $region27: #{revisit_rd_loss.11} parent=0 // pred_check_branch
    %280 = sbr.rel (0) target = $region29
  $region28: #{revisit_rd_loss.11} parent=0 // pred_region
    _
  $region29: #{revisit_rd_loss.11} parent=0 // pred_fallthru
    _
  // Predicated region
  $region30: #{revisit_rd_loss.11} parent=0 // pred_check
    _
  $region31: #{revisit_rd_loss.11} parent=0 // pred_check_branch
    %282 = sbr.rel (0) target = $region33
  $region32: #{revisit_rd_loss.11} parent=0 // pred_region
    _
  $region33: #{revisit_rd_loss.11} parent=0 // pred_fallthru
    _
  // Predicated region
  $region34: #{revisit_rd_loss.11} parent=0 // pred_check
    _
  $region35: #{revisit_rd_loss.11} parent=0 // pred_check_branch
    %284 = sbr.rel (0) target = $region37
  $region36: #{revisit_rd_loss.11} parent=0 // pred_region
    _
  $region37: #{revisit_rd_loss.11} parent=0 // pred_fallthru
    _

// kernel: revisit_rd_loss.12
$region0: #{revisit_rd_loss.12}
  #allocation0 [shape = 'u32[]', space=smem, size = 0x4, offset = 0x4, fixed_abs, tag = 'smem constant byte address 0x4 - core index']
  #allocation1 [shape = 'u32[144,128]{1,0:T(1,128)}', space=vmem, size = 0x12000, scoped, tag = 'internal scratch']
  %s0 = inlined_call_operand.vmem [shape: f32[2,8,64], index: 0, kind: input, shape index: {}]
  %s1 = inlined_call_operand.vmem [shape: f32[2,8,64], index: 1, kind: input, shape index: {}]
  %s2 = inlined_call_operand.vmem [shape: f32[1,2,64], index: 2, kind: output, shape index: {0}]
  %s3 = inlined_call_operand.vmem [shape: f32[1,2,64], index: 3, kind: output, shape index: {1}]
  %s4 = inlined_call_operand.vmem [shape: f32[1,2,64], index: 4, kind: output, shape index: {2}]
  %5 = xla_tuple %s2, %s3, %s4
  %s6 = sld [smem:[#allocation0]]
  $region38: #{revisit_rd_loss.12} parent=0
    _
  %s8 = ssub.s32 1, %s6
  %s9 = scalar_select 0, %s8, %s6
  // Predicated region
  $region2: #{revisit_rd_loss.12} parent=0 // pred_check
    _
  $region3: #{revisit_rd_loss.12} parent=0 // pred_check_branch
    %11 = sbr.rel (0) target = $region5
  $region4: #{revisit_rd_loss.12} parent=0 // pred_region
    %s12 = sadd.s32 0, 0
    %p13 = scmp.lt.s32.totalorder %s12, 0
    %s14 = scalar_select %p13, %s12, 0
    %s15 = smul.addr %s14, 8
    %s16 = scalar_lea.vmem %s0, %s15
    %s17 = sadd.s32 0, 0
  $region5: #{revisit_rd_loss.12} parent=0 // pred_fallthru
    _
  // Predicated region
  $region6: #{revisit_rd_loss.12} parent=0 // pred_check
    _
  $region7: #{revisit_rd_loss.12} parent=0 // pred_check_branch
    %19 = sbr.rel (0) target = $region9
  $region8: #{revisit_rd_loss.12} parent=0 // pred_region
    %s20 = sadd.s32 0, 0
    %p21 = scmp.lt.s32.totalorder %s20, 0
    %s22 = scalar_select %p21, %s20, 0
    %s23 = smul.addr %s22, 8
    %s24 = scalar_lea.vmem %s1, %s23
    %s25 = sadd.s32 0, 0
  $region9: #{revisit_rd_loss.12} parent=0 // pred_fallthru
    _
  %s26 = sadd.s32 0, 0
  %p27 = scmp.lt.s32.totalorder %s26, 0
  %s28 = scalar_select %p27, %s26, 0
  %s29 = smul.addr %s28, 8
  %s30 = scalar_lea.vmem %s0, %s29
  %s31 = sadd.s32 0, 0
  %p32 = scmp.lt.s32.totalorder %s31, 0
  %s33 = scalar_select %p32, %s31, 0
  %s34 = smul.addr %s33, 8
  %s35 = scalar_lea.vmem %s1, %s34
  %s36 = sadd.s32 0, 0
  %p37 = scmp.lt.s32.totalorder %s36, 0
  %s38 = scalar_select %p37, %s36, 0
  %s39 = smul.addr %s38, 8
  %s40 = scalar_lea.vmem %s0, %s39
  %s41 = sadd.s32 0, 0
  %s42 = sadd.s32 0, 0
  %p43 = scmp.lt.s32.totalorder %s42, 0
  %s44 = scalar_select %p43, %s42, 0
  %s45 = smul.addr %s44, 8
  %s46 = scalar_lea.vmem %s1, %s45
  %s47 = sadd.s32 0, 0
  %p48 = scmp.eq.s32.totalorder 0, 0
  // Predicated region
  $region10: #{revisit_rd_loss.12} parent=0 // pred_check
    %p49 = pneg %p48
  $region11: #{revisit_rd_loss.12} parent=0 // pred_check_branch
    %51 = sbr.rel (%p49) target = $region13
  $region12: #{revisit_rd_loss.12} parent=0 // pred_region
    %vm52 = vcmask 517120
    %53 = vst.msk [vmem:[%s2] sm:$0x3] %vm52, 0.0
    %54 = vst.msk [vmem:[%s3] sm:$0x3] %vm52, 0.0
    %55 = vst.msk [vmem:[%s4] sm:$0x3] %vm52, 0.0
  $region13: #{revisit_rd_loss.12} parent=0 // pred_fallthru
    _
  %v56 = vld [vmem:[%s40] sm:$0xff]
  %v57 = vld [vmem:[%s40 + $0x8] sm:$0xff]
  %v58 = vld [vmem:[%s46] sm:$0xff]
  %v59 = vld [vmem:[%s46 + $0x8] sm:$0xff]
  %v60 = vld [vmem:[%s2] sm:$0x3]
  %v61 = vmul.f32 %v56, %v58
  %v62 = vmul.f32 %v57, %v59
  %vm63 = vcmask 523264
  %v64 = vsel %vm63, %v61, 0.0
  %v65 = vrot.slane %v64, 4
  %v66 = vadd.f32 %v64, %v65
  %v67 = vrot.slane %v66, 2
  %v68 = vadd.f32 %v66, %v67
  %v69 = vrot.slane %v68, 1
  %v70 = vadd.f32 %v68, %v69
  %v71 = vsel %vm63, %v62, 0.0
  %v72 = vrot.slane %v71, 4
  %v73 = vadd.f32 %v71, %v72
  %v74 = vrot.slane %v73, 2
  %v75 = vadd.f32 %v73, %v74
  %v76 = vrot.slane %v75, 1
  %v77 = vadd.f32 %v75, %v76
  %vm80 = vcmask 1041409
  %v81 = vsel %vm80, %v77, %v70
  %v83 = vadd.f32 %v60, %v81
  %vm84 = vcmask 517120
  %85 = vst.msk [vmem:[%s2] sm:$0x3] %vm84, %v83
  %v86 = vld [vmem:[%s3] sm:$0x3]
  %v87 = vmul.f32 %v56, %v56
  %v88 = vmul.f32 %v57, %v57
  %v89 = vsel %vm63, %v87, 0.0
  %v90 = vrot.slane %v89, 4
  %v91 = vadd.f32 %v89, %v90
  %v92 = vrot.slane %v91, 2
  %v93 = vadd.f32 %v91, %v92
  %v94 = vrot.slane %v93, 1
  %v95 = vadd.f32 %v93, %v94
  %v96 = vsel %vm63, %v88, 0.0
  %v97 = vrot.slane %v96, 4
  %v98 = vadd.f32 %v96, %v97
  %v99 = vrot.slane %v98, 2
  %v100 = vadd.f32 %v98, %v99
  %v101 = vrot.slane %v100, 1
  %v102 = vadd.f32 %v100, %v101
  %v105 = vsel %vm80, %v102, %v95
  %v107 = vadd.f32 %v86, %v105
  %108 = vst.msk [vmem:[%s3] sm:$0x3] %vm84, %v107
  %v109 = vld [vmem:[%s4] sm:$0x3]
  %v110 = vmul.f32 %v58, %v58
  %v111 = vmul.f32 %v59, %v59
  %v112 = vsel %vm63, %v110, 0.0
  %v113 = vrot.slane %v112, 4
  %v114 = vadd.f32 %v112, %v113
  %v115 = vrot.slane %v114, 2
  %v116 = vadd.f32 %v114, %v115
  %v117 = vrot.slane %v116, 1
  %v118 = vadd.f32 %v116, %v117
  %v119 = vsel %vm63, %v111, 0.0
  %v120 = vrot.slane %v119, 4
  %v121 = vadd.f32 %v119, %v120
  %v122 = vrot.slane %v121, 2
  %v123 = vadd.f32 %v121, %v122
  %v124 = vrot.slane %v123, 1
  %v125 = vadd.f32 %v123, %v124
  %v128 = vsel %vm80, %v125, %v118
  %v130 = vadd.f32 %v109, %v128
  %131 = vst.msk [vmem:[%s4] sm:$0x3] %vm84, %v130
  // Predicated region
  $region14: #{revisit_rd_loss.12} parent=0 // pred_check
    _
  $region15: #{revisit_rd_loss.12} parent=0 // pred_check_branch
    %133 = sbr.rel (0) target = $region17
  $region16: #{revisit_rd_loss.12} parent=0 // pred_region
    _
  $region17: #{revisit_rd_loss.12} parent=0 // pred_fallthru
    _
  // Predicated region
  $region18: #{revisit_rd_loss.12} parent=0 // pred_check
    _
  $region19: #{revisit_rd_loss.12} parent=0 // pred_check_branch
    %135 = sbr.rel (0) target = $region21
  $region20: #{revisit_rd_loss.12} parent=0 // pred_region
    _
  $region21: #{revisit_rd_loss.12} parent=0 // pred_fallthru
    _
  // Predicated region
  $region22: #{revisit_rd_loss.12} parent=0 // pred_check
    _
  $region23: #{revisit_rd_loss.12} parent=0 // pred_check_branch
    %137 = sbr.rel (0) target = $region25
  $region24: #{revisit_rd_loss.12} parent=0 // pred_region
    _
  $region25: #{revisit_rd_loss.12} parent=0 // pred_fallthru
    _
  // Predicated region
  $region26: #{revisit_rd_loss.12} parent=0 // pred_check
    _
  $region27: #{revisit_rd_loss.12} parent=0 // pred_check_branch
    %139 = sbr.rel (0) target = $region29
  $region28: #{revisit_rd_loss.12} parent=0 // pred_region
    _
  $region29: #{revisit_rd_loss.12} parent=0 // pred_fallthru
    _
  // Predicated region
  $region30: #{revisit_rd_loss.12} parent=0 // pred_check
    _
  $region31: #{revisit_rd_loss.12} parent=0 // pred_check_branch
    %141 = sbr.rel (0) target = $region33
  $region32: #{revisit_rd_loss.12} parent=0 // pred_region
    _
  $region33: #{revisit_rd_loss.12} parent=0 // pred_fallthru
    _
  // Predicated region
  $region34: #{revisit_rd_loss.12} parent=0 // pred_check
    _
  $region35: #{revisit_rd_loss.12} parent=0 // pred_check_branch
    %143 = sbr.rel (0) target = $region37
  $region36: #{revisit_rd_loss.12} parent=0 // pred_region
    _
  $region37: #{revisit_rd_loss.12} parent=0 // pred_fallthru
    _

// kernel: revisit_rd_loss.13
$region0: #{revisit_rd_loss.13}
  #allocation0 [shape = 'u32[]', space=smem, size = 0x4, offset = 0x4, fixed_abs, tag = 'smem constant byte address 0x4 - core index']
  #allocation1 [shape = 'u32[144,128]{1,0:T(1,128)}', space=vmem, size = 0x12000, scoped, tag = 'internal scratch']
  %s0 = inlined_call_operand.vmem [shape: f32[2,16,16], index: 0, kind: input, shape index: {}]
  %s1 = inlined_call_operand.vmem [shape: f32[2,16,16], index: 1, kind: input, shape index: {}]
  %s2 = inlined_call_operand.vmem [shape: f32[1,2,16], index: 2, kind: output, shape index: {0}]
  %s3 = inlined_call_operand.vmem [shape: f32[1,2,16], index: 3, kind: output, shape index: {1}]
  %s4 = inlined_call_operand.vmem [shape: f32[1,2,16], index: 4, kind: output, shape index: {2}]
  %5 = xla_tuple %s2, %s3, %s4
  %s6 = sld [smem:[#allocation0]]
  $region38: #{revisit_rd_loss.13} parent=0
    _
  %s8 = ssub.s32 1, %s6
  %s9 = scalar_select 0, %s8, %s6
  // Predicated region
  $region2: #{revisit_rd_loss.13} parent=0 // pred_check
    _
  $region3: #{revisit_rd_loss.13} parent=0 // pred_check_branch
    %11 = sbr.rel (0) target = $region5
  $region4: #{revisit_rd_loss.13} parent=0 // pred_region
    %s12 = sadd.s32 0, 0
    %s13 = smul.u32 2, %s12
    %p14 = scmp.lt.s32.totalorder %s13, 1
    %s15 = scalar_select %p14, %s13, 1
    %s16 = smul.addr %s15, 8
    %s17 = scalar_lea.vmem %s0, %s16
    %s18 = sadd.s32 0, 0
    %s19 = smul.u32 2, %s18
  $region5: #{revisit_rd_loss.13} parent=0 // pred_fallthru
    _
  // Predicated region
  $region6: #{revisit_rd_loss.13} parent=0 // pred_check
    _
  $region7: #{revisit_rd_loss.13} parent=0 // pred_check_branch
    %21 = sbr.rel (0) target = $region9
  $region8: #{revisit_rd_loss.13} parent=0 // pred_region
    %s22 = sadd.s32 0, 0
    %s23 = smul.u32 2, %s22
    %p24 = scmp.lt.s32.totalorder %s23, 1
    %s25 = scalar_select %p24, %s23, 1
    %s26 = smul.addr %s25, 8
    %s27 = scalar_lea.vmem %s1, %s26
    %s28 = sadd.s32 0, 0
    %s29 = smul.u32 2, %s28
  $region9: #{revisit_rd_loss.13} parent=0 // pred_fallthru
    _
  %s30 = sadd.s32 0, 0
  %s31 = smul.u32 2, %s30
  %p32 = scmp.lt.s32.totalorder %s31, 1
  %s33 = scalar_select %p32, %s31, 1
  %s34 = smul.addr %s33, 8
  %s35 = scalar_lea.vmem %s0, %s34
  %s36 = sadd.s32 0, 0
  %s37 = smul.u32 2, %s36
  %p38 = scmp.lt.s32.totalorder %s37, 1
  %s39 = scalar_select %p38, %s37, 1
  %s40 = smul.addr %s39, 8
  %s41 = scalar_lea.vmem %s1, %s40
  %s42 = sadd.s32 0, 0
  %s43 = smul.u32 2, %s42
  %p44 = scmp.lt.s32.totalorder %s43, 1
  %s45 = scalar_select %p44, %s43, 1
  %s46 = smul.addr %s45, 8
  %s47 = scalar_lea.vmem %s0, %s46
  %s48 = sadd.s32 0, 0
  %s49 = smul.u32 2, %s48
  %s50 = sadd.s32 0, 0
  %s51 = smul.u32 2, %s50
  %p52 = scmp.lt.s32.totalorder %s51, 1
  %s53 = scalar_select %p52, %s51, 1
  %s54 = smul.addr %s53, 8
  %s55 = scalar_lea.vmem %s1, %s54
  %s56 = sadd.s32 0, 0
  %s57 = smul.u32 2, %s56
  %p58 = scmp.eq.s32.totalorder 0, 0
  // Predicated region
  $region10: #{revisit_rd_loss.13} parent=0 // pred_check
    %p59 = pneg %p58
  $region11: #{revisit_rd_loss.13} parent=0 // pred_check_branch
    %61 = sbr.rel (%p59) target = $region13
  $region12: #{revisit_rd_loss.13} parent=0 // pred_region
    %vm62 = vcmask 123904
    %63 = vst.msk [vmem:[%s2] sm:$0x3] %vm62, 0.0
    %64 = vst.msk [vmem:[%s3] sm:$0x3] %vm62, 0.0
    %65 = vst.msk [vmem:[%s4] sm:$0x3] %vm62, 0.0
  $region13: #{revisit_rd_loss.13} parent=0 // pred_fallthru
    _
  %v66 = vld [vmem:[%s47] sm:$0xff]
  %v67 = vld [vmem:[%s47 + $0x8] sm:$0xff]
  %v68 = vld [vmem:[%s47 + $0x10] sm:$0xff]
  %v69 = vld [vmem:[%s47 + $0x18] sm:$0xff]
  %v70 = vld [vmem:[%s55] sm:$0xff]
  %v71 = vld [vmem:[%s55 + $0x8] sm:$0xff]
  %v72 = vld [vmem:[%s55 + $0x10] sm:$0xff]
  %v73 = vld [vmem:[%s55 + $0x18] sm:$0xff]
  %v74 = vld [vmem:[%s2] sm:$0x3]
  %v75 = vmul.f32 %v66, %v70
  %v76 = vmul.f32 %v67, %v71
  %v77 = vmul.f32 %v68, %v72
  %v78 = vmul.f32 %v69, %v73
  %vm79 = vcmask 130048
  %v80 = vsel %vm79, %v75, 0.0
  %v81 = vsel %vm79, %v76, 0.0
  %v82 = vadd.f32 %v80, %v81
  %v83 = vrot.slane %v82, 4
  %v84 = vadd.f32 %v82, %v83
  %v85 = vrot.slane %v84, 2
  %v86 = vadd.f32 %v84, %v85
  %v87 = vrot.slane %v86, 1
  %v88 = vadd.f32 %v86, %v87
  %v89 = vsel %vm79, %v77, 0.0
  %v90 = vsel %vm79, %v78, 0.0
  %v91 = vadd.f32 %v89, %v90
  %v92 = vrot.slane %v91, 4
  %v93 = vadd.f32 %v91, %v92
  %v94 = vrot.slane %v93, 2
  %v95 = vadd.f32 %v93, %v94
  %v96 = vrot.slane %v95, 1
  %v97 = vadd.f32 %v95, %v96
  %vm100 = vcmask 1041409
  %v101 = vsel %vm100, %v97, %v88
  %v103 = vadd.f32 %v74, %v101
  %vm104 = vcmask 123904
  %105 = vst.msk [vmem:[%s2] sm:$0x3] %vm104, %v103
  %v106 = vld [vmem:[%s3] sm:$0x3]
  %v107 = vmul.f32 %v66, %v66
  %v108 = vmul.f32 %v67, %v67
  %v109 = vmul.f32 %v68, %v68
  %v110 = vmul.f32 %v69, %v69
  %v111 = vsel %vm79, %v107, 0.0
  %v112 = vsel %vm79, %v108, 0.0
  %v113 = vadd.f32 %v111, %v112
  %v114 = vrot.slane %v113, 4
  %v115 = vadd.f32 %v113, %v114
  %v116 = vrot.slane %v115, 2
  %v117 = vadd.f32 %v115, %v116
  %v118 = vrot.slane %v117, 1
  %v119 = vadd.f32 %v117, %v118
  %v120 = vsel %vm79, %v109, 0.0
  %v121 = vsel %vm79, %v110, 0.0
  %v122 = vadd.f32 %v120, %v121
  %v123 = vrot.slane %v122, 4
  %v124 = vadd.f32 %v122, %v123
  %v125 = vrot.slane %v124, 2
  %v126 = vadd.f32 %v124, %v125
  %v127 = vrot.slane %v126, 1
  %v128 = vadd.f32 %v126, %v127
  %v131 = vsel %vm100, %v128, %v119
  %v133 = vadd.f32 %v106, %v131
  %134 = vst.msk [vmem:[%s3] sm:$0x3] %vm104, %v133
  %v135 = vld [vmem:[%s4] sm:$0x3]
  %v136 = vmul.f32 %v70, %v70
  %v137 = vmul.f32 %v71, %v71
  %v138 = vmul.f32 %v72, %v72
  %v139 = vmul.f32 %v73, %v73
  %v140 = vsel %vm79, %v136, 0.0
  %v141 = vsel %vm79, %v137, 0.0
  %v142 = vadd.f32 %v140, %v141
  %v143 = vrot.slane %v142, 4
  %v144 = vadd.f32 %v142, %v143
  %v145 = vrot.slane %v144, 2
  %v146 = vadd.f32 %v144, %v145
  %v147 = vrot.slane %v146, 1
  %v148 = vadd.f32 %v146, %v147
  %v149 = vsel %vm79, %v138, 0.0
  %v150 = vsel %vm79, %v139, 0.0
  %v151 = vadd.f32 %v149, %v150
  %v152 = vrot.slane %v151, 4
  %v153 = vadd.f32 %v151, %v152
  %v154 = vrot.slane %v153, 2
  %v155 = vadd.f32 %v153, %v154
  %v156 = vrot.slane %v155, 1
  %v157 = vadd.f32 %v155, %v156
  %v160 = vsel %vm100, %v157, %v148
  %v162 = vadd.f32 %v135, %v160
  %163 = vst.msk [vmem:[%s4] sm:$0x3] %vm104, %v162
  // Predicated region
  $region14: #{revisit_rd_loss.13} parent=0 // pred_check
    _
  $region15: #{revisit_rd_loss.13} parent=0 // pred_check_branch
    %165 = sbr.rel (0) target = $region17
  $region16: #{revisit_rd_loss.13} parent=0 // pred_region
    _
  $region17: #{revisit_rd_loss.13} parent=0 // pred_fallthru
    _
  // Predicated region
  $region18: #{revisit_rd_loss.13} parent=0 // pred_check
    _
  $region19: #{revisit_rd_loss.13} parent=0 // pred_check_branch
    %167 = sbr.rel (0) target = $region21
  $region20: #{revisit_rd_loss.13} parent=0 // pred_region
    _
  $region21: #{revisit_rd_loss.13} parent=0 // pred_fallthru
    _
  // Predicated region
  $region22: #{revisit_rd_loss.13} parent=0 // pred_check
    _
  $region23: #{revisit_rd_loss.13} parent=0 // pred_check_branch
    %169 = sbr.rel (0) target = $region25
  $region24: #{revisit_rd_loss.13} parent=0 // pred_region
    _
  $region25: #{revisit_rd_loss.13} parent=0 // pred_fallthru
    _
  // Predicated region
  $region26: #{revisit_rd_loss.13} parent=0 // pred_check
    _
  $region27: #{revisit_rd_loss.13} parent=0 // pred_check_branch
    %171 = sbr.rel (0) target = $region29
  $region28: #{revisit_rd_loss.13} parent=0 // pred_region
    _
  $region29: #{revisit_rd_loss.13} parent=0 // pred_fallthru
    _
  // Predicated region
  $region30: #{revisit_rd_loss.13} parent=0 // pred_check
    _
  $region31: #{revisit_rd_loss.13} parent=0 // pred_check_branch
    %173 = sbr.rel (0) target = $region33
  $region32: #{revisit_rd_loss.13} parent=0 // pred_region
    _
  $region33: #{revisit_rd_loss.13} parent=0 // pred_fallthru
    _
  // Predicated region
  $region34: #{revisit_rd_loss.13} parent=0 // pred_check
    _
  $region35: #{revisit_rd_loss.13} parent=0 // pred_check_branch
    %175 = sbr.rel (0) target = $region37
  $region36: #{revisit_rd_loss.13} parent=0 // pred_region
    _
  $region37: #{revisit_rd_loss.13} parent=0 // pred_fallthru
    _

</llo_original>
